<compile_context>
chip_gen: v7x
topology: tpu7x:2x2x1
jax: 0.10.0
libtpu: 0.0.40
codegen_flags: <defaults>
</compile_context>

<pallas_src>
import functools

import jax
import jax.numpy as jnp
from jax.experimental import pallas as pl
from jax.experimental.pallas import tpu as pltpu

# Make the in-kernel MXU matmuls and the pure-JAX reference use the same
# (highest) precision so the correctness check is meaningful.
jax.config.update("jax_default_matmul_precision", "highest")

# ---- shrunk Glm4vVisionConfig (production: hidden=1536, heads=12, head_dim=128)
SEQ_LEN = 16
NUM_HEADS = 2
HEAD_DIM = 128                      # keep production head_dim -> lane-aligned blocks
HIDDEN = NUM_HEADS * HEAD_DIM       # 256
HALF = HEAD_DIM // 2
ATTENTION_BIAS = True

_MASK = -1e30   # safe: scores are always f32 (preferred_element_type=f32)


def _rotate_half(x):
    # TODO(synk): at head_dim=128 pltpu.roll(x, half, axis=-1) * sign uses the
    # otherwise-idle XLU slot; the concat form is kept for portability.
    half = x.shape[-1] // 2
    return jnp.concatenate([-x[..., half:], x[..., :half]], axis=-1)


# ---------------------------------------------------------------------------
# Kernel 1: fused QKV projection  (rows, H) @ (H, 3H) + bias
# ---------------------------------------------------------------------------
def _qkv_proj_kernel(x_ref, w_ref, b_ref, qkv_ref):
    acc = jnp.dot(x_ref[...], w_ref[...], preferred_element_type=jnp.float32)
    qkv_ref[...] = (acc + b_ref[...].astype(jnp.float32)).astype(qkv_ref.dtype)


# ---------------------------------------------------------------------------
# Kernel 2: flash attention with fused RoPE and packed-image masking.
# grid = (heads, q_blocks, kv_blocks); kv is the (innermost) reduction axis.
# ---------------------------------------------------------------------------
def _flash_attn_kernel(seg_smem,                       # scalar-prefetch (S,) int32
                       q_ref, k_ref, v_ref,            # (q_blk,Dh)/(kv_blk,Dh)
                       cos_q_ref, sin_q_ref, cos_k_ref, sin_k_ref,
                       seg_col_ref, seg_row_ref,       # (q_blk,1) / (1,kv_blk)
                       o_ref,                          # (q_blk,Dh)
                       q_scratch, m_scratch, l_scratch, acc_scratch,
                       *, scale, q_block, kv_block):
    qi = pl.program_id(1)
    ki = pl.program_id(2)

    @pl.when(ki == 0)
    def _init():
        # RoPE in f32 (matches torch apply_rotary_pos_emb_vision), scaling folded
        # into q, cached in VMEM scratch for every kv step of this (head, q-block).
        q = q_ref[...].astype(jnp.float32)
        q = q * cos_q_ref[...] + _rotate_half(q) * sin_q_ref[...]
        q_scratch[...] = (q * scale).astype(q_scratch.dtype)
        m_scratch[...] = jnp.full_like(m_scratch, _MASK)
        l_scratch[...] = jnp.zeros_like(l_scratch)
        acc_scratch[...] = jnp.zeros_like(acc_scratch)

    # Segment-overlap test from scalar-prefetched segment ids (SMEM): skip kv
    # tiles that lie entirely outside the q tile's segments (block-diagonal
    # varlen attention over packed images).
    q_lo = qi * q_block
    k_lo = ki * kv_block
    seg_q0 = seg_smem[q_lo]
    seg_q1 = seg_smem[q_lo + q_block - 1]
    seg_k0 = seg_smem[k_lo]
    seg_k1 = seg_smem[k_lo + kv_block - 1]
    tiles_overlap = jnp.logical_and(seg_k0 <= seg_q1, seg_q0 <= seg_k1)

    @pl.when(tiles_overlap)
    def _compute():
        # RoPE on the k tile (recomputed per q-block; cheap VALU work vs MXU),
        # cast back to the input dtype so the MXU sees native-dtype operands.
        k = k_ref[...].astype(jnp.float32)
        k = k * cos_k_ref[...] + _rotate_half(k) * sin_k_ref[...]
        k = k.astype(k_ref.dtype)
        v = v_ref[...]

        # (q_blk, kv_blk) scores, f32 accumulation.
        s = jax.lax.dot_general(q_scratch[...], k,
                                (((1,), (1,)), ((), ())),
                                preferred_element_type=jnp.float32)
        mask = seg_col_ref[...] == seg_row_ref[...]            # (q_blk, kv_blk)
        s = jnp.where(mask, s, _MASK)

        m_prev = m_scratch[...]
        m_new = jnp.maximum(m_prev, jnp.max(s, axis=-1, keepdims=True))
        alpha = jnp.exp(m_prev - m_new)
        # second where guards rows that are fully masked inside this tile
        p = jnp.where(mask, jnp.exp(s - m_new), 0.0)
        l_scratch[...] = alpha * l_scratch[...] + jnp.sum(p, axis=-1, keepdims=True)
        acc_scratch[...] = alpha * acc_scratch[...] + jnp.dot(
            p.astype(v.dtype), v, preferred_element_type=jnp.float32)
        m_scratch[...] = m_new

    @pl.when(ki == pl.num_programs(2) - 1)
    def _finalize():
        # Deferred, exact softmax normalization on the (q_blk, head_dim) output.
        o_ref[...] = (acc_scratch[...] / l_scratch[...]).astype(o_ref.dtype)


# ---------------------------------------------------------------------------
# Kernel 3: output projection  (rows, H) @ (H, H)
# ---------------------------------------------------------------------------
def _out_proj_kernel(x_ref, w_ref, o_ref):
    o_ref[...] = jnp.dot(x_ref[...], w_ref[...],
                         preferred_element_type=jnp.float32).astype(o_ref.dtype)


# ---------------------------------------------------------------------------
# Wrapper
# ---------------------------------------------------------------------------
def glm4v_vision_attention(hidden_states, cu_seqlens, cos, sin,
                           wqkv_t, bqkv, wproj_t,
                           *, q_block=256, kv_block=256, row_block=512):
    """Glm4vVisionAttention forward.

    hidden_states: (S, H); cu_seqlens: (n_images+1,) packed-image boundaries;
    cos/sin: (S, head_dim); wqkv_t: (H, 3H) pre-transposed nn.Linear weight;
    bqkv: (1, 3H); wproj_t: (H, H).
    Tile defaults target v7x (64 MiB VMEM); use ~512-row tiles on v5e/v6e.
    """
    S, H = hidden_states.shape
    nh = NUM_HEADS
    dh = H // nh
    scale = dh ** -0.5
    dtype = hidden_states.dtype

    q_blk = min(q_block, S)
    kv_blk = min(kv_block, S)
    r_blk = min(row_block, S)
    # TODO(synk): pad ragged sequence lengths up to the block size.
    assert S % q_blk == 0 and S % kv_blk == 0 and S % r_blk == 0

    # ---- fused QKV projection ------------------------------------------------
    qkv = pl.pallas_call(
        _qkv_proj_kernel,
        out_shape=jax.ShapeDtypeStruct((S, 3 * H), dtype),
        grid=(S // r_blk,),
        in_specs=[pl.BlockSpec((r_blk, H), lambda i: (i, 0)),
                  pl.BlockSpec((H, 3 * H), lambda i: (0, 0)),
                  pl.BlockSpec((1, 3 * H), lambda i: (0, 0))],
        out_specs=pl.BlockSpec((r_blk, 3 * H), lambda i: (i, 0)),
        compiler_params=pltpu.CompilerParams(dimension_semantics=("parallel",)),
    )(hidden_states, wqkv_t, bqkv)

    # ---- per-position segment ids from cu_seqlens (no dense (S,S) bias) -------
    pos = jnp.arange(S, dtype=jnp.int32)
    seg = (jnp.searchsorted(cu_seqlens.astype(jnp.int32), pos, side="right") - 1
           ).astype(jnp.int32)
    seg_col = seg.reshape(S, 1)
    seg_row = seg.reshape(1, S)

    cos_f = cos.astype(jnp.float32)
    sin_f = sin.astype(jnp.float32)

    # ---- flash attention: grid = (heads, q blocks, kv blocks) -----------------
    kernel = functools.partial(_flash_attn_kernel, scale=scale,
                               q_block=q_blk, kv_block=kv_blk)
    attn = pl.pallas_call(
        kernel,
        out_shape=jax.ShapeDtypeStruct((S, H), dtype),
        grid_spec=pltpu.PrefetchScalarGridSpec(
            num_scalar_prefetch=1,
            grid=(nh, S // q_blk, S // kv_blk),
            in_specs=[
                # q / k / v: head h = lane-block h / nh+h / 2nh+h of (S, 3H) qkv
                pl.BlockSpec((q_blk, dh), lambda h, qi, ki, seg: (qi, h)),
                pl.BlockSpec((kv_blk, dh), lambda h, qi, ki, seg: (ki, nh + h)),
                pl.BlockSpec((kv_blk, dh), lambda h, qi, ki, seg: (ki, 2 * nh + h)),
                # rotary tables for the q tile and the k tile
                pl.BlockSpec((q_blk, dh), lambda h, qi, ki, seg: (qi, 0)),
                pl.BlockSpec((q_blk, dh), lambda h, qi, ki, seg: (qi, 0)),
                pl.BlockSpec((kv_blk, dh), lambda h, qi, ki, seg: (ki, 0)),
                pl.BlockSpec((kv_blk, dh), lambda h, qi, ki, seg: (ki, 0)),
                # segment ids for the elementwise tile mask
                pl.BlockSpec((q_blk, 1), lambda h, qi, ki, seg: (qi, 0)),
                pl.BlockSpec((1, kv_blk), lambda h, qi, ki, seg: (0, ki)),
            ],
            out_specs=pl.BlockSpec((q_blk, dh), lambda h, qi, ki, seg: (qi, h)),
            scratch_shapes=[
                pltpu.VMEM((q_blk, dh), dtype),        # roped + scaled q tile
                pltpu.VMEM((q_blk, 1), jnp.float32),   # running max m
                pltpu.VMEM((q_blk, 1), jnp.float32),   # running denom l
                pltpu.VMEM((q_blk, dh), jnp.float32),  # unnormalized output acc
            ]),
        compiler_params=pltpu.CompilerParams(
            dimension_semantics=("parallel", "parallel", "arbitrary")),
    )(seg, qkv, qkv, qkv, cos_f, sin_f, cos_f, sin_f, seg_col, seg_row)

    # ---- output projection -----------------------------------------------------
    out = pl.pallas_call(
        _out_proj_kernel,
        out_shape=jax.ShapeDtypeStruct((S, H), dtype),
        grid=(S // r_blk,),
        in_specs=[pl.BlockSpec((r_blk, H), lambda i: (i, 0)),
                  pl.BlockSpec((H, H), lambda i: (0, 0))],
        out_specs=pl.BlockSpec((r_blk, H), lambda i: (i, 0)),
        compiler_params=pltpu.CompilerParams(dimension_semantics=("parallel",)),
    )(attn, wproj_t)
    return out


# ---------------------------------------------------------------------------
# Pure-JAX reference mirroring the PyTorch module 1:1.
# ---------------------------------------------------------------------------
def _reference(x, cos, sin, wqkv_t, bqkv, wproj_t, cu_seqlens=None):
    S, H = x.shape
    nh = NUM_HEADS
    dh = H // nh
    half = dh // 2
    qkv = x @ wqkv_t + bqkv.reshape(-1)
    qkv = qkv.reshape(S, 3, nh, dh)
    q, k, v = qkv[:, 0], qkv[:, 1], qkv[:, 2]                  # (S, nh, dh)
    cos_b = cos[:, None, :].astype(jnp.float32)
    sin_b = sin[:, None, :].astype(jnp.float32)

    def rope(t):
        t = t.astype(jnp.float32)
        rot = jnp.concatenate([-t[..., half:], t[..., :half]], axis=-1)
        return (t * cos_b + rot * sin_b).astype(x.dtype)

    qf = rope(q).transpose(1, 0, 2)
    kf = rope(k).transpose(1, 0, 2)
    vf = v.transpose(1, 0, 2)
    s = jnp.einsum("hqd,hkd->hqk", qf, kf).astype(jnp.float32) * (dh ** -0.5)
    if cu_seqlens is not None:
        pos = jnp.arange(S, dtype=jnp.int32)
        seg = jnp.searchsorted(cu_seqlens.astype(jnp.int32), pos, side="right") - 1
        s = jnp.where((seg[:, None] == seg[None, :])[None], s, _MASK)
    p = jax.nn.softmax(s, axis=-1).astype(x.dtype)
    o = jnp.einsum("hqk,hkd->hqd", p, vf)
    o = o.transpose(1, 0, 2).reshape(S, H)
    return o @ wproj_t


if __name__ == "__main__":
    key = jax.random.PRNGKey(0)
    k_x, k_w, k_b, k_p, k_r = jax.random.split(key, 5)

    hidden_states = jax.random.normal(k_x, (SEQ_LEN, HIDDEN), jnp.float32)
    wqkv_t = (jax.random.normal(k_w, (HIDDEN, 3 * HIDDEN), jnp.float32)
              * HIDDEN ** -0.5)
    bqkv = (jax.random.normal(k_b, (1, 3 * HIDDEN), jnp.float32) * 0.02
            if ATTENTION_BIAS else jnp.zeros((1, 3 * HIDDEN), jnp.float32))
    wproj_t = (jax.random.normal(k_p, (HIDDEN, HIDDEN), jnp.float32)
               * HIDDEN ** -0.5)

    # rotary tables: emb = cat(rpe, rpe); cos/sin -> (S, head_dim)
    rotary_pos_emb = jax.random.normal(k_r, (SEQ_LEN, HALF), jnp.float32)
    emb = jnp.concatenate([rotary_pos_emb, rotary_pos_emb], axis=-1)
    cos, sin = jnp.cos(emb), jnp.sin(emb)

    # With exact division and highest matmul precision on both sides the
    # observed error is ~1e-5; the tolerance below is just margin.
    TOL = 5e-3

    # Case 1: single image (cu_seqlens=[0, S]) -> dense attention.
    cu1 = jnp.array([0, SEQ_LEN], dtype=jnp.int32)
    out1 = jax.block_until_ready(
        glm4v_vision_attention(hidden_states, cu1, cos, sin, wqkv_t, bqkv, wproj_t))
    ref1 = _reference(hidden_states, cos, sin, wqkv_t, bqkv, wproj_t, cu_seqlens=None)
    err1 = float(jnp.max(jnp.abs(out1 - ref1)))
    assert out1.shape == (SEQ_LEN, HIDDEN)
    assert jnp.allclose(out1, ref1, rtol=TOL, atol=TOL), f"dense mismatch {err1}"

    # Case 2: two packed images -> block-diagonal (varlen) attention.
    cu2 = jnp.array([0, 10, SEQ_LEN], dtype=jnp.int32)
    out2 = jax.block_until_ready(
        glm4v_vision_attention(hidden_states, cu2, cos, sin, wqkv_t, bqkv, wproj_t))
    ref2 = _reference(hidden_states, cos, sin, wqkv_t, bqkv, wproj_t, cu_seqlens=cu2)
    err2 = float(jnp.max(jnp.abs(out2 - ref2)))
    assert jnp.allclose(out2, ref2, rtol=TOL, atol=TOL), f"packed mismatch {err2}"

    print("KERNEL_OK")
</pallas_src>

<mosaic_0001>
module attributes {stable_mosaic.version = 11 : i64} {
  func.func @_qkv_proj_kernel(%arg0: i32, %arg1: memref<16x256xf32, #tpu.memory_space<vmem>>, %arg2: memref<256x768xf32, #tpu.memory_space<vmem>>, %arg3: memref<1x768xf32, #tpu.memory_space<vmem>>, %arg4: memref<16x768xf32, #tpu.memory_space<vmem>>) attributes {dimension_semantics = [#tpu.dimension_semantics<parallel>], iteration_bounds = array<i64: 1>, scalar_prefetch = 0 : i64, scratch_operands = 0 : i64, tpu.core_type = #tpu.core_type<tc>, window_params = [{transform_indices = @transform_0, window_bounds = array<i64: 16, 256>}, {pipeline_mode = #tpu.pipeline_mode<synchronous>, transform_indices = @transform_1, window_bounds = array<i64: 256, 768>}, {pipeline_mode = #tpu.pipeline_mode<synchronous>, transform_indices = @transform_2, window_bounds = array<i64: 1, 768>}, {transform_indices = @transform_3, window_bounds = array<i64: 16, 768>}]} {
    %c0 = arith.constant 0 : index
    %c0_0 = arith.constant 0 : index
    %0 = vector.load %arg1[%c0, %c0_0] : memref<16x256xf32, #tpu.memory_space<vmem>>, vector<16x256xf32>
    %c0_1 = arith.constant 0 : index
    %c0_2 = arith.constant 0 : index
    %1 = vector.load %arg2[%c0_1, %c0_2] : memref<256x768xf32, #tpu.memory_space<vmem>>, vector<256x768xf32>
    %cst = arith.constant dense<0.000000e+00> : vector<16x768xf32>
    %2 = tpu.matmul %0, %1, %cst {dimension_numbers = #tpu.dot_dimension_numbers<[1], [0], [0], [1], [0, 0, 1, 1], [], []>, precision = #tpu.contract_precision<fp32>} : vector<16x256xf32>, vector<256x768xf32>, vector<16x768xf32> -> vector<16x768xf32>
    %c0_3 = arith.constant 0 : index
    %c0_4 = arith.constant 0 : index
    %3 = vector.load %arg3[%c0_3, %c0_4] : memref<1x768xf32, #tpu.memory_space<vmem>>, vector<1x768xf32>
    %4 = vector.broadcast %3 : vector<1x768xf32> to vector<16x768xf32>
    %5 = arith.addf %2, %4 : vector<16x768xf32>
    %c0_5 = arith.constant 0 : index
    %c0_6 = arith.constant 0 : index
    %6 = vector.load %arg4[%c0_5, %c0_6] : memref<16x768xf32, #tpu.memory_space<vmem>>, vector<16x768xf32>
    tpu.vector_store %arg4[%c0_5, %c0_6], %5 {strides = array<i32>} : memref<16x768xf32, #tpu.memory_space<vmem>>, vector<16x768xf32>,
    return
  }
  func.func @transform_0(%arg0: i32) -> (i32, i32) {
    %c0_i32 = arith.constant 0 : i32
    %c0_i32_0 = arith.constant 0 : i32
    return %arg0, %c0_i32 : i32, i32
  }
  func.func @transform_1(%arg0: i32) -> (i32, i32) {
    %c0_i32 = arith.constant 0 : i32
    %c0_i32_0 = arith.constant 0 : i32
    %c0_i32_1 = arith.constant 0 : i32
    return %c0_i32, %c0_i32_0 : i32, i32
  }
  func.func @transform_2(%arg0: i32) -> (i32, i32) {
    %c0_i32 = arith.constant 0 : i32
    %c0_i32_0 = arith.constant 0 : i32
    %c0_i32_1 = arith.constant 0 : i32
    return %c0_i32, %c0_i32_0 : i32, i32
  }
  func.func @transform_3(%arg0: i32) -> (i32, i32) {
    %c0_i32 = arith.constant 0 : i32
    %c0_i32_0 = arith.constant 0 : i32
    return %arg0, %c0_i32 : i32, i32
  }
}

</mosaic_0001>

<llo_original>
// kernel: tpu_custom_call.1
$region0: #{tpu_custom_call.1}
  #allocation0 [shape = 'u32[]', space=smem, size = 0x4, offset = 0x4, fixed_abs, tag = 'smem constant byte address 0x4 - core index']
  #allocation1 [shape = 'u32[144,128]{1,0:T(1,128)}', space=vmem, size = 0x12000, scoped, tag = 'internal scratch']
  %s0 = inlined_call_operand.hbm [shape: f32[16,256], index: 0, kind: input, shape index: {}]
  %s1 = inlined_call_operand.hbm [shape: f32[256,768], index: 1, kind: input, shape index: {}]
  %s2 = inlined_call_operand.vmem [shape: f32[1,768], index: 2, kind: input, shape index: {}]
  %s3 = inlined_call_operand.hbm [shape: f32[16,768], index: 3, kind: output, shape index: {}]
  %s4 = sld [smem:[#allocation0]]
  $region30: #{tpu_custom_call.1} parent=0
    _
  %s6 = ssub.s32 1, %s4
  %s7 = scalar_select 0, %s6, %s4
  $region1: #{tpu_custom_call.1} parent=0
    #allocation2 [shape = 'u8[16384]{0}', space=vmem, size = 0x4000, scoped, tag = 'input window, operand 0, single buffered']
    #allocation3 [shape = 's32[1]{0}', space=sflag, size = 0x4, scoped, tag = 'scoped memory for tpu_custom_call.1']
    #allocation4 [shape = 's32[1]{0}', space=sflag, size = 0x4, scoped, tag = 'scoped memory for tpu_custom_call.1']
    #allocation5 [shape = 'u8[786432]{0}', space=vmem, size = 0xc0000, scoped, tag = 'input window, operand 1, single buffered']
    #allocation6 [shape = 's32[1]{0}', space=sflag, size = 0x4, scoped, tag = 'scoped memory for tpu_custom_call.1']
    #allocation7 [shape = 'u8[49152]{0}', space=vmem, size = 0xc000, scoped, tag = 'output window, operand 0, single buffered']
    %8 = vsyncpa [#allocation3], 0
    %9 = vsyncpa [#allocation6], 0
    %10 = vsyncpa [#allocation4], 0
    // Predicated region
    $region2: #{tpu_custom_call.1} parent=1 // pred_check
      _
    $region3: #{tpu_custom_call.1} parent=1 // pred_check_branch
      %12 = sbr.rel (0) target = $region5
    $region4: #{tpu_custom_call.1} parent=1 // pred_region
      %s14 = ssub.s32 512, 512
      %15 = vsyncadd [#allocation3], %s14
      %s16 = sshll.u32 [#allocation2], 4
      %s17 = int_to_ptr.vmem [resolvable:$true] %s16
      %22 = dma.hbm_to_vmem [thread:$0]  %s0, 512, %s17, [#allocation3], 256, 256, 16
    $region5: #{tpu_custom_call.1} parent=1 // pred_fallthru
      _
    // Predicated region
    $region6: #{tpu_custom_call.1} parent=1 // pred_check
      _
    $region7: #{tpu_custom_call.1} parent=1 // pred_check_branch
      %24 = sbr.rel (0) target = $region9
    $region8: #{tpu_custom_call.1} parent=1 // pred_region
      %s26 = ssub.s32 24576, 24576
      %27 = vsyncadd [#allocation6], %s26
      %s28 = sshll.u32 [#allocation5], 4
      %s29 = int_to_ptr.vmem [resolvable:$true] %s28
      %34 = dma.hbm_to_vmem [thread:$0]  %s1, 24576, %s29, [#allocation6], 768, 768, 48
    $region9: #{tpu_custom_call.1} parent=1 // pred_fallthru
      _
    // Predicated region
    $region10: #{tpu_custom_call.1} parent=1 // pred_check
      _
    $region11: #{tpu_custom_call.1} parent=1 // pred_check_branch
      %36 = sbr.rel (0) target = $region13
    $region12: #{tpu_custom_call.1} parent=1 // pred_region
      _
    $region13: #{tpu_custom_call.1} parent=1 // pred_fallthru
      _
    // Predicated region
    $region14: #{tpu_custom_call.1} parent=1 // pred_check
      _
    $region15: #{tpu_custom_call.1} parent=1 // pred_check_branch
      %38 = sbr.rel (0) target = $region17
    $region16: #{tpu_custom_call.1} parent=1 // pred_region
      %39 = dma.done [#allocation3], 512
    $region17: #{tpu_custom_call.1} parent=1 // pred_fallthru
      _
    // Predicated region
    $region18: #{tpu_custom_call.1} parent=1 // pred_check
      _
    $region19: #{tpu_custom_call.1} parent=1 // pred_check_branch
      %41 = sbr.rel (0) target = $region21
    $region20: #{tpu_custom_call.1} parent=1 // pred_region
      %42 = dma.done [#allocation6], 24576
    $region21: #{tpu_custom_call.1} parent=1 // pred_fallthru
      _
    %v43 = vld [vmem:[#allocation2] sm:$0xff]
    %v44 = vld [vmem:[#allocation2 + $0x8] sm:$0xff]
    %v45 = vld [vmem:[#allocation2 + $0x10] sm:$0xff]
    %v46 = vld [vmem:[#allocation2 + $0x18] sm:$0xff]
    %v47 = vld [vmem:[#allocation5] sm:$0xff]
    %v48 = vld [vmem:[#allocation5 + $0x8] sm:$0xff]
    %v49 = vld [vmem:[#allocation5 + $0x10] sm:$0xff]
    %v50 = vld [vmem:[#allocation5 + $0x18] sm:$0xff]
    %v51 = vld [vmem:[#allocation5 + $0x20] sm:$0xff]
    %v52 = vld [vmem:[#allocation5 + $0x28] sm:$0xff]
    %v53 = vld [vmem:[#allocation5 + $0x30] sm:$0xff]
    %v54 = vld [vmem:[#allocation5 + $0x38] sm:$0xff]
    %v55 = vld [vmem:[#allocation5 + $0x40] sm:$0xff]
    %v56 = vld [vmem:[#allocation5 + $0x48] sm:$0xff]
    %v57 = vld [vmem:[#allocation5 + $0x50] sm:$0xff]
    %v58 = vld [vmem:[#allocation5 + $0x58] sm:$0xff]
    %v59 = vld [vmem:[#allocation5 + $0x60] sm:$0xff]
    %v60 = vld [vmem:[#allocation5 + $0x68] sm:$0xff]
    %v61 = vld [vmem:[#allocation5 + $0x70] sm:$0xff]
    %v62 = vld [vmem:[#allocation5 + $0x78] sm:$0xff]
    %v63 = vld [vmem:[#allocation5 + $0x80] sm:$0xff]
    %v64 = vld [vmem:[#allocation5 + $0x88] sm:$0xff]
    %v65 = vld [vmem:[#allocation5 + $0x90] sm:$0xff]
    %v66 = vld [vmem:[#allocation5 + $0x98] sm:$0xff]
    %v67 = vld [vmem:[#allocation5 + $0xa0] sm:$0xff]
    %v68 = vld [vmem:[#allocation5 + $0xa8] sm:$0xff]
    %v69 = vld [vmem:[#allocation5 + $0xb0] sm:$0xff]
    %v70 = vld [vmem:[#allocation5 + $0xb8] sm:$0xff]
    %v71 = vld [vmem:[#allocation5 + $0xc0] sm:$0xff]
    %v72 = vld [vmem:[#allocation5 + $0xc8] sm:$0xff]
    %v73 = vld [vmem:[#allocation5 + $0xd0] sm:$0xff]
    %v74 = vld [vmem:[#allocation5 + $0xd8] sm:$0xff]
    %v75 = vld [vmem:[#allocation5 + $0xe0] sm:$0xff]
    %v76 = vld [vmem:[#allocation5 + $0xe8] sm:$0xff]
    %v77 = vld [vmem:[#allocation5 + $0xf0] sm:$0xff]
    %v78 = vld [vmem:[#allocation5 + $0xf8] sm:$0xff]
    %v79 = vld [vmem:[#allocation5 + $0x100] sm:$0xff]
    %v80 = vld [vmem:[#allocation5 + $0x108] sm:$0xff]
    %v81 = vld [vmem:[#allocation5 + $0x110] sm:$0xff]
    %v82 = vld [vmem:[#allocation5 + $0x118] sm:$0xff]
    %v83 = vld [vmem:[#allocation5 + $0x120] sm:$0xff]
    %v84 = vld [vmem:[#allocation5 + $0x128] sm:$0xff]
    %v85 = vld [vmem:[#allocation5 + $0x130] sm:$0xff]
    %v86 = vld [vmem:[#allocation5 + $0x138] sm:$0xff]
    %v87 = vld [vmem:[#allocation5 + $0x140] sm:$0xff]
    %v88 = vld [vmem:[#allocation5 + $0x148] sm:$0xff]
    %v89 = vld [vmem:[#allocation5 + $0x150] sm:$0xff]
    %v90 = vld [vmem:[#allocation5 + $0x158] sm:$0xff]
    %v91 = vld [vmem:[#allocation5 + $0x160] sm:$0xff]
    %v92 = vld [vmem:[#allocation5 + $0x168] sm:$0xff]
    %v93 = vld [vmem:[#allocation5 + $0x170] sm:$0xff]
    %v94 = vld [vmem:[#allocation5 + $0x178] sm:$0xff]
    %v95 = vld [vmem:[#allocation5 + $0x180] sm:$0xff]
    %v96 = vld [vmem:[#allocation5 + $0x188] sm:$0xff]
    %v97 = vld [vmem:[#allocation5 + $0x190] sm:$0xff]
    %v98 = vld [vmem:[#allocation5 + $0x198] sm:$0xff]
    %v99 = vld [vmem:[#allocation5 + $0x1a0] sm:$0xff]
    %v100 = vld [vmem:[#allocation5 + $0x1a8] sm:$0xff]
    %v101 = vld [vmem:[#allocation5 + $0x1b0] sm:$0xff]
    %v102 = vld [vmem:[#allocation5 + $0x1b8] sm:$0xff]
    %v103 = vld [vmem:[#allocation5 + $0x1c0] sm:$0xff]
    %v104 = vld [vmem:[#allocation5 + $0x1c8] sm:$0xff]
    %v105 = vld [vmem:[#allocation5 + $0x1d0] sm:$0xff]
    %v106 = vld [vmem:[#allocation5 + $0x1d8] sm:$0xff]
    %v107 = vld [vmem:[#allocation5 + $0x1e0] sm:$0xff]
    %v108 = vld [vmem:[#allocation5 + $0x1e8] sm:$0xff]
    %v109 = vld [vmem:[#allocation5 + $0x1f0] sm:$0xff]
    %v110 = vld [vmem:[#allocation5 + $0x1f8] sm:$0xff]
    %v111 = vld [vmem:[#allocation5 + $0x200] sm:$0xff]
    %v112 = vld [vmem:[#allocation5 + $0x208] sm:$0xff]
    %v113 = vld [vmem:[#allocation5 + $0x210] sm:$0xff]
    %v114 = vld [vmem:[#allocation5 + $0x218] sm:$0xff]
    %v115 = vld [vmem:[#allocation5 + $0x220] sm:$0xff]
    %v116 = vld [vmem:[#allocation5 + $0x228] sm:$0xff]
    %v117 = vld [vmem:[#allocation5 + $0x230] sm:$0xff]
    %v118 = vld [vmem:[#allocation5 + $0x238] sm:$0xff]
    %v119 = vld [vmem:[#allocation5 + $0x240] sm:$0xff]
    %v120 = vld [vmem:[#allocation5 + $0x248] sm:$0xff]
    %v121 = vld [vmem:[#allocation5 + $0x250] sm:$0xff]
    %v122 = vld [vmem:[#allocation5 + $0x258] sm:$0xff]
    %v123 = vld [vmem:[#allocation5 + $0x260] sm:$0xff]
    %v124 = vld [vmem:[#allocation5 + $0x268] sm:$0xff]
    %v125 = vld [vmem:[#allocation5 + $0x270] sm:$0xff]
    %v126 = vld [vmem:[#allocation5 + $0x278] sm:$0xff]
    %v127 = vld [vmem:[#allocation5 + $0x280] sm:$0xff]
    %v128 = vld [vmem:[#allocation5 + $0x288] sm:$0xff]
    %v129 = vld [vmem:[#allocation5 + $0x290] sm:$0xff]
    %v130 = vld [vmem:[#allocation5 + $0x298] sm:$0xff]
    %v131 = vld [vmem:[#allocation5 + $0x2a0] sm:$0xff]
    %v132 = vld [vmem:[#allocation5 + $0x2a8] sm:$0xff]
    %v133 = vld [vmem:[#allocation5 + $0x2b0] sm:$0xff]
    %v134 = vld [vmem:[#allocation5 + $0x2b8] sm:$0xff]
    %v135 = vld [vmem:[#allocation5 + $0x2c0] sm:$0xff]
    %v136 = vld [vmem:[#allocation5 + $0x2c8] sm:$0xff]
    %v137 = vld [vmem:[#allocation5 + $0x2d0] sm:$0xff]
    %v138 = vld [vmem:[#allocation5 + $0x2d8] sm:$0xff]
    %v139 = vld [vmem:[#allocation5 + $0x2e0] sm:$0xff]
    %v140 = vld [vmem:[#allocation5 + $0x2e8] sm:$0xff]
    %v141 = vld [vmem:[#allocation5 + $0x2f0] sm:$0xff]
    %v142 = vld [vmem:[#allocation5 + $0x2f8] sm:$0xff]
    %v143 = vld [vmem:[#allocation5 + $0x300] sm:$0xff]
    %v144 = vld [vmem:[#allocation5 + $0x308] sm:$0xff]
    %v145 = vld [vmem:[#allocation5 + $0x310] sm:$0xff]
    %v146 = vld [vmem:[#allocation5 + $0x318] sm:$0xff]
    %v147 = vld [vmem:[#allocation5 + $0x320] sm:$0xff]
    %v148 = vld [vmem:[#allocation5 + $0x328] sm:$0xff]
    %v149 = vld [vmem:[#allocation5 + $0x330] sm:$0xff]
    %v150 = vld [vmem:[#allocation5 + $0x338] sm:$0xff]
    %v151 = vld [vmem:[#allocation5 + $0x340] sm:$0xff]
    %v152 = vld [vmem:[#allocation5 + $0x348] sm:$0xff]
    %v153 = vld [vmem:[#allocation5 + $0x350] sm:$0xff]
    %v154 = vld [vmem:[#allocation5 + $0x358] sm:$0xff]
    %v155 = vld [vmem:[#allocation5 + $0x360] sm:$0xff]
    %v156 = vld [vmem:[#allocation5 + $0x368] sm:$0xff]
    %v157 = vld [vmem:[#allocation5 + $0x370] sm:$0xff]
    %v158 = vld [vmem:[#allocation5 + $0x378] sm:$0xff]
    %v159 = vld [vmem:[#allocation5 + $0x380] sm:$0xff]
    %v160 = vld [vmem:[#allocation5 + $0x388] sm:$0xff]
    %v161 = vld [vmem:[#allocation5 + $0x390] sm:$0xff]
    %v162 = vld [vmem:[#allocation5 + $0x398] sm:$0xff]
    %v163 = vld [vmem:[#allocation5 + $0x3a0] sm:$0xff]
    %v164 = vld [vmem:[#allocation5 + $0x3a8] sm:$0xff]
    %v165 = vld [vmem:[#allocation5 + $0x3b0] sm:$0xff]
    %v166 = vld [vmem:[#allocation5 + $0x3b8] sm:$0xff]
    %v167 = vld [vmem:[#allocation5 + $0x3c0] sm:$0xff]
    %v168 = vld [vmem:[#allocation5 + $0x3c8] sm:$0xff]
    %v169 = vld [vmem:[#allocation5 + $0x3d0] sm:$0xff]
    %v170 = vld [vmem:[#allocation5 + $0x3d8] sm:$0xff]
    %v171 = vld [vmem:[#allocation5 + $0x3e0] sm:$0xff]
    %v172 = vld [vmem:[#allocation5 + $0x3e8] sm:$0xff]
    %v173 = vld [vmem:[#allocation5 + $0x3f0] sm:$0xff]
    %v174 = vld [vmem:[#allocation5 + $0x3f8] sm:$0xff]
    %v175 = vld [vmem:[#allocation5 + $0x400] sm:$0xff]
    %v176 = vld [vmem:[#allocation5 + $0x408] sm:$0xff]
    %v177 = vld [vmem:[#allocation5 + $0x410] sm:$0xff]
    %v178 = vld [vmem:[#allocation5 + $0x418] sm:$0xff]
    %v179 = vld [vmem:[#allocation5 + $0x420] sm:$0xff]
    %v180 = vld [vmem:[#allocation5 + $0x428] sm:$0xff]
    %v181 = vld [vmem:[#allocation5 + $0x430] sm:$0xff]
    %v182 = vld [vmem:[#allocation5 + $0x438] sm:$0xff]
    %v183 = vld [vmem:[#allocation5 + $0x440] sm:$0xff]
    %v184 = vld [vmem:[#allocation5 + $0x448] sm:$0xff]
    %v185 = vld [vmem:[#allocation5 + $0x450] sm:$0xff]
    %v186 = vld [vmem:[#allocation5 + $0x458] sm:$0xff]
    %v187 = vld [vmem:[#allocation5 + $0x460] sm:$0xff]
    %v188 = vld [vmem:[#allocation5 + $0x468] sm:$0xff]
    %v189 = vld [vmem:[#allocation5 + $0x470] sm:$0xff]
    %v190 = vld [vmem:[#allocation5 + $0x478] sm:$0xff]
    %v191 = vld [vmem:[#allocation5 + $0x480] sm:$0xff]
    %v192 = vld [vmem:[#allocation5 + $0x488] sm:$0xff]
    %v193 = vld [vmem:[#allocation5 + $0x490] sm:$0xff]
    %v194 = vld [vmem:[#allocation5 + $0x498] sm:$0xff]
    %v195 = vld [vmem:[#allocation5 + $0x4a0] sm:$0xff]
    %v196 = vld [vmem:[#allocation5 + $0x4a8] sm:$0xff]
    %v197 = vld [vmem:[#allocation5 + $0x4b0] sm:$0xff]
    %v198 = vld [vmem:[#allocation5 + $0x4b8] sm:$0xff]
    %v199 = vld [vmem:[#allocation5 + $0x4c0] sm:$0xff]
    %v200 = vld [vmem:[#allocation5 + $0x4c8] sm:$0xff]
    %v201 = vld [vmem:[#allocation5 + $0x4d0] sm:$0xff]
    %v202 = vld [vmem:[#allocation5 + $0x4d8] sm:$0xff]
    %v203 = vld [vmem:[#allocation5 + $0x4e0] sm:$0xff]
    %v204 = vld [vmem:[#allocation5 + $0x4e8] sm:$0xff]
    %v205 = vld [vmem:[#allocation5 + $0x4f0] sm:$0xff]
    %v206 = vld [vmem:[#allocation5 + $0x4f8] sm:$0xff]
    %v207 = vld [vmem:[#allocation5 + $0x500] sm:$0xff]
    %v208 = vld [vmem:[#allocation5 + $0x508] sm:$0xff]
    %v209 = vld [vmem:[#allocation5 + $0x510] sm:$0xff]
    %v210 = vld [vmem:[#allocation5 + $0x518] sm:$0xff]
    %v211 = vld [vmem:[#allocation5 + $0x520] sm:$0xff]
    %v212 = vld [vmem:[#allocation5 + $0x528] sm:$0xff]
    %v213 = vld [vmem:[#allocation5 + $0x530] sm:$0xff]
    %v214 = vld [vmem:[#allocation5 + $0x538] sm:$0xff]
    %v215 = vld [vmem:[#allocation5 + $0x540] sm:$0xff]
    %v216 = vld [vmem:[#allocation5 + $0x548] sm:$0xff]
    %v217 = vld [vmem:[#allocation5 + $0x550] sm:$0xff]
    %v218 = vld [vmem:[#allocation5 + $0x558] sm:$0xff]
    %v219 = vld [vmem:[#allocation5 + $0x560] sm:$0xff]
    %v220 = vld [vmem:[#allocation5 + $0x568] sm:$0xff]
    %v221 = vld [vmem:[#allocation5 + $0x570] sm:$0xff]
    %v222 = vld [vmem:[#allocation5 + $0x578] sm:$0xff]
    %v223 = vld [vmem:[#allocation5 + $0x580] sm:$0xff]
    %v224 = vld [vmem:[#allocation5 + $0x588] sm:$0xff]
    %v225 = vld [vmem:[#allocation5 + $0x590] sm:$0xff]
    %v226 = vld [vmem:[#allocation5 + $0x598] sm:$0xff]
    %v227 = vld [vmem:[#allocation5 + $0x5a0] sm:$0xff]
    %v228 = vld [vmem:[#allocation5 + $0x5a8] sm:$0xff]
    %v229 = vld [vmem:[#allocation5 + $0x5b0] sm:$0xff]
    %v230 = vld [vmem:[#allocation5 + $0x5b8] sm:$0xff]
    %v231 = vld [vmem:[#allocation5 + $0x5c0] sm:$0xff]
    %v232 = vld [vmem:[#allocation5 + $0x5c8] sm:$0xff]
    %v233 = vld [vmem:[#allocation5 + $0x5d0] sm:$0xff]
    %v234 = vld [vmem:[#allocation5 + $0x5d8] sm:$0xff]
    %v235 = vld [vmem:[#allocation5 + $0x5e0] sm:$0xff]
    %v236 = vld [vmem:[#allocation5 + $0x5e8] sm:$0xff]
    %v237 = vld [vmem:[#allocation5 + $0x5f0] sm:$0xff]
    %v238 = vld [vmem:[#allocation5 + $0x5f8] sm:$0xff]
    %v239 = vld [vmem:[%s2] sm:$0x3f]
    %v241 = vlaneseq
    %v242 = vshrl.u32 %v241, 7
    %v243 = vsub.s32 0, %v242
    %v244 = vrot.slane %v239, %v243
    %v245 = vlaneseq
    %v246 = vshrl.u32 %v245, 7
    %v247 = vsub.s32 1, %v246
    %v248 = vrot.slane %v239, %v247
    %v249 = vlaneseq
    %v250 = vshrl.u32 %v249, 7
    %v251 = vsub.s32 2, %v250
    %v252 = vrot.slane %v239, %v251
    %v253 = vlaneseq
    %v254 = vshrl.u32 %v253, 7
    %v255 = vsub.s32 3, %v254
    %v256 = vrot.slane %v239, %v255
    %v257 = vlaneseq
    %v258 = vshrl.u32 %v257, 7
    %v259 = vsub.s32 4, %v258
    %v260 = vrot.slane %v239, %v259
    %v261 = vlaneseq
    %v262 = vshrl.u32 %v261, 7
    %v263 = vsub.s32 5, %v262
    %v264 = vrot.slane %v239, %v263
    %v271 = vand.u32 %v48, 4294901760
    %272 = vmatprep.subr.mxu0 %v271
    %v273 = vand.u32 %v47, 4294901760
    %274 = vmatpush1.msra.mxu0 %v273
    %v275 = vand.u32 %v54, 4294901760
    %276 = vmatprep.subr.mxu0 %v275
    %v277 = vand.u32 %v53, 4294901760
    %278 = vmatpush1.msra.mxu0 %v277
    %v279 = vand.u32 %v60, 4294901760
    %280 = vmatprep.subr.mxu0 %v279
    %v281 = vand.u32 %v59, 4294901760
    %282 = vmatpush1.msra.mxu0 %v281
    %v283 = vand.u32 %v66, 4294901760
    %284 = vmatprep.subr.mxu0 %v283
    %v285 = vand.u32 %v65, 4294901760
    %286 = vmatpush1.msra.mxu0 %v285
    %v287 = vand.u32 %v72, 4294901760
    %288 = vmatprep.subr.mxu0 %v287
    %v289 = vand.u32 %v71, 4294901760
    %290 = vmatpush1.msra.mxu0 %v289
    %v291 = vand.u32 %v78, 4294901760
    %292 = vmatprep.subr.mxu0 %v291
    %v293 = vand.u32 %v77, 4294901760
    %294 = vmatpush1.msra.mxu0 %v293
    %v295 = vand.u32 %v84, 4294901760
    %296 = vmatprep.subr.mxu0 %v295
    %v297 = vand.u32 %v83, 4294901760
    %298 = vmatpush1.msra.mxu0 %v297
    %v299 = vand.u32 %v90, 4294901760
    %300 = vmatprep.subr.mxu0 %v299
    %v301 = vand.u32 %v89, 4294901760
    %302 = vmatpush1.msra.mxu0 %v301
    %v303 = vand.u32 %v96, 4294901760
    %304 = vmatprep.subr.mxu0 %v303
    %v305 = vand.u32 %v95, 4294901760
    %306 = vmatpush1.msra.mxu0 %v305
    %v307 = vand.u32 %v102, 4294901760
    %308 = vmatprep.subr.mxu0 %v307
    %v309 = vand.u32 %v101, 4294901760
    %310 = vmatpush1.msra.mxu0 %v309
    %v311 = vand.u32 %v108, 4294901760
    %312 = vmatprep.subr.mxu0 %v311
    %v313 = vand.u32 %v107, 4294901760
    %314 = vmatpush1.msra.mxu0 %v313
    %v315 = vand.u32 %v114, 4294901760
    %316 = vmatprep.subr.mxu0 %v315
    %v317 = vand.u32 %v113, 4294901760
    %318 = vmatpush1.msra.mxu0 %v317
    %v319 = vand.u32 %v120, 4294901760
    %320 = vmatprep.subr.mxu0 %v319
    %v321 = vand.u32 %v119, 4294901760
    %322 = vmatpush1.msra.mxu0 %v321
    %v323 = vand.u32 %v126, 4294901760
    %324 = vmatprep.subr.mxu0 %v323
    %v325 = vand.u32 %v125, 4294901760
    %326 = vmatpush1.msra.mxu0 %v325
    %v327 = vand.u32 %v132, 4294901760
    %328 = vmatprep.subr.mxu0 %v327
    %v329 = vand.u32 %v131, 4294901760
    %330 = vmatpush1.msra.mxu0 %v329
    %v331 = vand.u32 %v138, 4294901760
    %332 = vmatprep.subr.mxu0 %v331
    %v333 = vand.u32 %v137, 4294901760
    %334 = vmatpush1.msra.mxu0 %v333
    %v335 = vand.u32 %v144, 4294901760
    %336 = vmatprep.subr.mxu0 %v335
    %v337 = vand.u32 %v143, 4294901760
    %338 = vmatpush1.msra.mxu0 %v337
    %v339 = vand.u32 %v150, 4294901760
    %340 = vmatprep.subr.mxu0 %v339
    %v341 = vand.u32 %v149, 4294901760
    %342 = vmatpush1.msra.mxu0 %v341
    %v343 = vand.u32 %v156, 4294901760
    %344 = vmatprep.subr.mxu0 %v343
    %v345 = vand.u32 %v155, 4294901760
    %346 = vmatpush1.msra.mxu0 %v345
    %v347 = vand.u32 %v162, 4294901760
    %348 = vmatprep.subr.mxu0 %v347
    %v349 = vand.u32 %v161, 4294901760
    %350 = vmatpush1.msra.mxu0 %v349
    %v351 = vand.u32 %v168, 4294901760
    %352 = vmatprep.subr.mxu0 %v351
    %v353 = vand.u32 %v167, 4294901760
    %354 = vmatpush1.msra.mxu0 %v353
    %v355 = vand.u32 %v174, 4294901760
    %356 = vmatprep.subr.mxu0 %v355
    %v357 = vand.u32 %v173, 4294901760
    %358 = vmatpush1.msra.mxu0 %v357
    %v359 = vand.u32 %v180, 4294901760
    %360 = vmatprep.subr.mxu0 %v359
    %v361 = vand.u32 %v179, 4294901760
    %362 = vmatpush1.msra.mxu0 %v361
    %v363 = vand.u32 %v186, 4294901760
    %364 = vmatprep.subr.mxu0 %v363
    %v365 = vand.u32 %v185, 4294901760
    %366 = vmatpush1.msra.mxu0 %v365
    %v367 = vand.u32 %v192, 4294901760
    %368 = vmatprep.subr.mxu0 %v367
    %v369 = vand.u32 %v191, 4294901760
    %370 = vmatpush1.msra.mxu0 %v369
    %v371 = vand.u32 %v198, 4294901760
    %372 = vmatprep.subr.mxu0 %v371
    %v373 = vand.u32 %v197, 4294901760
    %374 = vmatpush1.msra.mxu0 %v373
    %v375 = vand.u32 %v204, 4294901760
    %376 = vmatprep.subr.mxu0 %v375
    %v377 = vand.u32 %v203, 4294901760
    %378 = vmatpush1.msra.mxu0 %v377
    %v379 = vand.u32 %v210, 4294901760
    %380 = vmatprep.subr.mxu0 %v379
    %v381 = vand.u32 %v209, 4294901760
    %382 = vmatpush1.msra.mxu0 %v381
    %v383 = vand.u32 %v216, 4294901760
    %384 = vmatprep.subr.mxu0 %v383
    %v385 = vand.u32 %v215, 4294901760
    %386 = vmatpush1.msra.mxu0 %v385
    %v387 = vand.u32 %v222, 4294901760
    %388 = vmatprep.subr.mxu0 %v387
    %v389 = vand.u32 %v221, 4294901760
    %390 = vmatpush1.msra.mxu0 %v389
    %v391 = vand.u32 %v228, 4294901760
    %392 = vmatprep.subr.mxu0 %v391
    %v393 = vand.u32 %v227, 4294901760
    %394 = vmatpush1.msra.mxu0 %v393
    %v395 = vand.u32 %v234, 4294901760
    %396 = vmatprep.subr.mxu0 %v395
    %v397 = vand.u32 %v233, 4294901760
    %398 = vmatpush1.msra.mxu0 %v397
    %v399 = vand.u32 %v44, 4294901760
    %v400 = vsub.f32 %v44, %v399
    %v401 = vand.u32 %v400, 4294901760
    %v402 = vsub.f32 %v400, %v401
    %v403 = vand.u32 %v402, 4294901760
    %404 = vmatprep.mubr.f32.mxu0 %v403
    %v405 = vand.u32 %v43, 4294901760
    %v406 = vsub.f32 %v43, %v405
    %v407 = vand.u32 %v406, 4294901760
    %v408 = vsub.f32 %v406, %v407
    %v409 = vand.u32 %v408, 4294901760
    %410 = vmatmul.mubr.f32.gmra.mrb[0].mxu0 %v409
    %v411 = vpop.f32.mrb[0].mxu0
    %v412 = vadd.f32 %v244, %v411
    %v413 = vpop.f32.mrb[0].mxu0
    %v414 = vadd.f32 %v248, %v413
    %v415 = vand.u32 %v46, 4294901760
    %v416 = vsub.f32 %v46, %v415
    %v417 = vand.u32 %v416, 4294901760
    %v418 = vsub.f32 %v416, %v417
    %v419 = vand.u32 %v418, 4294901760
    %420 = vmatprep.mubr.f32.mxu0 %v419
    %v421 = vand.u32 %v45, 4294901760
    %v422 = vsub.f32 %v45, %v421
    %v423 = vand.u32 %v422, 4294901760
    %v424 = vsub.f32 %v422, %v423
    %v425 = vand.u32 %v424, 4294901760
    %426 = vmatmul.mubr.f32.gmra.mrb[0].mxu0 %v425
    %v427 = vpop.f32.mrb[0].mxu0
    %v428 = vadd.f32 %v244, %v427
    %v429 = vpop.f32.mrb[0].mxu0
    %v430 = vadd.f32 %v248, %v429
    %431 = vdwg.mxu0
    %v432 = vand.u32 %v48, 4294901760
    %v433 = vsub.f32 %v48, %v432
    %v434 = vand.u32 %v433, 4294901760
    %v435 = vsub.f32 %v433, %v434
    %v436 = vand.u32 %v435, 4294901760
    %437 = vmatprep.subr.mxu0 %v436
    %v438 = vand.u32 %v47, 4294901760
    %v439 = vsub.f32 %v47, %v438
    %v440 = vand.u32 %v439, 4294901760
    %v441 = vsub.f32 %v439, %v440
    %v442 = vand.u32 %v441, 4294901760
    %443 = vmatpush1.msra.mxu0 %v442
    %v444 = vand.u32 %v54, 4294901760
    %v445 = vsub.f32 %v54, %v444
    %v446 = vand.u32 %v445, 4294901760
    %v447 = vsub.f32 %v445, %v446
    %v448 = vand.u32 %v447, 4294901760
    %449 = vmatprep.subr.mxu0 %v448
    %v450 = vand.u32 %v53, 4294901760
    %v451 = vsub.f32 %v53, %v450
    %v452 = vand.u32 %v451, 4294901760
    %v453 = vsub.f32 %v451, %v452
    %v454 = vand.u32 %v453, 4294901760
    %455 = vmatpush1.msra.mxu0 %v454
    %v456 = vand.u32 %v60, 4294901760
    %v457 = vsub.f32 %v60, %v456
    %v458 = vand.u32 %v457, 4294901760
    %v459 = vsub.f32 %v457, %v458
    %v460 = vand.u32 %v459, 4294901760
    %461 = vmatprep.subr.mxu0 %v460
    %v462 = vand.u32 %v59, 4294901760
    %v463 = vsub.f32 %v59, %v462
    %v464 = vand.u32 %v463, 4294901760
    %v465 = vsub.f32 %v463, %v464
    %v466 = vand.u32 %v465, 4294901760
    %467 = vmatpush1.msra.mxu0 %v466
    %v468 = vand.u32 %v66, 4294901760
    %v469 = vsub.f32 %v66, %v468
    %v470 = vand.u32 %v469, 4294901760
    %v471 = vsub.f32 %v469, %v470
    %v472 = vand.u32 %v471, 4294901760
    %473 = vmatprep.subr.mxu0 %v472
    %v474 = vand.u32 %v65, 4294901760
    %v475 = vsub.f32 %v65, %v474
    %v476 = vand.u32 %v475, 4294901760
    %v477 = vsub.f32 %v475, %v476
    %v478 = vand.u32 %v477, 4294901760
    %479 = vmatpush1.msra.mxu0 %v478
    %v480 = vand.u32 %v72, 4294901760
    %v481 = vsub.f32 %v72, %v480
    %v482 = vand.u32 %v481, 4294901760
    %v483 = vsub.f32 %v481, %v482
    %v484 = vand.u32 %v483, 4294901760
    %485 = vmatprep.subr.mxu0 %v484
    %v486 = vand.u32 %v71, 4294901760
    %v487 = vsub.f32 %v71, %v486
    %v488 = vand.u32 %v487, 4294901760
    %v489 = vsub.f32 %v487, %v488
    %v490 = vand.u32 %v489, 4294901760
    %491 = vmatpush1.msra.mxu0 %v490
    %v492 = vand.u32 %v78, 4294901760
    %v493 = vsub.f32 %v78, %v492
    %v494 = vand.u32 %v493, 4294901760
    %v495 = vsub.f32 %v493, %v494
    %v496 = vand.u32 %v495, 4294901760
    %497 = vmatprep.subr.mxu0 %v496
    %v498 = vand.u32 %v77, 4294901760
    %v499 = vsub.f32 %v77, %v498
    %v500 = vand.u32 %v499, 4294901760
    %v501 = vsub.f32 %v499, %v500
    %v502 = vand.u32 %v501, 4294901760
    %503 = vmatpush1.msra.mxu0 %v502
    %v504 = vand.u32 %v84, 4294901760
    %v505 = vsub.f32 %v84, %v504
    %v506 = vand.u32 %v505, 4294901760
    %v507 = vsub.f32 %v505, %v506
    %v508 = vand.u32 %v507, 4294901760
    %509 = vmatprep.subr.mxu0 %v508
    %v510 = vand.u32 %v83, 4294901760
    %v511 = vsub.f32 %v83, %v510
    %v512 = vand.u32 %v511, 4294901760
    %v513 = vsub.f32 %v511, %v512
    %v514 = vand.u32 %v513, 4294901760
    %515 = vmatpush1.msra.mxu0 %v514
    %v516 = vand.u32 %v90, 4294901760
    %v517 = vsub.f32 %v90, %v516
    %v518 = vand.u32 %v517, 4294901760
    %v519 = vsub.f32 %v517, %v518
    %v520 = vand.u32 %v519, 4294901760
    %521 = vmatprep.subr.mxu0 %v520
    %v522 = vand.u32 %v89, 4294901760
    %v523 = vsub.f32 %v89, %v522
    %v524 = vand.u32 %v523, 4294901760
    %v525 = vsub.f32 %v523, %v524
    %v526 = vand.u32 %v525, 4294901760
    %527 = vmatpush1.msra.mxu0 %v526
    %v528 = vand.u32 %v96, 4294901760
    %v529 = vsub.f32 %v96, %v528
    %v530 = vand.u32 %v529, 4294901760
    %v531 = vsub.f32 %v529, %v530
    %v532 = vand.u32 %v531, 4294901760
    %533 = vmatprep.subr.mxu0 %v532
    %v534 = vand.u32 %v95, 4294901760
    %v535 = vsub.f32 %v95, %v534
    %v536 = vand.u32 %v535, 4294901760
    %v537 = vsub.f32 %v535, %v536
    %v538 = vand.u32 %v537, 4294901760
    %539 = vmatpush1.msra.mxu0 %v538
    %v540 = vand.u32 %v102, 4294901760
    %v541 = vsub.f32 %v102, %v540
    %v542 = vand.u32 %v541, 4294901760
    %v543 = vsub.f32 %v541, %v542
    %v544 = vand.u32 %v543, 4294901760
    %545 = vmatprep.subr.mxu0 %v544
    %v546 = vand.u32 %v101, 4294901760
    %v547 = vsub.f32 %v101, %v546
    %v548 = vand.u32 %v547, 4294901760
    %v549 = vsub.f32 %v547, %v548
    %v550 = vand.u32 %v549, 4294901760
    %551 = vmatpush1.msra.mxu0 %v550
    %v552 = vand.u32 %v108, 4294901760
    %v553 = vsub.f32 %v108, %v552
    %v554 = vand.u32 %v553, 4294901760
    %v555 = vsub.f32 %v553, %v554
    %v556 = vand.u32 %v555, 4294901760
    %557 = vmatprep.subr.mxu0 %v556
    %v558 = vand.u32 %v107, 4294901760
    %v559 = vsub.f32 %v107, %v558
    %v560 = vand.u32 %v559, 4294901760
    %v561 = vsub.f32 %v559, %v560
    %v562 = vand.u32 %v561, 4294901760
    %563 = vmatpush1.msra.mxu0 %v562
    %v564 = vand.u32 %v114, 4294901760
    %v565 = vsub.f32 %v114, %v564
    %v566 = vand.u32 %v565, 4294901760
    %v567 = vsub.f32 %v565, %v566
    %v568 = vand.u32 %v567, 4294901760
    %569 = vmatprep.subr.mxu0 %v568
    %v570 = vand.u32 %v113, 4294901760
    %v571 = vsub.f32 %v113, %v570
    %v572 = vand.u32 %v571, 4294901760
    %v573 = vsub.f32 %v571, %v572
    %v574 = vand.u32 %v573, 4294901760
    %575 = vmatpush1.msra.mxu0 %v574
    %v576 = vand.u32 %v120, 4294901760
    %v577 = vsub.f32 %v120, %v576
    %v578 = vand.u32 %v577, 4294901760
    %v579 = vsub.f32 %v577, %v578
    %v580 = vand.u32 %v579, 4294901760
    %581 = vmatprep.subr.mxu0 %v580
    %v582 = vand.u32 %v119, 4294901760
    %v583 = vsub.f32 %v119, %v582
    %v584 = vand.u32 %v583, 4294901760
    %v585 = vsub.f32 %v583, %v584
    %v586 = vand.u32 %v585, 4294901760
    %587 = vmatpush1.msra.mxu0 %v586
    %v588 = vand.u32 %v126, 4294901760
    %v589 = vsub.f32 %v126, %v588
    %v590 = vand.u32 %v589, 4294901760
    %v591 = vsub.f32 %v589, %v590
    %v592 = vand.u32 %v591, 4294901760
    %593 = vmatprep.subr.mxu0 %v592
    %v594 = vand.u32 %v125, 4294901760
    %v595 = vsub.f32 %v125, %v594
    %v596 = vand.u32 %v595, 4294901760
    %v597 = vsub.f32 %v595, %v596
    %v598 = vand.u32 %v597, 4294901760
    %599 = vmatpush1.msra.mxu0 %v598
    %v600 = vand.u32 %v132, 4294901760
    %v601 = vsub.f32 %v132, %v600
    %v602 = vand.u32 %v601, 4294901760
    %v603 = vsub.f32 %v601, %v602
    %v604 = vand.u32 %v603, 4294901760
    %605 = vmatprep.subr.mxu0 %v604
    %v606 = vand.u32 %v131, 4294901760
    %v607 = vsub.f32 %v131, %v606
    %v608 = vand.u32 %v607, 4294901760
    %v609 = vsub.f32 %v607, %v608
    %v610 = vand.u32 %v609, 4294901760
    %611 = vmatpush1.msra.mxu0 %v610
    %v612 = vand.u32 %v138, 4294901760
    %v613 = vsub.f32 %v138, %v612
    %v614 = vand.u32 %v613, 4294901760
    %v615 = vsub.f32 %v613, %v614
    %v616 = vand.u32 %v615, 4294901760
    %617 = vmatprep.subr.mxu0 %v616
    %v618 = vand.u32 %v137, 4294901760
    %v619 = vsub.f32 %v137, %v618
    %v620 = vand.u32 %v619, 4294901760
    %v621 = vsub.f32 %v619, %v620
    %v622 = vand.u32 %v621, 4294901760
    %623 = vmatpush1.msra.mxu0 %v622
    %v624 = vand.u32 %v144, 4294901760
    %v625 = vsub.f32 %v144, %v624
    %v626 = vand.u32 %v625, 4294901760
    %v627 = vsub.f32 %v625, %v626
    %v628 = vand.u32 %v627, 4294901760
    %629 = vmatprep.subr.mxu0 %v628
    %v630 = vand.u32 %v143, 4294901760
    %v631 = vsub.f32 %v143, %v630
    %v632 = vand.u32 %v631, 4294901760
    %v633 = vsub.f32 %v631, %v632
    %v634 = vand.u32 %v633, 4294901760
    %635 = vmatpush1.msra.mxu0 %v634
    %v636 = vand.u32 %v150, 4294901760
    %v637 = vsub.f32 %v150, %v636
    %v638 = vand.u32 %v637, 4294901760
    %v639 = vsub.f32 %v637, %v638
    %v640 = vand.u32 %v639, 4294901760
    %641 = vmatprep.subr.mxu0 %v640
    %v642 = vand.u32 %v149, 4294901760
    %v643 = vsub.f32 %v149, %v642
    %v644 = vand.u32 %v643, 4294901760
    %v645 = vsub.f32 %v643, %v644
    %v646 = vand.u32 %v645, 4294901760
    %647 = vmatpush1.msra.mxu0 %v646
    %v648 = vand.u32 %v156, 4294901760
    %v649 = vsub.f32 %v156, %v648
    %v650 = vand.u32 %v649, 4294901760
    %v651 = vsub.f32 %v649, %v650
    %v652 = vand.u32 %v651, 4294901760
    %653 = vmatprep.subr.mxu0 %v652
    %v654 = vand.u32 %v155, 4294901760
    %v655 = vsub.f32 %v155, %v654
    %v656 = vand.u32 %v655, 4294901760
    %v657 = vsub.f32 %v655, %v656
    %v658 = vand.u32 %v657, 4294901760
    %659 = vmatpush1.msra.mxu0 %v658
    %v660 = vand.u32 %v162, 4294901760
    %v661 = vsub.f32 %v162, %v660
    %v662 = vand.u32 %v661, 4294901760
    %v663 = vsub.f32 %v661, %v662
    %v664 = vand.u32 %v663, 4294901760
    %665 = vmatprep.subr.mxu0 %v664
    %v666 = vand.u32 %v161, 4294901760
    %v667 = vsub.f32 %v161, %v666
    %v668 = vand.u32 %v667, 4294901760
    %v669 = vsub.f32 %v667, %v668
    %v670 = vand.u32 %v669, 4294901760
    %671 = vmatpush1.msra.mxu0 %v670
    %v672 = vand.u32 %v168, 4294901760
    %v673 = vsub.f32 %v168, %v672
    %v674 = vand.u32 %v673, 4294901760
    %v675 = vsub.f32 %v673, %v674
    %v676 = vand.u32 %v675, 4294901760
    %677 = vmatprep.subr.mxu0 %v676
    %v678 = vand.u32 %v167, 4294901760
    %v679 = vsub.f32 %v167, %v678
    %v680 = vand.u32 %v679, 4294901760
    %v681 = vsub.f32 %v679, %v680
    %v682 = vand.u32 %v681, 4294901760
    %683 = vmatpush1.msra.mxu0 %v682
    %v684 = vand.u32 %v174, 4294901760
    %v685 = vsub.f32 %v174, %v684
    %v686 = vand.u32 %v685, 4294901760
    %v687 = vsub.f32 %v685, %v686
    %v688 = vand.u32 %v687, 4294901760
    %689 = vmatprep.subr.mxu0 %v688
    %v690 = vand.u32 %v173, 4294901760
    %v691 = vsub.f32 %v173, %v690
    %v692 = vand.u32 %v691, 4294901760
    %v693 = vsub.f32 %v691, %v692
    %v694 = vand.u32 %v693, 4294901760
    %695 = vmatpush1.msra.mxu0 %v694
    %v696 = vand.u32 %v180, 4294901760
    %v697 = vsub.f32 %v180, %v696
    %v698 = vand.u32 %v697, 4294901760
    %v699 = vsub.f32 %v697, %v698
    %v700 = vand.u32 %v699, 4294901760
    %701 = vmatprep.subr.mxu0 %v700
    %v702 = vand.u32 %v179, 4294901760
    %v703 = vsub.f32 %v179, %v702
    %v704 = vand.u32 %v703, 4294901760
    %v705 = vsub.f32 %v703, %v704
    %v706 = vand.u32 %v705, 4294901760
    %707 = vmatpush1.msra.mxu0 %v706
    %v708 = vand.u32 %v186, 4294901760
    %v709 = vsub.f32 %v186, %v708
    %v710 = vand.u32 %v709, 4294901760
    %v711 = vsub.f32 %v709, %v710
    %v712 = vand.u32 %v711, 4294901760
    %713 = vmatprep.subr.mxu0 %v712
    %v714 = vand.u32 %v185, 4294901760
    %v715 = vsub.f32 %v185, %v714
    %v716 = vand.u32 %v715, 4294901760
    %v717 = vsub.f32 %v715, %v716
    %v718 = vand.u32 %v717, 4294901760
    %719 = vmatpush1.msra.mxu0 %v718
    %v720 = vand.u32 %v192, 4294901760
    %v721 = vsub.f32 %v192, %v720
    %v722 = vand.u32 %v721, 4294901760
    %v723 = vsub.f32 %v721, %v722
    %v724 = vand.u32 %v723, 4294901760
    %725 = vmatprep.subr.mxu0 %v724
    %v726 = vand.u32 %v191, 4294901760
    %v727 = vsub.f32 %v191, %v726
    %v728 = vand.u32 %v727, 4294901760
    %v729 = vsub.f32 %v727, %v728
    %v730 = vand.u32 %v729, 4294901760
    %731 = vmatpush1.msra.mxu0 %v730
    %v732 = vand.u32 %v198, 4294901760
    %v733 = vsub.f32 %v198, %v732
    %v734 = vand.u32 %v733, 4294901760
    %v735 = vsub.f32 %v733, %v734
    %v736 = vand.u32 %v735, 4294901760
    %737 = vmatprep.subr.mxu0 %v736
    %v738 = vand.u32 %v197, 4294901760
    %v739 = vsub.f32 %v197, %v738
    %v740 = vand.u32 %v739, 4294901760
    %v741 = vsub.f32 %v739, %v740
    %v742 = vand.u32 %v741, 4294901760
    %743 = vmatpush1.msra.mxu0 %v742
    %v744 = vand.u32 %v204, 4294901760
    %v745 = vsub.f32 %v204, %v744
    %v746 = vand.u32 %v745, 4294901760
    %v747 = vsub.f32 %v745, %v746
    %v748 = vand.u32 %v747, 4294901760
    %749 = vmatprep.subr.mxu0 %v748
    %v750 = vand.u32 %v203, 4294901760
    %v751 = vsub.f32 %v203, %v750
    %v752 = vand.u32 %v751, 4294901760
    %v753 = vsub.f32 %v751, %v752
    %v754 = vand.u32 %v753, 4294901760
    %755 = vmatpush1.msra.mxu0 %v754
    %v756 = vand.u32 %v210, 4294901760
    %v757 = vsub.f32 %v210, %v756
    %v758 = vand.u32 %v757, 4294901760
    %v759 = vsub.f32 %v757, %v758
    %v760 = vand.u32 %v759, 4294901760
    %761 = vmatprep.subr.mxu0 %v760
    %v762 = vand.u32 %v209, 4294901760
    %v763 = vsub.f32 %v209, %v762
    %v764 = vand.u32 %v763, 4294901760
    %v765 = vsub.f32 %v763, %v764
    %v766 = vand.u32 %v765, 4294901760
    %767 = vmatpush1.msra.mxu0 %v766
    %v768 = vand.u32 %v216, 4294901760
    %v769 = vsub.f32 %v216, %v768
    %v770 = vand.u32 %v769, 4294901760
    %v771 = vsub.f32 %v769, %v770
    %v772 = vand.u32 %v771, 4294901760
    %773 = vmatprep.subr.mxu0 %v772
    %v774 = vand.u32 %v215, 4294901760
    %v775 = vsub.f32 %v215, %v774
    %v776 = vand.u32 %v775, 4294901760
    %v777 = vsub.f32 %v775, %v776
    %v778 = vand.u32 %v777, 4294901760
    %779 = vmatpush1.msra.mxu0 %v778
    %v780 = vand.u32 %v222, 4294901760
    %v781 = vsub.f32 %v222, %v780
    %v782 = vand.u32 %v781, 4294901760
    %v783 = vsub.f32 %v781, %v782
    %v784 = vand.u32 %v783, 4294901760
    %785 = vmatprep.subr.mxu0 %v784
    %v786 = vand.u32 %v221, 4294901760
    %v787 = vsub.f32 %v221, %v786
    %v788 = vand.u32 %v787, 4294901760
    %v789 = vsub.f32 %v787, %v788
    %v790 = vand.u32 %v789, 4294901760
    %791 = vmatpush1.msra.mxu0 %v790
    %v792 = vand.u32 %v228, 4294901760
    %v793 = vsub.f32 %v228, %v792
    %v794 = vand.u32 %v793, 4294901760
    %v795 = vsub.f32 %v793, %v794
    %v796 = vand.u32 %v795, 4294901760
    %797 = vmatprep.subr.mxu0 %v796
    %v798 = vand.u32 %v227, 4294901760
    %v799 = vsub.f32 %v227, %v798
    %v800 = vand.u32 %v799, 4294901760
    %v801 = vsub.f32 %v799, %v800
    %v802 = vand.u32 %v801, 4294901760
    %803 = vmatpush1.msra.mxu0 %v802
    %v804 = vand.u32 %v234, 4294901760
    %v805 = vsub.f32 %v234, %v804
    %v806 = vand.u32 %v805, 4294901760
    %v807 = vsub.f32 %v805, %v806
    %v808 = vand.u32 %v807, 4294901760
    %809 = vmatprep.subr.mxu0 %v808
    %v810 = vand.u32 %v233, 4294901760
    %v811 = vsub.f32 %v233, %v810
    %v812 = vand.u32 %v811, 4294901760
    %v813 = vsub.f32 %v811, %v812
    %v814 = vand.u32 %v813, 4294901760
    %815 = vmatpush1.msra.mxu0 %v814
    %v816 = vand.u32 %v44, 4294901760
    %817 = vmatprep.mubr.f32.mxu0 %v816
    %v818 = vand.u32 %v43, 4294901760
    %819 = vmatmul.mubr.f32.gmra.mrb[0].mxu0 %v818
    %v820 = vpop.f32.mrb[0].mxu0
    %v821 = vadd.f32 %v412, %v820
    %v822 = vpop.f32.mrb[0].mxu0
    %v823 = vadd.f32 %v414, %v822
    %v824 = vand.u32 %v46, 4294901760
    %825 = vmatprep.mubr.f32.mxu0 %v824
    %v826 = vand.u32 %v45, 4294901760
    %827 = vmatmul.mubr.f32.gmra.mrb[0].mxu0 %v826
    %v828 = vpop.f32.mrb[0].mxu0
    %v829 = vadd.f32 %v428, %v828
    %v830 = vpop.f32.mrb[0].mxu0
    %v831 = vadd.f32 %v430, %v830
    %832 = vdwg.mxu0
    %v833 = vand.u32 %v48, 4294901760
    %v834 = vsub.f32 %v48, %v833
    %835 = vmatprep.subr.mxu0 %v834
    %v836 = vand.u32 %v47, 4294901760
    %v837 = vsub.f32 %v47, %v836
    %838 = vmatpush1.msra.mxu0 %v837
    %v839 = vand.u32 %v54, 4294901760
    %v840 = vsub.f32 %v54, %v839
    %841 = vmatprep.subr.mxu0 %v840
    %v842 = vand.u32 %v53, 4294901760
    %v843 = vsub.f32 %v53, %v842
    %844 = vmatpush1.msra.mxu0 %v843
    %v845 = vand.u32 %v60, 4294901760
    %v846 = vsub.f32 %v60, %v845
    %847 = vmatprep.subr.mxu0 %v846
    %v848 = vand.u32 %v59, 4294901760
    %v849 = vsub.f32 %v59, %v848
    %850 = vmatpush1.msra.mxu0 %v849
    %v851 = vand.u32 %v66, 4294901760
    %v852 = vsub.f32 %v66, %v851
    %853 = vmatprep.subr.mxu0 %v852
    %v854 = vand.u32 %v65, 4294901760
    %v855 = vsub.f32 %v65, %v854
    %856 = vmatpush1.msra.mxu0 %v855
    %v857 = vand.u32 %v72, 4294901760
    %v858 = vsub.f32 %v72, %v857
    %859 = vmatprep.subr.mxu0 %v858
    %v860 = vand.u32 %v71, 4294901760
    %v861 = vsub.f32 %v71, %v860
    %862 = vmatpush1.msra.mxu0 %v861
    %v863 = vand.u32 %v78, 4294901760
    %v864 = vsub.f32 %v78, %v863
    %865 = vmatprep.subr.mxu0 %v864
    %v866 = vand.u32 %v77, 4294901760
    %v867 = vsub.f32 %v77, %v866
    %868 = vmatpush1.msra.mxu0 %v867
    %v869 = vand.u32 %v84, 4294901760
    %v870 = vsub.f32 %v84, %v869
    %871 = vmatprep.subr.mxu0 %v870
    %v872 = vand.u32 %v83, 4294901760
    %v873 = vsub.f32 %v83, %v872
    %874 = vmatpush1.msra.mxu0 %v873
    %v875 = vand.u32 %v90, 4294901760
    %v876 = vsub.f32 %v90, %v875
    %877 = vmatprep.subr.mxu0 %v876
    %v878 = vand.u32 %v89, 4294901760
    %v879 = vsub.f32 %v89, %v878
    %880 = vmatpush1.msra.mxu0 %v879
    %v881 = vand.u32 %v96, 4294901760
    %v882 = vsub.f32 %v96, %v881
    %883 = vmatprep.subr.mxu0 %v882
    %v884 = vand.u32 %v95, 4294901760
    %v885 = vsub.f32 %v95, %v884
    %886 = vmatpush1.msra.mxu0 %v885
    %v887 = vand.u32 %v102, 4294901760
    %v888 = vsub.f32 %v102, %v887
    %889 = vmatprep.subr.mxu0 %v888
    %v890 = vand.u32 %v101, 4294901760
    %v891 = vsub.f32 %v101, %v890
    %892 = vmatpush1.msra.mxu0 %v891
    %v893 = vand.u32 %v108, 4294901760
    %v894 = vsub.f32 %v108, %v893
    %895 = vmatprep.subr.mxu0 %v894
    %v896 = vand.u32 %v107, 4294901760
    %v897 = vsub.f32 %v107, %v896
    %898 = vmatpush1.msra.mxu0 %v897
    %v899 = vand.u32 %v114, 4294901760
    %v900 = vsub.f32 %v114, %v899
    %901 = vmatprep.subr.mxu0 %v900
    %v902 = vand.u32 %v113, 4294901760
    %v903 = vsub.f32 %v113, %v902
    %904 = vmatpush1.msra.mxu0 %v903
    %v905 = vand.u32 %v120, 4294901760
    %v906 = vsub.f32 %v120, %v905
    %907 = vmatprep.subr.mxu0 %v906
    %v908 = vand.u32 %v119, 4294901760
    %v909 = vsub.f32 %v119, %v908
    %910 = vmatpush1.msra.mxu0 %v909
    %v911 = vand.u32 %v126, 4294901760
    %v912 = vsub.f32 %v126, %v911
    %913 = vmatprep.subr.mxu0 %v912
    %v914 = vand.u32 %v125, 4294901760
    %v915 = vsub.f32 %v125, %v914
    %916 = vmatpush1.msra.mxu0 %v915
    %v917 = vand.u32 %v132, 4294901760
    %v918 = vsub.f32 %v132, %v917
    %919 = vmatprep.subr.mxu0 %v918
    %v920 = vand.u32 %v131, 4294901760
    %v921 = vsub.f32 %v131, %v920
    %922 = vmatpush1.msra.mxu0 %v921
    %v923 = vand.u32 %v138, 4294901760
    %v924 = vsub.f32 %v138, %v923
    %925 = vmatprep.subr.mxu0 %v924
    %v926 = vand.u32 %v137, 4294901760
    %v927 = vsub.f32 %v137, %v926
    %928 = vmatpush1.msra.mxu0 %v927
    %v929 = vand.u32 %v144, 4294901760
    %v930 = vsub.f32 %v144, %v929
    %931 = vmatprep.subr.mxu0 %v930
    %v932 = vand.u32 %v143, 4294901760
    %v933 = vsub.f32 %v143, %v932
    %934 = vmatpush1.msra.mxu0 %v933
    %v935 = vand.u32 %v150, 4294901760
    %v936 = vsub.f32 %v150, %v935
    %937 = vmatprep.subr.mxu0 %v936
    %v938 = vand.u32 %v149, 4294901760
    %v939 = vsub.f32 %v149, %v938
    %940 = vmatpush1.msra.mxu0 %v939
    %v941 = vand.u32 %v156, 4294901760
    %v942 = vsub.f32 %v156, %v941
    %943 = vmatprep.subr.mxu0 %v942
    %v944 = vand.u32 %v155, 4294901760
    %v945 = vsub.f32 %v155, %v944
    %946 = vmatpush1.msra.mxu0 %v945
    %v947 = vand.u32 %v162, 4294901760
    %v948 = vsub.f32 %v162, %v947
    %949 = vmatprep.subr.mxu0 %v948
    %v950 = vand.u32 %v161, 4294901760
    %v951 = vsub.f32 %v161, %v950
    %952 = vmatpush1.msra.mxu0 %v951
    %v953 = vand.u32 %v168, 4294901760
    %v954 = vsub.f32 %v168, %v953
    %955 = vmatprep.subr.mxu0 %v954
    %v956 = vand.u32 %v167, 4294901760
    %v957 = vsub.f32 %v167, %v956
    %958 = vmatpush1.msra.mxu0 %v957
    %v959 = vand.u32 %v174, 4294901760
    %v960 = vsub.f32 %v174, %v959
    %961 = vmatprep.subr.mxu0 %v960
    %v962 = vand.u32 %v173, 4294901760
    %v963 = vsub.f32 %v173, %v962
    %964 = vmatpush1.msra.mxu0 %v963
    %v965 = vand.u32 %v180, 4294901760
    %v966 = vsub.f32 %v180, %v965
    %967 = vmatprep.subr.mxu0 %v966
    %v968 = vand.u32 %v179, 4294901760
    %v969 = vsub.f32 %v179, %v968
    %970 = vmatpush1.msra.mxu0 %v969
    %v971 = vand.u32 %v186, 4294901760
    %v972 = vsub.f32 %v186, %v971
    %973 = vmatprep.subr.mxu0 %v972
    %v974 = vand.u32 %v185, 4294901760
    %v975 = vsub.f32 %v185, %v974
    %976 = vmatpush1.msra.mxu0 %v975
    %v977 = vand.u32 %v192, 4294901760
    %v978 = vsub.f32 %v192, %v977
    %979 = vmatprep.subr.mxu0 %v978
    %v980 = vand.u32 %v191, 4294901760
    %v981 = vsub.f32 %v191, %v980
    %982 = vmatpush1.msra.mxu0 %v981
    %v983 = vand.u32 %v198, 4294901760
    %v984 = vsub.f32 %v198, %v983
    %985 = vmatprep.subr.mxu0 %v984
    %v986 = vand.u32 %v197, 4294901760
    %v987 = vsub.f32 %v197, %v986
    %988 = vmatpush1.msra.mxu0 %v987
    %v989 = vand.u32 %v204, 4294901760
    %v990 = vsub.f32 %v204, %v989
    %991 = vmatprep.subr.mxu0 %v990
    %v992 = vand.u32 %v203, 4294901760
    %v993 = vsub.f32 %v203, %v992
    %994 = vmatpush1.msra.mxu0 %v993
    %v995 = vand.u32 %v210, 4294901760
    %v996 = vsub.f32 %v210, %v995
    %997 = vmatprep.subr.mxu0 %v996
    %v998 = vand.u32 %v209, 4294901760
    %v999 = vsub.f32 %v209, %v998
    %1000 = vmatpush1.msra.mxu0 %v999
    %v1001 = vand.u32 %v216, 4294901760
    %v1002 = vsub.f32 %v216, %v1001
    %1003 = vmatprep.subr.mxu0 %v1002
    %v1004 = vand.u32 %v215, 4294901760
    %v1005 = vsub.f32 %v215, %v1004
    %1006 = vmatpush1.msra.mxu0 %v1005
    %v1007 = vand.u32 %v222, 4294901760
    %v1008 = vsub.f32 %v222, %v1007
    %1009 = vmatprep.subr.mxu0 %v1008
    %v1010 = vand.u32 %v221, 4294901760
    %v1011 = vsub.f32 %v221, %v1010
    %1012 = vmatpush1.msra.mxu0 %v1011
    %v1013 = vand.u32 %v228, 4294901760
    %v1014 = vsub.f32 %v228, %v1013
    %1015 = vmatprep.subr.mxu0 %v1014
    %v1016 = vand.u32 %v227, 4294901760
    %v1017 = vsub.f32 %v227, %v1016
    %1018 = vmatpush1.msra.mxu0 %v1017
    %v1019 = vand.u32 %v234, 4294901760
    %v1020 = vsub.f32 %v234, %v1019
    %1021 = vmatprep.subr.mxu0 %v1020
    %v1022 = vand.u32 %v233, 4294901760
    %v1023 = vsub.f32 %v233, %v1022
    %1024 = vmatpush1.msra.mxu0 %v1023
    %v1025 = vand.u32 %v44, 4294901760
    %v1026 = vsub.f32 %v44, %v1025
    %1027 = vmatprep.mubr.f32.mxu0 %v1026
    %v1028 = vand.u32 %v43, 4294901760
    %v1029 = vsub.f32 %v43, %v1028
    %1030 = vmatmul.mubr.f32.gmra.mrb[0].mxu0 %v1029
    %v1031 = vpop.f32.mrb[0].mxu0
    %v1032 = vadd.f32 %v821, %v1031
    %v1033 = vpop.f32.mrb[0].mxu0
    %v1034 = vadd.f32 %v823, %v1033
    %v1035 = vand.u32 %v46, 4294901760
    %v1036 = vsub.f32 %v46, %v1035
    %1037 = vmatprep.mubr.f32.mxu0 %v1036
    %v1038 = vand.u32 %v45, 4294901760
    %v1039 = vsub.f32 %v45, %v1038
    %1040 = vmatmul.mubr.f32.gmra.mrb[0].mxu0 %v1039
    %v1041 = vpop.f32.mrb[0].mxu0
    %v1042 = vadd.f32 %v829, %v1041
    %v1043 = vpop.f32.mrb[0].mxu0
    %v1044 = vadd.f32 %v831, %v1043
    %1045 = vdwg.mxu0
    %v1046 = vand.u32 %v48, 4294901760
    %1047 = vmatprep.subr.mxu0 %v1046
    %v1048 = vand.u32 %v47, 4294901760
    %1049 = vmatpush1.msra.mxu0 %v1048
    %v1050 = vand.u32 %v54, 4294901760
    %1051 = vmatprep.subr.mxu0 %v1050
    %v1052 = vand.u32 %v53, 4294901760
    %1053 = vmatpush1.msra.mxu0 %v1052
    %v1054 = vand.u32 %v60, 4294901760
    %1055 = vmatprep.subr.mxu0 %v1054
    %v1056 = vand.u32 %v59, 4294901760
    %1057 = vmatpush1.msra.mxu0 %v1056
    %v1058 = vand.u32 %v66, 4294901760
    %1059 = vmatprep.subr.mxu0 %v1058
    %v1060 = vand.u32 %v65, 4294901760
    %1061 = vmatpush1.msra.mxu0 %v1060
    %v1062 = vand.u32 %v72, 4294901760
    %1063 = vmatprep.subr.mxu0 %v1062
    %v1064 = vand.u32 %v71, 4294901760
    %1065 = vmatpush1.msra.mxu0 %v1064
    %v1066 = vand.u32 %v78, 4294901760
    %1067 = vmatprep.subr.mxu0 %v1066
    %v1068 = vand.u32 %v77, 4294901760
    %1069 = vmatpush1.msra.mxu0 %v1068
    %v1070 = vand.u32 %v84, 4294901760
    %1071 = vmatprep.subr.mxu0 %v1070
    %v1072 = vand.u32 %v83, 4294901760
    %1073 = vmatpush1.msra.mxu0 %v1072
    %v1074 = vand.u32 %v90, 4294901760
    %1075 = vmatprep.subr.mxu0 %v1074
    %v1076 = vand.u32 %v89, 4294901760
    %1077 = vmatpush1.msra.mxu0 %v1076
    %v1078 = vand.u32 %v96, 4294901760
    %1079 = vmatprep.subr.mxu0 %v1078
    %v1080 = vand.u32 %v95, 4294901760
    %1081 = vmatpush1.msra.mxu0 %v1080
    %v1082 = vand.u32 %v102, 4294901760
    %1083 = vmatprep.subr.mxu0 %v1082
    %v1084 = vand.u32 %v101, 4294901760
    %1085 = vmatpush1.msra.mxu0 %v1084
    %v1086 = vand.u32 %v108, 4294901760
    %1087 = vmatprep.subr.mxu0 %v1086
    %v1088 = vand.u32 %v107, 4294901760
    %1089 = vmatpush1.msra.mxu0 %v1088
    %v1090 = vand.u32 %v114, 4294901760
    %1091 = vmatprep.subr.mxu0 %v1090
    %v1092 = vand.u32 %v113, 4294901760
    %1093 = vmatpush1.msra.mxu0 %v1092
    %v1094 = vand.u32 %v120, 4294901760
    %1095 = vmatprep.subr.mxu0 %v1094
    %v1096 = vand.u32 %v119, 4294901760
    %1097 = vmatpush1.msra.mxu0 %v1096
    %v1098 = vand.u32 %v126, 4294901760
    %1099 = vmatprep.subr.mxu0 %v1098
    %v1100 = vand.u32 %v125, 4294901760
    %1101 = vmatpush1.msra.mxu0 %v1100
    %v1102 = vand.u32 %v132, 4294901760
    %1103 = vmatprep.subr.mxu0 %v1102
    %v1104 = vand.u32 %v131, 4294901760
    %1105 = vmatpush1.msra.mxu0 %v1104
    %v1106 = vand.u32 %v138, 4294901760
    %1107 = vmatprep.subr.mxu0 %v1106
    %v1108 = vand.u32 %v137, 4294901760
    %1109 = vmatpush1.msra.mxu0 %v1108
    %v1110 = vand.u32 %v144, 4294901760
    %1111 = vmatprep.subr.mxu0 %v1110
    %v1112 = vand.u32 %v143, 4294901760
    %1113 = vmatpush1.msra.mxu0 %v1112
    %v1114 = vand.u32 %v150, 4294901760
    %1115 = vmatprep.subr.mxu0 %v1114
    %v1116 = vand.u32 %v149, 4294901760
    %1117 = vmatpush1.msra.mxu0 %v1116
    %v1118 = vand.u32 %v156, 4294901760
    %1119 = vmatprep.subr.mxu0 %v1118
    %v1120 = vand.u32 %v155, 4294901760
    %1121 = vmatpush1.msra.mxu0 %v1120
    %v1122 = vand.u32 %v162, 4294901760
    %1123 = vmatprep.subr.mxu0 %v1122
    %v1124 = vand.u32 %v161, 4294901760
    %1125 = vmatpush1.msra.mxu0 %v1124
    %v1126 = vand.u32 %v168, 4294901760
    %1127 = vmatprep.subr.mxu0 %v1126
    %v1128 = vand.u32 %v167, 4294901760
    %1129 = vmatpush1.msra.mxu0 %v1128
    %v1130 = vand.u32 %v174, 4294901760
    %1131 = vmatprep.subr.mxu0 %v1130
    %v1132 = vand.u32 %v173, 4294901760
    %1133 = vmatpush1.msra.mxu0 %v1132
    %v1134 = vand.u32 %v180, 4294901760
    %1135 = vmatprep.subr.mxu0 %v1134
    %v1136 = vand.u32 %v179, 4294901760
    %1137 = vmatpush1.msra.mxu0 %v1136
    %v1138 = vand.u32 %v186, 4294901760
    %1139 = vmatprep.subr.mxu0 %v1138
    %v1140 = vand.u32 %v185, 4294901760
    %1141 = vmatpush1.msra.mxu0 %v1140
    %v1142 = vand.u32 %v192, 4294901760
    %1143 = vmatprep.subr.mxu0 %v1142
    %v1144 = vand.u32 %v191, 4294901760
    %1145 = vmatpush1.msra.mxu0 %v1144
    %v1146 = vand.u32 %v198, 4294901760
    %1147 = vmatprep.subr.mxu0 %v1146
    %v1148 = vand.u32 %v197, 4294901760
    %1149 = vmatpush1.msra.mxu0 %v1148
    %v1150 = vand.u32 %v204, 4294901760
    %1151 = vmatprep.subr.mxu0 %v1150
    %v1152 = vand.u32 %v203, 4294901760
    %1153 = vmatpush1.msra.mxu0 %v1152
    %v1154 = vand.u32 %v210, 4294901760
    %1155 = vmatprep.subr.mxu0 %v1154
    %v1156 = vand.u32 %v209, 4294901760
    %1157 = vmatpush1.msra.mxu0 %v1156
    %v1158 = vand.u32 %v216, 4294901760
    %1159 = vmatprep.subr.mxu0 %v1158
    %v1160 = vand.u32 %v215, 4294901760
    %1161 = vmatpush1.msra.mxu0 %v1160
    %v1162 = vand.u32 %v222, 4294901760
    %1163 = vmatprep.subr.mxu0 %v1162
    %v1164 = vand.u32 %v221, 4294901760
    %1165 = vmatpush1.msra.mxu0 %v1164
    %v1166 = vand.u32 %v228, 4294901760
    %1167 = vmatprep.subr.mxu0 %v1166
    %v1168 = vand.u32 %v227, 4294901760
    %1169 = vmatpush1.msra.mxu0 %v1168
    %v1170 = vand.u32 %v234, 4294901760
    %1171 = vmatprep.subr.mxu0 %v1170
    %v1172 = vand.u32 %v233, 4294901760
    %1173 = vmatpush1.msra.mxu0 %v1172
    %v1174 = vand.u32 %v44, 4294901760
    %v1175 = vsub.f32 %v44, %v1174
    %v1176 = vand.u32 %v1175, 4294901760
    %1177 = vmatprep.mubr.f32.mxu0 %v1176
    %v1178 = vand.u32 %v43, 4294901760
    %v1179 = vsub.f32 %v43, %v1178
    %v1180 = vand.u32 %v1179, 4294901760
    %1181 = vmatmul.mubr.f32.gmra.mrb[0].mxu0 %v1180
    %v1182 = vpop.f32.mrb[0].mxu0
    %v1183 = vadd.f32 %v1032, %v1182
    %v1184 = vpop.f32.mrb[0].mxu0
    %v1185 = vadd.f32 %v1034, %v1184
    %v1186 = vand.u32 %v46, 4294901760
    %v1187 = vsub.f32 %v46, %v1186
    %v1188 = vand.u32 %v1187, 4294901760
    %1189 = vmatprep.mubr.f32.mxu0 %v1188
    %v1190 = vand.u32 %v45, 4294901760
    %v1191 = vsub.f32 %v45, %v1190
    %v1192 = vand.u32 %v1191, 4294901760
    %1193 = vmatmul.mubr.f32.gmra.mrb[0].mxu0 %v1192
    %v1194 = vpop.f32.mrb[0].mxu0
    %v1195 = vadd.f32 %v1042, %v1194
    %v1196 = vpop.f32.mrb[0].mxu0
    %v1197 = vadd.f32 %v1044, %v1196
    %1198 = vdwg.mxu0
    %v1199 = vand.u32 %v48, 4294901760
    %v1200 = vsub.f32 %v48, %v1199
    %v1201 = vand.u32 %v1200, 4294901760
    %1202 = vmatprep.subr.mxu0 %v1201
    %v1203 = vand.u32 %v47, 4294901760
    %v1204 = vsub.f32 %v47, %v1203
    %v1205 = vand.u32 %v1204, 4294901760
    %1206 = vmatpush1.msra.mxu0 %v1205
    %v1207 = vand.u32 %v54, 4294901760
    %v1208 = vsub.f32 %v54, %v1207
    %v1209 = vand.u32 %v1208, 4294901760
    %1210 = vmatprep.subr.mxu0 %v1209
    %v1211 = vand.u32 %v53, 4294901760
    %v1212 = vsub.f32 %v53, %v1211
    %v1213 = vand.u32 %v1212, 4294901760
    %1214 = vmatpush1.msra.mxu0 %v1213
    %v1215 = vand.u32 %v60, 4294901760
    %v1216 = vsub.f32 %v60, %v1215
    %v1217 = vand.u32 %v1216, 4294901760
    %1218 = vmatprep.subr.mxu0 %v1217
    %v1219 = vand.u32 %v59, 4294901760
    %v1220 = vsub.f32 %v59, %v1219
    %v1221 = vand.u32 %v1220, 4294901760
    %1222 = vmatpush1.msra.mxu0 %v1221
    %v1223 = vand.u32 %v66, 4294901760
    %v1224 = vsub.f32 %v66, %v1223
    %v1225 = vand.u32 %v1224, 4294901760
    %1226 = vmatprep.subr.mxu0 %v1225
    %v1227 = vand.u32 %v65, 4294901760
    %v1228 = vsub.f32 %v65, %v1227
    %v1229 = vand.u32 %v1228, 4294901760
    %1230 = vmatpush1.msra.mxu0 %v1229
    %v1231 = vand.u32 %v72, 4294901760
    %v1232 = vsub.f32 %v72, %v1231
    %v1233 = vand.u32 %v1232, 4294901760
    %1234 = vmatprep.subr.mxu0 %v1233
    %v1235 = vand.u32 %v71, 4294901760
    %v1236 = vsub.f32 %v71, %v1235
    %v1237 = vand.u32 %v1236, 4294901760
    %1238 = vmatpush1.msra.mxu0 %v1237
    %v1239 = vand.u32 %v78, 4294901760
    %v1240 = vsub.f32 %v78, %v1239
    %v1241 = vand.u32 %v1240, 4294901760
    %1242 = vmatprep.subr.mxu0 %v1241
    %v1243 = vand.u32 %v77, 4294901760
    %v1244 = vsub.f32 %v77, %v1243
    %v1245 = vand.u32 %v1244, 4294901760
    %1246 = vmatpush1.msra.mxu0 %v1245
    %v1247 = vand.u32 %v84, 4294901760
    %v1248 = vsub.f32 %v84, %v1247
    %v1249 = vand.u32 %v1248, 4294901760
    %1250 = vmatprep.subr.mxu0 %v1249
    %v1251 = vand.u32 %v83, 4294901760
    %v1252 = vsub.f32 %v83, %v1251
    %v1253 = vand.u32 %v1252, 4294901760
    %1254 = vmatpush1.msra.mxu0 %v1253
    %v1255 = vand.u32 %v90, 4294901760
    %v1256 = vsub.f32 %v90, %v1255
    %v1257 = vand.u32 %v1256, 4294901760
    %1258 = vmatprep.subr.mxu0 %v1257
    %v1259 = vand.u32 %v89, 4294901760
    %v1260 = vsub.f32 %v89, %v1259
    %v1261 = vand.u32 %v1260, 4294901760
    %1262 = vmatpush1.msra.mxu0 %v1261
    %v1263 = vand.u32 %v96, 4294901760
    %v1264 = vsub.f32 %v96, %v1263
    %v1265 = vand.u32 %v1264, 4294901760
    %1266 = vmatprep.subr.mxu0 %v1265
    %v1267 = vand.u32 %v95, 4294901760
    %v1268 = vsub.f32 %v95, %v1267
    %v1269 = vand.u32 %v1268, 4294901760
    %1270 = vmatpush1.msra.mxu0 %v1269
    %v1271 = vand.u32 %v102, 4294901760
    %v1272 = vsub.f32 %v102, %v1271
    %v1273 = vand.u32 %v1272, 4294901760
    %1274 = vmatprep.subr.mxu0 %v1273
    %v1275 = vand.u32 %v101, 4294901760
    %v1276 = vsub.f32 %v101, %v1275
    %v1277 = vand.u32 %v1276, 4294901760
    %1278 = vmatpush1.msra.mxu0 %v1277
    %v1279 = vand.u32 %v108, 4294901760
    %v1280 = vsub.f32 %v108, %v1279
    %v1281 = vand.u32 %v1280, 4294901760
    %1282 = vmatprep.subr.mxu0 %v1281
    %v1283 = vand.u32 %v107, 4294901760
    %v1284 = vsub.f32 %v107, %v1283
    %v1285 = vand.u32 %v1284, 4294901760
    %1286 = vmatpush1.msra.mxu0 %v1285
    %v1287 = vand.u32 %v114, 4294901760
    %v1288 = vsub.f32 %v114, %v1287
    %v1289 = vand.u32 %v1288, 4294901760
    %1290 = vmatprep.subr.mxu0 %v1289
    %v1291 = vand.u32 %v113, 4294901760
    %v1292 = vsub.f32 %v113, %v1291
    %v1293 = vand.u32 %v1292, 4294901760
    %1294 = vmatpush1.msra.mxu0 %v1293
    %v1295 = vand.u32 %v120, 4294901760
    %v1296 = vsub.f32 %v120, %v1295
    %v1297 = vand.u32 %v1296, 4294901760
    %1298 = vmatprep.subr.mxu0 %v1297
    %v1299 = vand.u32 %v119, 4294901760
    %v1300 = vsub.f32 %v119, %v1299
    %v1301 = vand.u32 %v1300, 4294901760
    %1302 = vmatpush1.msra.mxu0 %v1301
    %v1303 = vand.u32 %v126, 4294901760
    %v1304 = vsub.f32 %v126, %v1303
    %v1305 = vand.u32 %v1304, 4294901760
    %1306 = vmatprep.subr.mxu0 %v1305
    %v1307 = vand.u32 %v125, 4294901760
    %v1308 = vsub.f32 %v125, %v1307
    %v1309 = vand.u32 %v1308, 4294901760
    %1310 = vmatpush1.msra.mxu0 %v1309
    %v1311 = vand.u32 %v132, 4294901760
    %v1312 = vsub.f32 %v132, %v1311
    %v1313 = vand.u32 %v1312, 4294901760
    %1314 = vmatprep.subr.mxu0 %v1313
    %v1315 = vand.u32 %v131, 4294901760
    %v1316 = vsub.f32 %v131, %v1315
    %v1317 = vand.u32 %v1316, 4294901760
    %1318 = vmatpush1.msra.mxu0 %v1317
    %v1319 = vand.u32 %v138, 4294901760
    %v1320 = vsub.f32 %v138, %v1319
    %v1321 = vand.u32 %v1320, 4294901760
    %1322 = vmatprep.subr.mxu0 %v1321
    %v1323 = vand.u32 %v137, 4294901760
    %v1324 = vsub.f32 %v137, %v1323
    %v1325 = vand.u32 %v1324, 4294901760
    %1326 = vmatpush1.msra.mxu0 %v1325
    %v1327 = vand.u32 %v144, 4294901760
    %v1328 = vsub.f32 %v144, %v1327
    %v1329 = vand.u32 %v1328, 4294901760
    %1330 = vmatprep.subr.mxu0 %v1329
    %v1331 = vand.u32 %v143, 4294901760
    %v1332 = vsub.f32 %v143, %v1331
    %v1333 = vand.u32 %v1332, 4294901760
    %1334 = vmatpush1.msra.mxu0 %v1333
    %v1335 = vand.u32 %v150, 4294901760
    %v1336 = vsub.f32 %v150, %v1335
    %v1337 = vand.u32 %v1336, 4294901760
    %1338 = vmatprep.subr.mxu0 %v1337
    %v1339 = vand.u32 %v149, 4294901760
    %v1340 = vsub.f32 %v149, %v1339
    %v1341 = vand.u32 %v1340, 4294901760
    %1342 = vmatpush1.msra.mxu0 %v1341
    %v1343 = vand.u32 %v156, 4294901760
    %v1344 = vsub.f32 %v156, %v1343
    %v1345 = vand.u32 %v1344, 4294901760
    %1346 = vmatprep.subr.mxu0 %v1345
    %v1347 = vand.u32 %v155, 4294901760
    %v1348 = vsub.f32 %v155, %v1347
    %v1349 = vand.u32 %v1348, 4294901760
    %1350 = vmatpush1.msra.mxu0 %v1349
    %v1351 = vand.u32 %v162, 4294901760
    %v1352 = vsub.f32 %v162, %v1351
    %v1353 = vand.u32 %v1352, 4294901760
    %1354 = vmatprep.subr.mxu0 %v1353
    %v1355 = vand.u32 %v161, 4294901760
    %v1356 = vsub.f32 %v161, %v1355
    %v1357 = vand.u32 %v1356, 4294901760
    %1358 = vmatpush1.msra.mxu0 %v1357
    %v1359 = vand.u32 %v168, 4294901760
    %v1360 = vsub.f32 %v168, %v1359
    %v1361 = vand.u32 %v1360, 4294901760
    %1362 = vmatprep.subr.mxu0 %v1361
    %v1363 = vand.u32 %v167, 4294901760
    %v1364 = vsub.f32 %v167, %v1363
    %v1365 = vand.u32 %v1364, 4294901760
    %1366 = vmatpush1.msra.mxu0 %v1365
    %v1367 = vand.u32 %v174, 4294901760
    %v1368 = vsub.f32 %v174, %v1367
    %v1369 = vand.u32 %v1368, 4294901760
    %1370 = vmatprep.subr.mxu0 %v1369
    %v1371 = vand.u32 %v173, 4294901760
    %v1372 = vsub.f32 %v173, %v1371
    %v1373 = vand.u32 %v1372, 4294901760
    %1374 = vmatpush1.msra.mxu0 %v1373
    %v1375 = vand.u32 %v180, 4294901760
    %v1376 = vsub.f32 %v180, %v1375
    %v1377 = vand.u32 %v1376, 4294901760
    %1378 = vmatprep.subr.mxu0 %v1377
    %v1379 = vand.u32 %v179, 4294901760
    %v1380 = vsub.f32 %v179, %v1379
    %v1381 = vand.u32 %v1380, 4294901760
    %1382 = vmatpush1.msra.mxu0 %v1381
    %v1383 = vand.u32 %v186, 4294901760
    %v1384 = vsub.f32 %v186, %v1383
    %v1385 = vand.u32 %v1384, 4294901760
    %1386 = vmatprep.subr.mxu0 %v1385
    %v1387 = vand.u32 %v185, 4294901760
    %v1388 = vsub.f32 %v185, %v1387
    %v1389 = vand.u32 %v1388, 4294901760
    %1390 = vmatpush1.msra.mxu0 %v1389
    %v1391 = vand.u32 %v192, 4294901760
    %v1392 = vsub.f32 %v192, %v1391
    %v1393 = vand.u32 %v1392, 4294901760
    %1394 = vmatprep.subr.mxu0 %v1393
    %v1395 = vand.u32 %v191, 4294901760
    %v1396 = vsub.f32 %v191, %v1395
    %v1397 = vand.u32 %v1396, 4294901760
    %1398 = vmatpush1.msra.mxu0 %v1397
    %v1399 = vand.u32 %v198, 4294901760
    %v1400 = vsub.f32 %v198, %v1399
    %v1401 = vand.u32 %v1400, 4294901760
    %1402 = vmatprep.subr.mxu0 %v1401
    %v1403 = vand.u32 %v197, 4294901760
    %v1404 = vsub.f32 %v197, %v1403
    %v1405 = vand.u32 %v1404, 4294901760
    %1406 = vmatpush1.msra.mxu0 %v1405
    %v1407 = vand.u32 %v204, 4294901760
    %v1408 = vsub.f32 %v204, %v1407
    %v1409 = vand.u32 %v1408, 4294901760
    %1410 = vmatprep.subr.mxu0 %v1409
    %v1411 = vand.u32 %v203, 4294901760
    %v1412 = vsub.f32 %v203, %v1411
    %v1413 = vand.u32 %v1412, 4294901760
    %1414 = vmatpush1.msra.mxu0 %v1413
    %v1415 = vand.u32 %v210, 4294901760
    %v1416 = vsub.f32 %v210, %v1415
    %v1417 = vand.u32 %v1416, 4294901760
    %1418 = vmatprep.subr.mxu0 %v1417
    %v1419 = vand.u32 %v209, 4294901760
    %v1420 = vsub.f32 %v209, %v1419
    %v1421 = vand.u32 %v1420, 4294901760
    %1422 = vmatpush1.msra.mxu0 %v1421
    %v1423 = vand.u32 %v216, 4294901760
    %v1424 = vsub.f32 %v216, %v1423
    %v1425 = vand.u32 %v1424, 4294901760
    %1426 = vmatprep.subr.mxu0 %v1425
    %v1427 = vand.u32 %v215, 4294901760
    %v1428 = vsub.f32 %v215, %v1427
    %v1429 = vand.u32 %v1428, 4294901760
    %1430 = vmatpush1.msra.mxu0 %v1429
    %v1431 = vand.u32 %v222, 4294901760
    %v1432 = vsub.f32 %v222, %v1431
    %v1433 = vand.u32 %v1432, 4294901760
    %1434 = vmatprep.subr.mxu0 %v1433
    %v1435 = vand.u32 %v221, 4294901760
    %v1436 = vsub.f32 %v221, %v1435
    %v1437 = vand.u32 %v1436, 4294901760
    %1438 = vmatpush1.msra.mxu0 %v1437
    %v1439 = vand.u32 %v228, 4294901760
    %v1440 = vsub.f32 %v228, %v1439
    %v1441 = vand.u32 %v1440, 4294901760
    %1442 = vmatprep.subr.mxu0 %v1441
    %v1443 = vand.u32 %v227, 4294901760
    %v1444 = vsub.f32 %v227, %v1443
    %v1445 = vand.u32 %v1444, 4294901760
    %1446 = vmatpush1.msra.mxu0 %v1445
    %v1447 = vand.u32 %v234, 4294901760
    %v1448 = vsub.f32 %v234, %v1447
    %v1449 = vand.u32 %v1448, 4294901760
    %1450 = vmatprep.subr.mxu0 %v1449
    %v1451 = vand.u32 %v233, 4294901760
    %v1452 = vsub.f32 %v233, %v1451
    %v1453 = vand.u32 %v1452, 4294901760
    %1454 = vmatpush1.msra.mxu0 %v1453
    %v1455 = vand.u32 %v44, 4294901760
    %1456 = vmatprep.mubr.f32.mxu0 %v1455
    %v1457 = vand.u32 %v43, 4294901760
    %1458 = vmatmul.mubr.f32.gmra.mrb[0].mxu0 %v1457
    %v1459 = vpop.f32.mrb[0].mxu0
    %v1460 = vadd.f32 %v1183, %v1459
    %v1461 = vpop.f32.mrb[0].mxu0
    %v1462 = vadd.f32 %v1185, %v1461
    %v1463 = vand.u32 %v46, 4294901760
    %1464 = vmatprep.mubr.f32.mxu0 %v1463
    %v1465 = vand.u32 %v45, 4294901760
    %1466 = vmatmul.mubr.f32.gmra.mrb[0].mxu0 %v1465
    %v1467 = vpop.f32.mrb[0].mxu0
    %v1468 = vadd.f32 %v1195, %v1467
    %v1469 = vpop.f32.mrb[0].mxu0
    %v1470 = vadd.f32 %v1197, %v1469
    %1471 = vdwg.mxu0
    %v1472 = vand.u32 %v48, 4294901760
    %1473 = vmatprep.subr.mxu0 %v1472
    %v1474 = vand.u32 %v47, 4294901760
    %1475 = vmatpush1.msra.mxu0 %v1474
    %v1476 = vand.u32 %v54, 4294901760
    %1477 = vmatprep.subr.mxu0 %v1476
    %v1478 = vand.u32 %v53, 4294901760
    %1479 = vmatpush1.msra.mxu0 %v1478
    %v1480 = vand.u32 %v60, 4294901760
    %1481 = vmatprep.subr.mxu0 %v1480
    %v1482 = vand.u32 %v59, 4294901760
    %1483 = vmatpush1.msra.mxu0 %v1482
    %v1484 = vand.u32 %v66, 4294901760
    %1485 = vmatprep.subr.mxu0 %v1484
    %v1486 = vand.u32 %v65, 4294901760
    %1487 = vmatpush1.msra.mxu0 %v1486
    %v1488 = vand.u32 %v72, 4294901760
    %1489 = vmatprep.subr.mxu0 %v1488
    %v1490 = vand.u32 %v71, 4294901760
    %1491 = vmatpush1.msra.mxu0 %v1490
    %v1492 = vand.u32 %v78, 4294901760
    %1493 = vmatprep.subr.mxu0 %v1492
    %v1494 = vand.u32 %v77, 4294901760
    %1495 = vmatpush1.msra.mxu0 %v1494
    %v1496 = vand.u32 %v84, 4294901760
    %1497 = vmatprep.subr.mxu0 %v1496
    %v1498 = vand.u32 %v83, 4294901760
    %1499 = vmatpush1.msra.mxu0 %v1498
    %v1500 = vand.u32 %v90, 4294901760
    %1501 = vmatprep.subr.mxu0 %v1500
    %v1502 = vand.u32 %v89, 4294901760
    %1503 = vmatpush1.msra.mxu0 %v1502
    %v1504 = vand.u32 %v96, 4294901760
    %1505 = vmatprep.subr.mxu0 %v1504
    %v1506 = vand.u32 %v95, 4294901760
    %1507 = vmatpush1.msra.mxu0 %v1506
    %v1508 = vand.u32 %v102, 4294901760
    %1509 = vmatprep.subr.mxu0 %v1508
    %v1510 = vand.u32 %v101, 4294901760
    %1511 = vmatpush1.msra.mxu0 %v1510
    %v1512 = vand.u32 %v108, 4294901760
    %1513 = vmatprep.subr.mxu0 %v1512
    %v1514 = vand.u32 %v107, 4294901760
    %1515 = vmatpush1.msra.mxu0 %v1514
    %v1516 = vand.u32 %v114, 4294901760
    %1517 = vmatprep.subr.mxu0 %v1516
    %v1518 = vand.u32 %v113, 4294901760
    %1519 = vmatpush1.msra.mxu0 %v1518
    %v1520 = vand.u32 %v120, 4294901760
    %1521 = vmatprep.subr.mxu0 %v1520
    %v1522 = vand.u32 %v119, 4294901760
    %1523 = vmatpush1.msra.mxu0 %v1522
    %v1524 = vand.u32 %v126, 4294901760
    %1525 = vmatprep.subr.mxu0 %v1524
    %v1526 = vand.u32 %v125, 4294901760
    %1527 = vmatpush1.msra.mxu0 %v1526
    %v1528 = vand.u32 %v132, 4294901760
    %1529 = vmatprep.subr.mxu0 %v1528
    %v1530 = vand.u32 %v131, 4294901760
    %1531 = vmatpush1.msra.mxu0 %v1530
    %v1532 = vand.u32 %v138, 4294901760
    %1533 = vmatprep.subr.mxu0 %v1532
    %v1534 = vand.u32 %v137, 4294901760
    %1535 = vmatpush1.msra.mxu0 %v1534
    %v1536 = vand.u32 %v144, 4294901760
    %1537 = vmatprep.subr.mxu0 %v1536
    %v1538 = vand.u32 %v143, 4294901760
    %1539 = vmatpush1.msra.mxu0 %v1538
    %v1540 = vand.u32 %v150, 4294901760
    %1541 = vmatprep.subr.mxu0 %v1540
    %v1542 = vand.u32 %v149, 4294901760
    %1543 = vmatpush1.msra.mxu0 %v1542
    %v1544 = vand.u32 %v156, 4294901760
    %1545 = vmatprep.subr.mxu0 %v1544
    %v1546 = vand.u32 %v155, 4294901760
    %1547 = vmatpush1.msra.mxu0 %v1546
    %v1548 = vand.u32 %v162, 4294901760
    %1549 = vmatprep.subr.mxu0 %v1548
    %v1550 = vand.u32 %v161, 4294901760
    %1551 = vmatpush1.msra.mxu0 %v1550
    %v1552 = vand.u32 %v168, 4294901760
    %1553 = vmatprep.subr.mxu0 %v1552
    %v1554 = vand.u32 %v167, 4294901760
    %1555 = vmatpush1.msra.mxu0 %v1554
    %v1556 = vand.u32 %v174, 4294901760
    %1557 = vmatprep.subr.mxu0 %v1556
    %v1558 = vand.u32 %v173, 4294901760
    %1559 = vmatpush1.msra.mxu0 %v1558
    %v1560 = vand.u32 %v180, 4294901760
    %1561 = vmatprep.subr.mxu0 %v1560
    %v1562 = vand.u32 %v179, 4294901760
    %1563 = vmatpush1.msra.mxu0 %v1562
    %v1564 = vand.u32 %v186, 4294901760
    %1565 = vmatprep.subr.mxu0 %v1564
    %v1566 = vand.u32 %v185, 4294901760
    %1567 = vmatpush1.msra.mxu0 %v1566
    %v1568 = vand.u32 %v192, 4294901760
    %1569 = vmatprep.subr.mxu0 %v1568
    %v1570 = vand.u32 %v191, 4294901760
    %1571 = vmatpush1.msra.mxu0 %v1570
    %v1572 = vand.u32 %v198, 4294901760
    %1573 = vmatprep.subr.mxu0 %v1572
    %v1574 = vand.u32 %v197, 4294901760
    %1575 = vmatpush1.msra.mxu0 %v1574
    %v1576 = vand.u32 %v204, 4294901760
    %1577 = vmatprep.subr.mxu0 %v1576
    %v1578 = vand.u32 %v203, 4294901760
    %1579 = vmatpush1.msra.mxu0 %v1578
    %v1580 = vand.u32 %v210, 4294901760
    %1581 = vmatprep.subr.mxu0 %v1580
    %v1582 = vand.u32 %v209, 4294901760
    %1583 = vmatpush1.msra.mxu0 %v1582
    %v1584 = vand.u32 %v216, 4294901760
    %1585 = vmatprep.subr.mxu0 %v1584
    %v1586 = vand.u32 %v215, 4294901760
    %1587 = vmatpush1.msra.mxu0 %v1586
    %v1588 = vand.u32 %v222, 4294901760
    %1589 = vmatprep.subr.mxu0 %v1588
    %v1590 = vand.u32 %v221, 4294901760
    %1591 = vmatpush1.msra.mxu0 %v1590
    %v1592 = vand.u32 %v228, 4294901760
    %1593 = vmatprep.subr.mxu0 %v1592
    %v1594 = vand.u32 %v227, 4294901760
    %1595 = vmatpush1.msra.mxu0 %v1594
    %v1596 = vand.u32 %v234, 4294901760
    %1597 = vmatprep.subr.mxu0 %v1596
    %v1598 = vand.u32 %v233, 4294901760
    %1599 = vmatpush1.msra.mxu0 %v1598
    %v1600 = vand.u32 %v44, 4294901760
    %1601 = vmatprep.mubr.f32.mxu0 %v1600
    %v1602 = vand.u32 %v43, 4294901760
    %1603 = vmatmul.mubr.f32.gmra.mrb[0].mxu0 %v1602
    %v1604 = vpop.f32.mrb[0].mxu0
    %v1605 = vadd.f32 %v1460, %v1604
    %v1606 = vpop.f32.mrb[0].mxu0
    %v1607 = vadd.f32 %v1462, %v1606
    %v1608 = vand.u32 %v46, 4294901760
    %1609 = vmatprep.mubr.f32.mxu0 %v1608
    %v1610 = vand.u32 %v45, 4294901760
    %1611 = vmatmul.mubr.f32.gmra.mrb[0].mxu0 %v1610
    %v1612 = vpop.f32.mrb[0].mxu0
    %v1613 = vadd.f32 %v1468, %v1612
    %v1614 = vpop.f32.mrb[0].mxu0
    %v1615 = vadd.f32 %v1470, %v1614
    %1616 = vdwg.mxu0
    %v1617 = vand.u32 %v50, 4294901760
    %1618 = vmatprep.subr.mxu0 %v1617
    %v1619 = vand.u32 %v49, 4294901760
    %1620 = vmatpush1.msra.mxu0 %v1619
    %v1621 = vand.u32 %v56, 4294901760
    %1622 = vmatprep.subr.mxu0 %v1621
    %v1623 = vand.u32 %v55, 4294901760
    %1624 = vmatpush1.msra.mxu0 %v1623
    %v1625 = vand.u32 %v62, 4294901760
    %1626 = vmatprep.subr.mxu0 %v1625
    %v1627 = vand.u32 %v61, 4294901760
    %1628 = vmatpush1.msra.mxu0 %v1627
    %v1629 = vand.u32 %v68, 4294901760
    %1630 = vmatprep.subr.mxu0 %v1629
    %v1631 = vand.u32 %v67, 4294901760
    %1632 = vmatpush1.msra.mxu0 %v1631
    %v1633 = vand.u32 %v74, 4294901760
    %1634 = vmatprep.subr.mxu0 %v1633
    %v1635 = vand.u32 %v73, 4294901760
    %1636 = vmatpush1.msra.mxu0 %v1635
    %v1637 = vand.u32 %v80, 4294901760
    %1638 = vmatprep.subr.mxu0 %v1637
    %v1639 = vand.u32 %v79, 4294901760
    %1640 = vmatpush1.msra.mxu0 %v1639
    %v1641 = vand.u32 %v86, 4294901760
    %1642 = vmatprep.subr.mxu0 %v1641
    %v1643 = vand.u32 %v85, 4294901760
    %1644 = vmatpush1.msra.mxu0 %v1643
    %v1645 = vand.u32 %v92, 4294901760
    %1646 = vmatprep.subr.mxu0 %v1645
    %v1647 = vand.u32 %v91, 4294901760
    %1648 = vmatpush1.msra.mxu0 %v1647
    %v1649 = vand.u32 %v98, 4294901760
    %1650 = vmatprep.subr.mxu0 %v1649
    %v1651 = vand.u32 %v97, 4294901760
    %1652 = vmatpush1.msra.mxu0 %v1651
    %v1653 = vand.u32 %v104, 4294901760
    %1654 = vmatprep.subr.mxu0 %v1653
    %v1655 = vand.u32 %v103, 4294901760
    %1656 = vmatpush1.msra.mxu0 %v1655
    %v1657 = vand.u32 %v110, 4294901760
    %1658 = vmatprep.subr.mxu0 %v1657
    %v1659 = vand.u32 %v109, 4294901760
    %1660 = vmatpush1.msra.mxu0 %v1659
    %v1661 = vand.u32 %v116, 4294901760
    %1662 = vmatprep.subr.mxu0 %v1661
    %v1663 = vand.u32 %v115, 4294901760
    %1664 = vmatpush1.msra.mxu0 %v1663
    %v1665 = vand.u32 %v122, 4294901760
    %1666 = vmatprep.subr.mxu0 %v1665
    %v1667 = vand.u32 %v121, 4294901760
    %1668 = vmatpush1.msra.mxu0 %v1667
    %v1669 = vand.u32 %v128, 4294901760
    %1670 = vmatprep.subr.mxu0 %v1669
    %v1671 = vand.u32 %v127, 4294901760
    %1672 = vmatpush1.msra.mxu0 %v1671
    %v1673 = vand.u32 %v134, 4294901760
    %1674 = vmatprep.subr.mxu0 %v1673
    %v1675 = vand.u32 %v133, 4294901760
    %1676 = vmatpush1.msra.mxu0 %v1675
    %v1677 = vand.u32 %v140, 4294901760
    %1678 = vmatprep.subr.mxu0 %v1677
    %v1679 = vand.u32 %v139, 4294901760
    %1680 = vmatpush1.msra.mxu0 %v1679
    %v1681 = vand.u32 %v146, 4294901760
    %1682 = vmatprep.subr.mxu0 %v1681
    %v1683 = vand.u32 %v145, 4294901760
    %1684 = vmatpush1.msra.mxu0 %v1683
    %v1685 = vand.u32 %v152, 4294901760
    %1686 = vmatprep.subr.mxu0 %v1685
    %v1687 = vand.u32 %v151, 4294901760
    %1688 = vmatpush1.msra.mxu0 %v1687
    %v1689 = vand.u32 %v158, 4294901760
    %1690 = vmatprep.subr.mxu0 %v1689
    %v1691 = vand.u32 %v157, 4294901760
    %1692 = vmatpush1.msra.mxu0 %v1691
    %v1693 = vand.u32 %v164, 4294901760
    %1694 = vmatprep.subr.mxu0 %v1693
    %v1695 = vand.u32 %v163, 4294901760
    %1696 = vmatpush1.msra.mxu0 %v1695
    %v1697 = vand.u32 %v170, 4294901760
    %1698 = vmatprep.subr.mxu0 %v1697
    %v1699 = vand.u32 %v169, 4294901760
    %1700 = vmatpush1.msra.mxu0 %v1699
    %v1701 = vand.u32 %v176, 4294901760
    %1702 = vmatprep.subr.mxu0 %v1701
    %v1703 = vand.u32 %v175, 4294901760
    %1704 = vmatpush1.msra.mxu0 %v1703
    %v1705 = vand.u32 %v182, 4294901760
    %1706 = vmatprep.subr.mxu0 %v1705
    %v1707 = vand.u32 %v181, 4294901760
    %1708 = vmatpush1.msra.mxu0 %v1707
    %v1709 = vand.u32 %v188, 4294901760
    %1710 = vmatprep.subr.mxu0 %v1709
    %v1711 = vand.u32 %v187, 4294901760
    %1712 = vmatpush1.msra.mxu0 %v1711
    %v1713 = vand.u32 %v194, 4294901760
    %1714 = vmatprep.subr.mxu0 %v1713
    %v1715 = vand.u32 %v193, 4294901760
    %1716 = vmatpush1.msra.mxu0 %v1715
    %v1717 = vand.u32 %v200, 4294901760
    %1718 = vmatprep.subr.mxu0 %v1717
    %v1719 = vand.u32 %v199, 4294901760
    %1720 = vmatpush1.msra.mxu0 %v1719
    %v1721 = vand.u32 %v206, 4294901760
    %1722 = vmatprep.subr.mxu0 %v1721
    %v1723 = vand.u32 %v205, 4294901760
    %1724 = vmatpush1.msra.mxu0 %v1723
    %v1725 = vand.u32 %v212, 4294901760
    %1726 = vmatprep.subr.mxu0 %v1725
    %v1727 = vand.u32 %v211, 4294901760
    %1728 = vmatpush1.msra.mxu0 %v1727
    %v1729 = vand.u32 %v218, 4294901760
    %1730 = vmatprep.subr.mxu0 %v1729
    %v1731 = vand.u32 %v217, 4294901760
    %1732 = vmatpush1.msra.mxu0 %v1731
    %v1733 = vand.u32 %v224, 4294901760
    %1734 = vmatprep.subr.mxu0 %v1733
    %v1735 = vand.u32 %v223, 4294901760
    %1736 = vmatpush1.msra.mxu0 %v1735
    %v1737 = vand.u32 %v230, 4294901760
    %1738 = vmatprep.subr.mxu0 %v1737
    %v1739 = vand.u32 %v229, 4294901760
    %1740 = vmatpush1.msra.mxu0 %v1739
    %v1741 = vand.u32 %v236, 4294901760
    %1742 = vmatprep.subr.mxu0 %v1741
    %v1743 = vand.u32 %v235, 4294901760
    %1744 = vmatpush1.msra.mxu0 %v1743
    %v1745 = vand.u32 %v44, 4294901760
    %v1746 = vsub.f32 %v44, %v1745
    %v1747 = vand.u32 %v1746, 4294901760
    %v1748 = vsub.f32 %v1746, %v1747
    %v1749 = vand.u32 %v1748, 4294901760
    %1750 = vmatprep.mubr.f32.mxu0 %v1749
    %v1751 = vand.u32 %v43, 4294901760
    %v1752 = vsub.f32 %v43, %v1751
    %v1753 = vand.u32 %v1752, 4294901760
    %v1754 = vsub.f32 %v1752, %v1753
    %v1755 = vand.u32 %v1754, 4294901760
    %1756 = vmatmul.mubr.f32.gmra.mrb[0].mxu0 %v1755
    %v1757 = vpop.f32.mrb[0].mxu0
    %v1758 = vadd.f32 %v252, %v1757
    %v1759 = vpop.f32.mrb[0].mxu0
    %v1760 = vadd.f32 %v256, %v1759
    %v1761 = vand.u32 %v46, 4294901760
    %v1762 = vsub.f32 %v46, %v1761
    %v1763 = vand.u32 %v1762, 4294901760
    %v1764 = vsub.f32 %v1762, %v1763
    %v1765 = vand.u32 %v1764, 4294901760
    %1766 = vmatprep.mubr.f32.mxu0 %v1765
    %v1767 = vand.u32 %v45, 4294901760
    %v1768 = vsub.f32 %v45, %v1767
    %v1769 = vand.u32 %v1768, 4294901760
    %v1770 = vsub.f32 %v1768, %v1769
    %v1771 = vand.u32 %v1770, 4294901760
    %1772 = vmatmul.mubr.f32.gmra.mrb[0].mxu0 %v1771
    %v1773 = vpop.f32.mrb[0].mxu0
    %v1774 = vadd.f32 %v252, %v1773
    %v1775 = vpop.f32.mrb[0].mxu0
    %v1776 = vadd.f32 %v256, %v1775
    %1777 = vdwg.mxu0
    %v1778 = vand.u32 %v50, 4294901760
    %v1779 = vsub.f32 %v50, %v1778
    %v1780 = vand.u32 %v1779, 4294901760
    %v1781 = vsub.f32 %v1779, %v1780
    %v1782 = vand.u32 %v1781, 4294901760
    %1783 = vmatprep.subr.mxu0 %v1782
    %v1784 = vand.u32 %v49, 4294901760
    %v1785 = vsub.f32 %v49, %v1784
    %v1786 = vand.u32 %v1785, 4294901760
    %v1787 = vsub.f32 %v1785, %v1786
    %v1788 = vand.u32 %v1787, 4294901760
    %1789 = vmatpush1.msra.mxu0 %v1788
    %v1790 = vand.u32 %v56, 4294901760
    %v1791 = vsub.f32 %v56, %v1790
    %v1792 = vand.u32 %v1791, 4294901760
    %v1793 = vsub.f32 %v1791, %v1792
    %v1794 = vand.u32 %v1793, 4294901760
    %1795 = vmatprep.subr.mxu0 %v1794
    %v1796 = vand.u32 %v55, 4294901760
    %v1797 = vsub.f32 %v55, %v1796
    %v1798 = vand.u32 %v1797, 4294901760
    %v1799 = vsub.f32 %v1797, %v1798
    %v1800 = vand.u32 %v1799, 4294901760
    %1801 = vmatpush1.msra.mxu0 %v1800
    %v1802 = vand.u32 %v62, 4294901760
    %v1803 = vsub.f32 %v62, %v1802
    %v1804 = vand.u32 %v1803, 4294901760
    %v1805 = vsub.f32 %v1803, %v1804
    %v1806 = vand.u32 %v1805, 4294901760
    %1807 = vmatprep.subr.mxu0 %v1806
    %v1808 = vand.u32 %v61, 4294901760
    %v1809 = vsub.f32 %v61, %v1808
    %v1810 = vand.u32 %v1809, 4294901760
    %v1811 = vsub.f32 %v1809, %v1810
    %v1812 = vand.u32 %v1811, 4294901760
    %1813 = vmatpush1.msra.mxu0 %v1812
    %v1814 = vand.u32 %v68, 4294901760
    %v1815 = vsub.f32 %v68, %v1814
    %v1816 = vand.u32 %v1815, 4294901760
    %v1817 = vsub.f32 %v1815, %v1816
    %v1818 = vand.u32 %v1817, 4294901760
    %1819 = vmatprep.subr.mxu0 %v1818
    %v1820 = vand.u32 %v67, 4294901760
    %v1821 = vsub.f32 %v67, %v1820
    %v1822 = vand.u32 %v1821, 4294901760
    %v1823 = vsub.f32 %v1821, %v1822
    %v1824 = vand.u32 %v1823, 4294901760
    %1825 = vmatpush1.msra.mxu0 %v1824
    %v1826 = vand.u32 %v74, 4294901760
    %v1827 = vsub.f32 %v74, %v1826
    %v1828 = vand.u32 %v1827, 4294901760
    %v1829 = vsub.f32 %v1827, %v1828
    %v1830 = vand.u32 %v1829, 4294901760
    %1831 = vmatprep.subr.mxu0 %v1830
    %v1832 = vand.u32 %v73, 4294901760
    %v1833 = vsub.f32 %v73, %v1832
    %v1834 = vand.u32 %v1833, 4294901760
    %v1835 = vsub.f32 %v1833, %v1834
    %v1836 = vand.u32 %v1835, 4294901760
    %1837 = vmatpush1.msra.mxu0 %v1836
    %v1838 = vand.u32 %v80, 4294901760
    %v1839 = vsub.f32 %v80, %v1838
    %v1840 = vand.u32 %v1839, 4294901760
    %v1841 = vsub.f32 %v1839, %v1840
    %v1842 = vand.u32 %v1841, 4294901760
    %1843 = vmatprep.subr.mxu0 %v1842
    %v1844 = vand.u32 %v79, 4294901760
    %v1845 = vsub.f32 %v79, %v1844
    %v1846 = vand.u32 %v1845, 4294901760
    %v1847 = vsub.f32 %v1845, %v1846
    %v1848 = vand.u32 %v1847, 4294901760
    %1849 = vmatpush1.msra.mxu0 %v1848
    %v1850 = vand.u32 %v86, 4294901760
    %v1851 = vsub.f32 %v86, %v1850
    %v1852 = vand.u32 %v1851, 4294901760
    %v1853 = vsub.f32 %v1851, %v1852
    %v1854 = vand.u32 %v1853, 4294901760
    %1855 = vmatprep.subr.mxu0 %v1854
    %v1856 = vand.u32 %v85, 4294901760
    %v1857 = vsub.f32 %v85, %v1856
    %v1858 = vand.u32 %v1857, 4294901760
    %v1859 = vsub.f32 %v1857, %v1858
    %v1860 = vand.u32 %v1859, 4294901760
    %1861 = vmatpush1.msra.mxu0 %v1860
    %v1862 = vand.u32 %v92, 4294901760
    %v1863 = vsub.f32 %v92, %v1862
    %v1864 = vand.u32 %v1863, 4294901760
    %v1865 = vsub.f32 %v1863, %v1864
    %v1866 = vand.u32 %v1865, 4294901760
    %1867 = vmatprep.subr.mxu0 %v1866
    %v1868 = vand.u32 %v91, 4294901760
    %v1869 = vsub.f32 %v91, %v1868
    %v1870 = vand.u32 %v1869, 4294901760
    %v1871 = vsub.f32 %v1869, %v1870
    %v1872 = vand.u32 %v1871, 4294901760
    %1873 = vmatpush1.msra.mxu0 %v1872
    %v1874 = vand.u32 %v98, 4294901760
    %v1875 = vsub.f32 %v98, %v1874
    %v1876 = vand.u32 %v1875, 4294901760
    %v1877 = vsub.f32 %v1875, %v1876
    %v1878 = vand.u32 %v1877, 4294901760
    %1879 = vmatprep.subr.mxu0 %v1878
    %v1880 = vand.u32 %v97, 4294901760
    %v1881 = vsub.f32 %v97, %v1880
    %v1882 = vand.u32 %v1881, 4294901760
    %v1883 = vsub.f32 %v1881, %v1882
    %v1884 = vand.u32 %v1883, 4294901760
    %1885 = vmatpush1.msra.mxu0 %v1884
    %v1886 = vand.u32 %v104, 4294901760
    %v1887 = vsub.f32 %v104, %v1886
    %v1888 = vand.u32 %v1887, 4294901760
    %v1889 = vsub.f32 %v1887, %v1888
    %v1890 = vand.u32 %v1889, 4294901760
    %1891 = vmatprep.subr.mxu0 %v1890
    %v1892 = vand.u32 %v103, 4294901760
    %v1893 = vsub.f32 %v103, %v1892
    %v1894 = vand.u32 %v1893, 4294901760
    %v1895 = vsub.f32 %v1893, %v1894
    %v1896 = vand.u32 %v1895, 4294901760
    %1897 = vmatpush1.msra.mxu0 %v1896
    %v1898 = vand.u32 %v110, 4294901760
    %v1899 = vsub.f32 %v110, %v1898
    %v1900 = vand.u32 %v1899, 4294901760
    %v1901 = vsub.f32 %v1899, %v1900
    %v1902 = vand.u32 %v1901, 4294901760
    %1903 = vmatprep.subr.mxu0 %v1902
    %v1904 = vand.u32 %v109, 4294901760
    %v1905 = vsub.f32 %v109, %v1904
    %v1906 = vand.u32 %v1905, 4294901760
    %v1907 = vsub.f32 %v1905, %v1906
    %v1908 = vand.u32 %v1907, 4294901760
    %1909 = vmatpush1.msra.mxu0 %v1908
    %v1910 = vand.u32 %v116, 4294901760
    %v1911 = vsub.f32 %v116, %v1910
    %v1912 = vand.u32 %v1911, 4294901760
    %v1913 = vsub.f32 %v1911, %v1912
    %v1914 = vand.u32 %v1913, 4294901760
    %1915 = vmatprep.subr.mxu0 %v1914
    %v1916 = vand.u32 %v115, 4294901760
    %v1917 = vsub.f32 %v115, %v1916
    %v1918 = vand.u32 %v1917, 4294901760
    %v1919 = vsub.f32 %v1917, %v1918
    %v1920 = vand.u32 %v1919, 4294901760
    %1921 = vmatpush1.msra.mxu0 %v1920
    %v1922 = vand.u32 %v122, 4294901760
    %v1923 = vsub.f32 %v122, %v1922
    %v1924 = vand.u32 %v1923, 4294901760
    %v1925 = vsub.f32 %v1923, %v1924
    %v1926 = vand.u32 %v1925, 4294901760
    %1927 = vmatprep.subr.mxu0 %v1926
    %v1928 = vand.u32 %v121, 4294901760
    %v1929 = vsub.f32 %v121, %v1928
    %v1930 = vand.u32 %v1929, 4294901760
    %v1931 = vsub.f32 %v1929, %v1930
    %v1932 = vand.u32 %v1931, 4294901760
    %1933 = vmatpush1.msra.mxu0 %v1932
    %v1934 = vand.u32 %v128, 4294901760
    %v1935 = vsub.f32 %v128, %v1934
    %v1936 = vand.u32 %v1935, 4294901760
    %v1937 = vsub.f32 %v1935, %v1936
    %v1938 = vand.u32 %v1937, 4294901760
    %1939 = vmatprep.subr.mxu0 %v1938
    %v1940 = vand.u32 %v127, 4294901760
    %v1941 = vsub.f32 %v127, %v1940
    %v1942 = vand.u32 %v1941, 4294901760
    %v1943 = vsub.f32 %v1941, %v1942
    %v1944 = vand.u32 %v1943, 4294901760
    %1945 = vmatpush1.msra.mxu0 %v1944
    %v1946 = vand.u32 %v134, 4294901760
    %v1947 = vsub.f32 %v134, %v1946
    %v1948 = vand.u32 %v1947, 4294901760
    %v1949 = vsub.f32 %v1947, %v1948
    %v1950 = vand.u32 %v1949, 4294901760
    %1951 = vmatprep.subr.mxu0 %v1950
    %v1952 = vand.u32 %v133, 4294901760
    %v1953 = vsub.f32 %v133, %v1952
    %v1954 = vand.u32 %v1953, 4294901760
    %v1955 = vsub.f32 %v1953, %v1954
    %v1956 = vand.u32 %v1955, 4294901760
    %1957 = vmatpush1.msra.mxu0 %v1956
    %v1958 = vand.u32 %v140, 4294901760
    %v1959 = vsub.f32 %v140, %v1958
    %v1960 = vand.u32 %v1959, 4294901760
    %v1961 = vsub.f32 %v1959, %v1960
    %v1962 = vand.u32 %v1961, 4294901760
    %1963 = vmatprep.subr.mxu0 %v1962
    %v1964 = vand.u32 %v139, 4294901760
    %v1965 = vsub.f32 %v139, %v1964
    %v1966 = vand.u32 %v1965, 4294901760
    %v1967 = vsub.f32 %v1965, %v1966
    %v1968 = vand.u32 %v1967, 4294901760
    %1969 = vmatpush1.msra.mxu0 %v1968
    %v1970 = vand.u32 %v146, 4294901760
    %v1971 = vsub.f32 %v146, %v1970
    %v1972 = vand.u32 %v1971, 4294901760
    %v1973 = vsub.f32 %v1971, %v1972
    %v1974 = vand.u32 %v1973, 4294901760
    %1975 = vmatprep.subr.mxu0 %v1974
    %v1976 = vand.u32 %v145, 4294901760
    %v1977 = vsub.f32 %v145, %v1976
    %v1978 = vand.u32 %v1977, 4294901760
    %v1979 = vsub.f32 %v1977, %v1978
    %v1980 = vand.u32 %v1979, 4294901760
    %1981 = vmatpush1.msra.mxu0 %v1980
    %v1982 = vand.u32 %v152, 4294901760
    %v1983 = vsub.f32 %v152, %v1982
    %v1984 = vand.u32 %v1983, 4294901760
    %v1985 = vsub.f32 %v1983, %v1984
    %v1986 = vand.u32 %v1985, 4294901760
    %1987 = vmatprep.subr.mxu0 %v1986
    %v1988 = vand.u32 %v151, 4294901760
    %v1989 = vsub.f32 %v151, %v1988
    %v1990 = vand.u32 %v1989, 4294901760
    %v1991 = vsub.f32 %v1989, %v1990
    %v1992 = vand.u32 %v1991, 4294901760
    %1993 = vmatpush1.msra.mxu0 %v1992
    %v1994 = vand.u32 %v158, 4294901760
    %v1995 = vsub.f32 %v158, %v1994
    %v1996 = vand.u32 %v1995, 4294901760
    %v1997 = vsub.f32 %v1995, %v1996
    %v1998 = vand.u32 %v1997, 4294901760
    %1999 = vmatprep.subr.mxu0 %v1998
    %v2000 = vand.u32 %v157, 4294901760
    %v2001 = vsub.f32 %v157, %v2000
    %v2002 = vand.u32 %v2001, 4294901760
    %v2003 = vsub.f32 %v2001, %v2002
    %v2004 = vand.u32 %v2003, 4294901760
    %2005 = vmatpush1.msra.mxu0 %v2004
    %v2006 = vand.u32 %v164, 4294901760
    %v2007 = vsub.f32 %v164, %v2006
    %v2008 = vand.u32 %v2007, 4294901760
    %v2009 = vsub.f32 %v2007, %v2008
    %v2010 = vand.u32 %v2009, 4294901760
    %2011 = vmatprep.subr.mxu0 %v2010
    %v2012 = vand.u32 %v163, 4294901760
    %v2013 = vsub.f32 %v163, %v2012
    %v2014 = vand.u32 %v2013, 4294901760
    %v2015 = vsub.f32 %v2013, %v2014
    %v2016 = vand.u32 %v2015, 4294901760
    %2017 = vmatpush1.msra.mxu0 %v2016
    %v2018 = vand.u32 %v170, 4294901760
    %v2019 = vsub.f32 %v170, %v2018
    %v2020 = vand.u32 %v2019, 4294901760
    %v2021 = vsub.f32 %v2019, %v2020
    %v2022 = vand.u32 %v2021, 4294901760
    %2023 = vmatprep.subr.mxu0 %v2022
    %v2024 = vand.u32 %v169, 4294901760
    %v2025 = vsub.f32 %v169, %v2024
    %v2026 = vand.u32 %v2025, 4294901760
    %v2027 = vsub.f32 %v2025, %v2026
    %v2028 = vand.u32 %v2027, 4294901760
    %2029 = vmatpush1.msra.mxu0 %v2028
    %v2030 = vand.u32 %v176, 4294901760
    %v2031 = vsub.f32 %v176, %v2030
    %v2032 = vand.u32 %v2031, 4294901760
    %v2033 = vsub.f32 %v2031, %v2032
    %v2034 = vand.u32 %v2033, 4294901760
    %2035 = vmatprep.subr.mxu0 %v2034
    %v2036 = vand.u32 %v175, 4294901760
    %v2037 = vsub.f32 %v175, %v2036
    %v2038 = vand.u32 %v2037, 4294901760
    %v2039 = vsub.f32 %v2037, %v2038
    %v2040 = vand.u32 %v2039, 4294901760
    %2041 = vmatpush1.msra.mxu0 %v2040
    %v2042 = vand.u32 %v182, 4294901760
    %v2043 = vsub.f32 %v182, %v2042
    %v2044 = vand.u32 %v2043, 4294901760
    %v2045 = vsub.f32 %v2043, %v2044
    %v2046 = vand.u32 %v2045, 4294901760
    %2047 = vmatprep.subr.mxu0 %v2046
    %v2048 = vand.u32 %v181, 4294901760
    %v2049 = vsub.f32 %v181, %v2048
    %v2050 = vand.u32 %v2049, 4294901760
    %v2051 = vsub.f32 %v2049, %v2050
    %v2052 = vand.u32 %v2051, 4294901760
    %2053 = vmatpush1.msra.mxu0 %v2052
    %v2054 = vand.u32 %v188, 4294901760
    %v2055 = vsub.f32 %v188, %v2054
    %v2056 = vand.u32 %v2055, 4294901760
    %v2057 = vsub.f32 %v2055, %v2056
    %v2058 = vand.u32 %v2057, 4294901760
    %2059 = vmatprep.subr.mxu0 %v2058
    %v2060 = vand.u32 %v187, 4294901760
    %v2061 = vsub.f32 %v187, %v2060
    %v2062 = vand.u32 %v2061, 4294901760
    %v2063 = vsub.f32 %v2061, %v2062
    %v2064 = vand.u32 %v2063, 4294901760
    %2065 = vmatpush1.msra.mxu0 %v2064
    %v2066 = vand.u32 %v194, 4294901760
    %v2067 = vsub.f32 %v194, %v2066
    %v2068 = vand.u32 %v2067, 4294901760
    %v2069 = vsub.f32 %v2067, %v2068
    %v2070 = vand.u32 %v2069, 4294901760
    %2071 = vmatprep.subr.mxu0 %v2070
    %v2072 = vand.u32 %v193, 4294901760
    %v2073 = vsub.f32 %v193, %v2072
    %v2074 = vand.u32 %v2073, 4294901760
    %v2075 = vsub.f32 %v2073, %v2074
    %v2076 = vand.u32 %v2075, 4294901760
    %2077 = vmatpush1.msra.mxu0 %v2076
    %v2078 = vand.u32 %v200, 4294901760
    %v2079 = vsub.f32 %v200, %v2078
    %v2080 = vand.u32 %v2079, 4294901760
    %v2081 = vsub.f32 %v2079, %v2080
    %v2082 = vand.u32 %v2081, 4294901760
    %2083 = vmatprep.subr.mxu0 %v2082
    %v2084 = vand.u32 %v199, 4294901760
    %v2085 = vsub.f32 %v199, %v2084
    %v2086 = vand.u32 %v2085, 4294901760
    %v2087 = vsub.f32 %v2085, %v2086
    %v2088 = vand.u32 %v2087, 4294901760
    %2089 = vmatpush1.msra.mxu0 %v2088
    %v2090 = vand.u32 %v206, 4294901760
    %v2091 = vsub.f32 %v206, %v2090
    %v2092 = vand.u32 %v2091, 4294901760
    %v2093 = vsub.f32 %v2091, %v2092
    %v2094 = vand.u32 %v2093, 4294901760
    %2095 = vmatprep.subr.mxu0 %v2094
    %v2096 = vand.u32 %v205, 4294901760
    %v2097 = vsub.f32 %v205, %v2096
    %v2098 = vand.u32 %v2097, 4294901760
    %v2099 = vsub.f32 %v2097, %v2098
    %v2100 = vand.u32 %v2099, 4294901760
    %2101 = vmatpush1.msra.mxu0 %v2100
    %v2102 = vand.u32 %v212, 4294901760
    %v2103 = vsub.f32 %v212, %v2102
    %v2104 = vand.u32 %v2103, 4294901760
    %v2105 = vsub.f32 %v2103, %v2104
    %v2106 = vand.u32 %v2105, 4294901760
    %2107 = vmatprep.subr.mxu0 %v2106
    %v2108 = vand.u32 %v211, 4294901760
    %v2109 = vsub.f32 %v211, %v2108
    %v2110 = vand.u32 %v2109, 4294901760
    %v2111 = vsub.f32 %v2109, %v2110
    %v2112 = vand.u32 %v2111, 4294901760
    %2113 = vmatpush1.msra.mxu0 %v2112
    %v2114 = vand.u32 %v218, 4294901760
    %v2115 = vsub.f32 %v218, %v2114
    %v2116 = vand.u32 %v2115, 4294901760
    %v2117 = vsub.f32 %v2115, %v2116
    %v2118 = vand.u32 %v2117, 4294901760
    %2119 = vmatprep.subr.mxu0 %v2118
    %v2120 = vand.u32 %v217, 4294901760
    %v2121 = vsub.f32 %v217, %v2120
    %v2122 = vand.u32 %v2121, 4294901760
    %v2123 = vsub.f32 %v2121, %v2122
    %v2124 = vand.u32 %v2123, 4294901760
    %2125 = vmatpush1.msra.mxu0 %v2124
    %v2126 = vand.u32 %v224, 4294901760
    %v2127 = vsub.f32 %v224, %v2126
    %v2128 = vand.u32 %v2127, 4294901760
    %v2129 = vsub.f32 %v2127, %v2128
    %v2130 = vand.u32 %v2129, 4294901760
    %2131 = vmatprep.subr.mxu0 %v2130
    %v2132 = vand.u32 %v223, 4294901760
    %v2133 = vsub.f32 %v223, %v2132
    %v2134 = vand.u32 %v2133, 4294901760
    %v2135 = vsub.f32 %v2133, %v2134
    %v2136 = vand.u32 %v2135, 4294901760
    %2137 = vmatpush1.msra.mxu0 %v2136
    %v2138 = vand.u32 %v230, 4294901760
    %v2139 = vsub.f32 %v230, %v2138
    %v2140 = vand.u32 %v2139, 4294901760
    %v2141 = vsub.f32 %v2139, %v2140
    %v2142 = vand.u32 %v2141, 4294901760
    %2143 = vmatprep.subr.mxu0 %v2142
    %v2144 = vand.u32 %v229, 4294901760
    %v2145 = vsub.f32 %v229, %v2144
    %v2146 = vand.u32 %v2145, 4294901760
    %v2147 = vsub.f32 %v2145, %v2146
    %v2148 = vand.u32 %v2147, 4294901760
    %2149 = vmatpush1.msra.mxu0 %v2148
    %v2150 = vand.u32 %v236, 4294901760
    %v2151 = vsub.f32 %v236, %v2150
    %v2152 = vand.u32 %v2151, 4294901760
    %v2153 = vsub.f32 %v2151, %v2152
    %v2154 = vand.u32 %v2153, 4294901760
    %2155 = vmatprep.subr.mxu0 %v2154
    %v2156 = vand.u32 %v235, 4294901760
    %v2157 = vsub.f32 %v235, %v2156
    %v2158 = vand.u32 %v2157, 4294901760
    %v2159 = vsub.f32 %v2157, %v2158
    %v2160 = vand.u32 %v2159, 4294901760
    %2161 = vmatpush1.msra.mxu0 %v2160
    %v2162 = vand.u32 %v44, 4294901760
    %2163 = vmatprep.mubr.f32.mxu0 %v2162
    %v2164 = vand.u32 %v43, 4294901760
    %2165 = vmatmul.mubr.f32.gmra.mrb[0].mxu0 %v2164
    %v2166 = vpop.f32.mrb[0].mxu0
    %v2167 = vadd.f32 %v1758, %v2166
    %v2168 = vpop.f32.mrb[0].mxu0
    %v2169 = vadd.f32 %v1760, %v2168
    %v2170 = vand.u32 %v46, 4294901760
    %2171 = vmatprep.mubr.f32.mxu0 %v2170
    %v2172 = vand.u32 %v45, 4294901760
    %2173 = vmatmul.mubr.f32.gmra.mrb[0].mxu0 %v2172
    %v2174 = vpop.f32.mrb[0].mxu0
    %v2175 = vadd.f32 %v1774, %v2174
    %v2176 = vpop.f32.mrb[0].mxu0
    %v2177 = vadd.f32 %v1776, %v2176
    %2178 = vdwg.mxu0
    %v2179 = vand.u32 %v50, 4294901760
    %v2180 = vsub.f32 %v50, %v2179
    %2181 = vmatprep.subr.mxu0 %v2180
    %v2182 = vand.u32 %v49, 4294901760
    %v2183 = vsub.f32 %v49, %v2182
    %2184 = vmatpush1.msra.mxu0 %v2183
    %v2185 = vand.u32 %v56, 4294901760
    %v2186 = vsub.f32 %v56, %v2185
    %2187 = vmatprep.subr.mxu0 %v2186
    %v2188 = vand.u32 %v55, 4294901760
    %v2189 = vsub.f32 %v55, %v2188
    %2190 = vmatpush1.msra.mxu0 %v2189
    %v2191 = vand.u32 %v62, 4294901760
    %v2192 = vsub.f32 %v62, %v2191
    %2193 = vmatprep.subr.mxu0 %v2192
    %v2194 = vand.u32 %v61, 4294901760
    %v2195 = vsub.f32 %v61, %v2194
    %2196 = vmatpush1.msra.mxu0 %v2195
    %v2197 = vand.u32 %v68, 4294901760
    %v2198 = vsub.f32 %v68, %v2197
    %2199 = vmatprep.subr.mxu0 %v2198
    %v2200 = vand.u32 %v67, 4294901760
    %v2201 = vsub.f32 %v67, %v2200
    %2202 = vmatpush1.msra.mxu0 %v2201
    %v2203 = vand.u32 %v74, 4294901760
    %v2204 = vsub.f32 %v74, %v2203
    %2205 = vmatprep.subr.mxu0 %v2204
    %v2206 = vand.u32 %v73, 4294901760
    %v2207 = vsub.f32 %v73, %v2206
    %2208 = vmatpush1.msra.mxu0 %v2207
    %v2209 = vand.u32 %v80, 4294901760
    %v2210 = vsub.f32 %v80, %v2209
    %2211 = vmatprep.subr.mxu0 %v2210
    %v2212 = vand.u32 %v79, 4294901760
    %v2213 = vsub.f32 %v79, %v2212
    %2214 = vmatpush1.msra.mxu0 %v2213
    %v2215 = vand.u32 %v86, 4294901760
    %v2216 = vsub.f32 %v86, %v2215
    %2217 = vmatprep.subr.mxu0 %v2216
    %v2218 = vand.u32 %v85, 4294901760
    %v2219 = vsub.f32 %v85, %v2218
    %2220 = vmatpush1.msra.mxu0 %v2219
    %v2221 = vand.u32 %v92, 4294901760
    %v2222 = vsub.f32 %v92, %v2221
    %2223 = vmatprep.subr.mxu0 %v2222
    %v2224 = vand.u32 %v91, 4294901760
    %v2225 = vsub.f32 %v91, %v2224
    %2226 = vmatpush1.msra.mxu0 %v2225
    %v2227 = vand.u32 %v98, 4294901760
    %v2228 = vsub.f32 %v98, %v2227
    %2229 = vmatprep.subr.mxu0 %v2228
    %v2230 = vand.u32 %v97, 4294901760
    %v2231 = vsub.f32 %v97, %v2230
    %2232 = vmatpush1.msra.mxu0 %v2231
    %v2233 = vand.u32 %v104, 4294901760
    %v2234 = vsub.f32 %v104, %v2233
    %2235 = vmatprep.subr.mxu0 %v2234
    %v2236 = vand.u32 %v103, 4294901760
    %v2237 = vsub.f32 %v103, %v2236
    %2238 = vmatpush1.msra.mxu0 %v2237
    %v2239 = vand.u32 %v110, 4294901760
    %v2240 = vsub.f32 %v110, %v2239
    %2241 = vmatprep.subr.mxu0 %v2240
    %v2242 = vand.u32 %v109, 4294901760
    %v2243 = vsub.f32 %v109, %v2242
    %2244 = vmatpush1.msra.mxu0 %v2243
    %v2245 = vand.u32 %v116, 4294901760
    %v2246 = vsub.f32 %v116, %v2245
    %2247 = vmatprep.subr.mxu0 %v2246
    %v2248 = vand.u32 %v115, 4294901760
    %v2249 = vsub.f32 %v115, %v2248
    %2250 = vmatpush1.msra.mxu0 %v2249
    %v2251 = vand.u32 %v122, 4294901760
    %v2252 = vsub.f32 %v122, %v2251
    %2253 = vmatprep.subr.mxu0 %v2252
    %v2254 = vand.u32 %v121, 4294901760
    %v2255 = vsub.f32 %v121, %v2254
    %2256 = vmatpush1.msra.mxu0 %v2255
    %v2257 = vand.u32 %v128, 4294901760
    %v2258 = vsub.f32 %v128, %v2257
    %2259 = vmatprep.subr.mxu0 %v2258
    %v2260 = vand.u32 %v127, 4294901760
    %v2261 = vsub.f32 %v127, %v2260
    %2262 = vmatpush1.msra.mxu0 %v2261
    %v2263 = vand.u32 %v134, 4294901760
    %v2264 = vsub.f32 %v134, %v2263
    %2265 = vmatprep.subr.mxu0 %v2264
    %v2266 = vand.u32 %v133, 4294901760
    %v2267 = vsub.f32 %v133, %v2266
    %2268 = vmatpush1.msra.mxu0 %v2267
    %v2269 = vand.u32 %v140, 4294901760
    %v2270 = vsub.f32 %v140, %v2269
    %2271 = vmatprep.subr.mxu0 %v2270
    %v2272 = vand.u32 %v139, 4294901760
    %v2273 = vsub.f32 %v139, %v2272
    %2274 = vmatpush1.msra.mxu0 %v2273
    %v2275 = vand.u32 %v146, 4294901760
    %v2276 = vsub.f32 %v146, %v2275
    %2277 = vmatprep.subr.mxu0 %v2276
    %v2278 = vand.u32 %v145, 4294901760
    %v2279 = vsub.f32 %v145, %v2278
    %2280 = vmatpush1.msra.mxu0 %v2279
    %v2281 = vand.u32 %v152, 4294901760
    %v2282 = vsub.f32 %v152, %v2281
    %2283 = vmatprep.subr.mxu0 %v2282
    %v2284 = vand.u32 %v151, 4294901760
    %v2285 = vsub.f32 %v151, %v2284
    %2286 = vmatpush1.msra.mxu0 %v2285
    %v2287 = vand.u32 %v158, 4294901760
    %v2288 = vsub.f32 %v158, %v2287
    %2289 = vmatprep.subr.mxu0 %v2288
    %v2290 = vand.u32 %v157, 4294901760
    %v2291 = vsub.f32 %v157, %v2290
    %2292 = vmatpush1.msra.mxu0 %v2291
    %v2293 = vand.u32 %v164, 4294901760
    %v2294 = vsub.f32 %v164, %v2293
    %2295 = vmatprep.subr.mxu0 %v2294
    %v2296 = vand.u32 %v163, 4294901760
    %v2297 = vsub.f32 %v163, %v2296
    %2298 = vmatpush1.msra.mxu0 %v2297
    %v2299 = vand.u32 %v170, 4294901760
    %v2300 = vsub.f32 %v170, %v2299
    %2301 = vmatprep.subr.mxu0 %v2300
    %v2302 = vand.u32 %v169, 4294901760
    %v2303 = vsub.f32 %v169, %v2302
    %2304 = vmatpush1.msra.mxu0 %v2303
    %v2305 = vand.u32 %v176, 4294901760
    %v2306 = vsub.f32 %v176, %v2305
    %2307 = vmatprep.subr.mxu0 %v2306
    %v2308 = vand.u32 %v175, 4294901760
    %v2309 = vsub.f32 %v175, %v2308
    %2310 = vmatpush1.msra.mxu0 %v2309
    %v2311 = vand.u32 %v182, 4294901760
    %v2312 = vsub.f32 %v182, %v2311
    %2313 = vmatprep.subr.mxu0 %v2312
    %v2314 = vand.u32 %v181, 4294901760
    %v2315 = vsub.f32 %v181, %v2314
    %2316 = vmatpush1.msra.mxu0 %v2315
    %v2317 = vand.u32 %v188, 4294901760
    %v2318 = vsub.f32 %v188, %v2317
    %2319 = vmatprep.subr.mxu0 %v2318
    %v2320 = vand.u32 %v187, 4294901760
    %v2321 = vsub.f32 %v187, %v2320
    %2322 = vmatpush1.msra.mxu0 %v2321
    %v2323 = vand.u32 %v194, 4294901760
    %v2324 = vsub.f32 %v194, %v2323
    %2325 = vmatprep.subr.mxu0 %v2324
    %v2326 = vand.u32 %v193, 4294901760
    %v2327 = vsub.f32 %v193, %v2326
    %2328 = vmatpush1.msra.mxu0 %v2327
    %v2329 = vand.u32 %v200, 4294901760
    %v2330 = vsub.f32 %v200, %v2329
    %2331 = vmatprep.subr.mxu0 %v2330
    %v2332 = vand.u32 %v199, 4294901760
    %v2333 = vsub.f32 %v199, %v2332
    %2334 = vmatpush1.msra.mxu0 %v2333
    %v2335 = vand.u32 %v206, 4294901760
    %v2336 = vsub.f32 %v206, %v2335
    %2337 = vmatprep.subr.mxu0 %v2336
    %v2338 = vand.u32 %v205, 4294901760
    %v2339 = vsub.f32 %v205, %v2338
    %2340 = vmatpush1.msra.mxu0 %v2339
    %v2341 = vand.u32 %v212, 4294901760
    %v2342 = vsub.f32 %v212, %v2341
    %2343 = vmatprep.subr.mxu0 %v2342
    %v2344 = vand.u32 %v211, 4294901760
    %v2345 = vsub.f32 %v211, %v2344
    %2346 = vmatpush1.msra.mxu0 %v2345
    %v2347 = vand.u32 %v218, 4294901760
    %v2348 = vsub.f32 %v218, %v2347
    %2349 = vmatprep.subr.mxu0 %v2348
    %v2350 = vand.u32 %v217, 4294901760
    %v2351 = vsub.f32 %v217, %v2350
    %2352 = vmatpush1.msra.mxu0 %v2351
    %v2353 = vand.u32 %v224, 4294901760
    %v2354 = vsub.f32 %v224, %v2353
    %2355 = vmatprep.subr.mxu0 %v2354
    %v2356 = vand.u32 %v223, 4294901760
    %v2357 = vsub.f32 %v223, %v2356
    %2358 = vmatpush1.msra.mxu0 %v2357
    %v2359 = vand.u32 %v230, 4294901760
    %v2360 = vsub.f32 %v230, %v2359
    %2361 = vmatprep.subr.mxu0 %v2360
    %v2362 = vand.u32 %v229, 4294901760
    %v2363 = vsub.f32 %v229, %v2362
    %2364 = vmatpush1.msra.mxu0 %v2363
    %v2365 = vand.u32 %v236, 4294901760
    %v2366 = vsub.f32 %v236, %v2365
    %2367 = vmatprep.subr.mxu0 %v2366
    %v2368 = vand.u32 %v235, 4294901760
    %v2369 = vsub.f32 %v235, %v2368
    %2370 = vmatpush1.msra.mxu0 %v2369
    %v2371 = vand.u32 %v44, 4294901760
    %v2372 = vsub.f32 %v44, %v2371
    %2373 = vmatprep.mubr.f32.mxu0 %v2372
    %v2374 = vand.u32 %v43, 4294901760
    %v2375 = vsub.f32 %v43, %v2374
    %2376 = vmatmul.mubr.f32.gmra.mrb[0].mxu0 %v2375
    %v2377 = vpop.f32.mrb[0].mxu0
    %v2378 = vadd.f32 %v2167, %v2377
    %v2379 = vpop.f32.mrb[0].mxu0
    %v2380 = vadd.f32 %v2169, %v2379
    %v2381 = vand.u32 %v46, 4294901760
    %v2382 = vsub.f32 %v46, %v2381
    %2383 = vmatprep.mubr.f32.mxu0 %v2382
    %v2384 = vand.u32 %v45, 4294901760
    %v2385 = vsub.f32 %v45, %v2384
    %2386 = vmatmul.mubr.f32.gmra.mrb[0].mxu0 %v2385
    %v2387 = vpop.f32.mrb[0].mxu0
    %v2388 = vadd.f32 %v2175, %v2387
    %v2389 = vpop.f32.mrb[0].mxu0
    %v2390 = vadd.f32 %v2177, %v2389
    %2391 = vdwg.mxu0
    %v2392 = vand.u32 %v50, 4294901760
    %2393 = vmatprep.subr.mxu0 %v2392
    %v2394 = vand.u32 %v49, 4294901760
    %2395 = vmatpush1.msra.mxu0 %v2394
    %v2396 = vand.u32 %v56, 4294901760
    %2397 = vmatprep.subr.mxu0 %v2396
    %v2398 = vand.u32 %v55, 4294901760
    %2399 = vmatpush1.msra.mxu0 %v2398
    %v2400 = vand.u32 %v62, 4294901760
    %2401 = vmatprep.subr.mxu0 %v2400
    %v2402 = vand.u32 %v61, 4294901760
    %2403 = vmatpush1.msra.mxu0 %v2402
    %v2404 = vand.u32 %v68, 4294901760
    %2405 = vmatprep.subr.mxu0 %v2404
    %v2406 = vand.u32 %v67, 4294901760
    %2407 = vmatpush1.msra.mxu0 %v2406
    %v2408 = vand.u32 %v74, 4294901760
    %2409 = vmatprep.subr.mxu0 %v2408
    %v2410 = vand.u32 %v73, 4294901760
    %2411 = vmatpush1.msra.mxu0 %v2410
    %v2412 = vand.u32 %v80, 4294901760
    %2413 = vmatprep.subr.mxu0 %v2412
    %v2414 = vand.u32 %v79, 4294901760
    %2415 = vmatpush1.msra.mxu0 %v2414
    %v2416 = vand.u32 %v86, 4294901760
    %2417 = vmatprep.subr.mxu0 %v2416
    %v2418 = vand.u32 %v85, 4294901760
    %2419 = vmatpush1.msra.mxu0 %v2418
    %v2420 = vand.u32 %v92, 4294901760
    %2421 = vmatprep.subr.mxu0 %v2420
    %v2422 = vand.u32 %v91, 4294901760
    %2423 = vmatpush1.msra.mxu0 %v2422
    %v2424 = vand.u32 %v98, 4294901760
    %2425 = vmatprep.subr.mxu0 %v2424
    %v2426 = vand.u32 %v97, 4294901760
    %2427 = vmatpush1.msra.mxu0 %v2426
    %v2428 = vand.u32 %v104, 4294901760
    %2429 = vmatprep.subr.mxu0 %v2428
    %v2430 = vand.u32 %v103, 4294901760
    %2431 = vmatpush1.msra.mxu0 %v2430
    %v2432 = vand.u32 %v110, 4294901760
    %2433 = vmatprep.subr.mxu0 %v2432
    %v2434 = vand.u32 %v109, 4294901760
    %2435 = vmatpush1.msra.mxu0 %v2434
    %v2436 = vand.u32 %v116, 4294901760
    %2437 = vmatprep.subr.mxu0 %v2436
    %v2438 = vand.u32 %v115, 4294901760
    %2439 = vmatpush1.msra.mxu0 %v2438
    %v2440 = vand.u32 %v122, 4294901760
    %2441 = vmatprep.subr.mxu0 %v2440
    %v2442 = vand.u32 %v121, 4294901760
    %2443 = vmatpush1.msra.mxu0 %v2442
    %v2444 = vand.u32 %v128, 4294901760
    %2445 = vmatprep.subr.mxu0 %v2444
    %v2446 = vand.u32 %v127, 4294901760
    %2447 = vmatpush1.msra.mxu0 %v2446
    %v2448 = vand.u32 %v134, 4294901760
    %2449 = vmatprep.subr.mxu0 %v2448
    %v2450 = vand.u32 %v133, 4294901760
    %2451 = vmatpush1.msra.mxu0 %v2450
    %v2452 = vand.u32 %v140, 4294901760
    %2453 = vmatprep.subr.mxu0 %v2452
    %v2454 = vand.u32 %v139, 4294901760
    %2455 = vmatpush1.msra.mxu0 %v2454
    %v2456 = vand.u32 %v146, 4294901760
    %2457 = vmatprep.subr.mxu0 %v2456
    %v2458 = vand.u32 %v145, 4294901760
    %2459 = vmatpush1.msra.mxu0 %v2458
    %v2460 = vand.u32 %v152, 4294901760
    %2461 = vmatprep.subr.mxu0 %v2460
    %v2462 = vand.u32 %v151, 4294901760
    %2463 = vmatpush1.msra.mxu0 %v2462
    %v2464 = vand.u32 %v158, 4294901760
    %2465 = vmatprep.subr.mxu0 %v2464
    %v2466 = vand.u32 %v157, 4294901760
    %2467 = vmatpush1.msra.mxu0 %v2466
    %v2468 = vand.u32 %v164, 4294901760
    %2469 = vmatprep.subr.mxu0 %v2468
    %v2470 = vand.u32 %v163, 4294901760
    %2471 = vmatpush1.msra.mxu0 %v2470
    %v2472 = vand.u32 %v170, 4294901760
    %2473 = vmatprep.subr.mxu0 %v2472
    %v2474 = vand.u32 %v169, 4294901760
    %2475 = vmatpush1.msra.mxu0 %v2474
    %v2476 = vand.u32 %v176, 4294901760
    %2477 = vmatprep.subr.mxu0 %v2476
    %v2478 = vand.u32 %v175, 4294901760
    %2479 = vmatpush1.msra.mxu0 %v2478
    %v2480 = vand.u32 %v182, 4294901760
    %2481 = vmatprep.subr.mxu0 %v2480
    %v2482 = vand.u32 %v181, 4294901760
    %2483 = vmatpush1.msra.mxu0 %v2482
    %v2484 = vand.u32 %v188, 4294901760
    %2485 = vmatprep.subr.mxu0 %v2484
    %v2486 = vand.u32 %v187, 4294901760
    %2487 = vmatpush1.msra.mxu0 %v2486
    %v2488 = vand.u32 %v194, 4294901760
    %2489 = vmatprep.subr.mxu0 %v2488
    %v2490 = vand.u32 %v193, 4294901760
    %2491 = vmatpush1.msra.mxu0 %v2490
    %v2492 = vand.u32 %v200, 4294901760
    %2493 = vmatprep.subr.mxu0 %v2492
    %v2494 = vand.u32 %v199, 4294901760
    %2495 = vmatpush1.msra.mxu0 %v2494
    %v2496 = vand.u32 %v206, 4294901760
    %2497 = vmatprep.subr.mxu0 %v2496
    %v2498 = vand.u32 %v205, 4294901760
    %2499 = vmatpush1.msra.mxu0 %v2498
    %v2500 = vand.u32 %v212, 4294901760
    %2501 = vmatprep.subr.mxu0 %v2500
    %v2502 = vand.u32 %v211, 4294901760
    %2503 = vmatpush1.msra.mxu0 %v2502
    %v2504 = vand.u32 %v218, 4294901760
    %2505 = vmatprep.subr.mxu0 %v2504
    %v2506 = vand.u32 %v217, 4294901760
    %2507 = vmatpush1.msra.mxu0 %v2506
    %v2508 = vand.u32 %v224, 4294901760
    %2509 = vmatprep.subr.mxu0 %v2508
    %v2510 = vand.u32 %v223, 4294901760
    %2511 = vmatpush1.msra.mxu0 %v2510
    %v2512 = vand.u32 %v230, 4294901760
    %2513 = vmatprep.subr.mxu0 %v2512
    %v2514 = vand.u32 %v229, 4294901760
    %2515 = vmatpush1.msra.mxu0 %v2514
    %v2516 = vand.u32 %v236, 4294901760
    %2517 = vmatprep.subr.mxu0 %v2516
    %v2518 = vand.u32 %v235, 4294901760
    %2519 = vmatpush1.msra.mxu0 %v2518
    %v2520 = vand.u32 %v44, 4294901760
    %v2521 = vsub.f32 %v44, %v2520
    %v2522 = vand.u32 %v2521, 4294901760
    %2523 = vmatprep.mubr.f32.mxu0 %v2522
    %v2524 = vand.u32 %v43, 4294901760
    %v2525 = vsub.f32 %v43, %v2524
    %v2526 = vand.u32 %v2525, 4294901760
    %2527 = vmatmul.mubr.f32.gmra.mrb[0].mxu0 %v2526
    %v2528 = vpop.f32.mrb[0].mxu0
    %v2529 = vadd.f32 %v2378, %v2528
    %v2530 = vpop.f32.mrb[0].mxu0
    %v2531 = vadd.f32 %v2380, %v2530
    %v2532 = vand.u32 %v46, 4294901760
    %v2533 = vsub.f32 %v46, %v2532
    %v2534 = vand.u32 %v2533, 4294901760
    %2535 = vmatprep.mubr.f32.mxu0 %v2534
    %v2536 = vand.u32 %v45, 4294901760
    %v2537 = vsub.f32 %v45, %v2536
    %v2538 = vand.u32 %v2537, 4294901760
    %2539 = vmatmul.mubr.f32.gmra.mrb[0].mxu0 %v2538
    %v2540 = vpop.f32.mrb[0].mxu0
    %v2541 = vadd.f32 %v2388, %v2540
    %v2542 = vpop.f32.mrb[0].mxu0
    %v2543 = vadd.f32 %v2390, %v2542
    %2544 = vdwg.mxu0
    %v2545 = vand.u32 %v50, 4294901760
    %v2546 = vsub.f32 %v50, %v2545
    %v2547 = vand.u32 %v2546, 4294901760
    %2548 = vmatprep.subr.mxu0 %v2547
    %v2549 = vand.u32 %v49, 4294901760
    %v2550 = vsub.f32 %v49, %v2549
    %v2551 = vand.u32 %v2550, 4294901760
    %2552 = vmatpush1.msra.mxu0 %v2551
    %v2553 = vand.u32 %v56, 4294901760
    %v2554 = vsub.f32 %v56, %v2553
    %v2555 = vand.u32 %v2554, 4294901760
    %2556 = vmatprep.subr.mxu0 %v2555
    %v2557 = vand.u32 %v55, 4294901760
    %v2558 = vsub.f32 %v55, %v2557
    %v2559 = vand.u32 %v2558, 4294901760
    %2560 = vmatpush1.msra.mxu0 %v2559
    %v2561 = vand.u32 %v62, 4294901760
    %v2562 = vsub.f32 %v62, %v2561
    %v2563 = vand.u32 %v2562, 4294901760
    %2564 = vmatprep.subr.mxu0 %v2563
    %v2565 = vand.u32 %v61, 4294901760
    %v2566 = vsub.f32 %v61, %v2565
    %v2567 = vand.u32 %v2566, 4294901760
    %2568 = vmatpush1.msra.mxu0 %v2567
    %v2569 = vand.u32 %v68, 4294901760
    %v2570 = vsub.f32 %v68, %v2569
    %v2571 = vand.u32 %v2570, 4294901760
    %2572 = vmatprep.subr.mxu0 %v2571
    %v2573 = vand.u32 %v67, 4294901760
    %v2574 = vsub.f32 %v67, %v2573
    %v2575 = vand.u32 %v2574, 4294901760
    %2576 = vmatpush1.msra.mxu0 %v2575
    %v2577 = vand.u32 %v74, 4294901760
    %v2578 = vsub.f32 %v74, %v2577
    %v2579 = vand.u32 %v2578, 4294901760
    %2580 = vmatprep.subr.mxu0 %v2579
    %v2581 = vand.u32 %v73, 4294901760
    %v2582 = vsub.f32 %v73, %v2581
    %v2583 = vand.u32 %v2582, 4294901760
    %2584 = vmatpush1.msra.mxu0 %v2583
    %v2585 = vand.u32 %v80, 4294901760
    %v2586 = vsub.f32 %v80, %v2585
    %v2587 = vand.u32 %v2586, 4294901760
    %2588 = vmatprep.subr.mxu0 %v2587
    %v2589 = vand.u32 %v79, 4294901760
    %v2590 = vsub.f32 %v79, %v2589
    %v2591 = vand.u32 %v2590, 4294901760
    %2592 = vmatpush1.msra.mxu0 %v2591
    %v2593 = vand.u32 %v86, 4294901760
    %v2594 = vsub.f32 %v86, %v2593
    %v2595 = vand.u32 %v2594, 4294901760
    %2596 = vmatprep.subr.mxu0 %v2595
    %v2597 = vand.u32 %v85, 4294901760
    %v2598 = vsub.f32 %v85, %v2597
    %v2599 = vand.u32 %v2598, 4294901760
    %2600 = vmatpush1.msra.mxu0 %v2599
    %v2601 = vand.u32 %v92, 4294901760
    %v2602 = vsub.f32 %v92, %v2601
    %v2603 = vand.u32 %v2602, 4294901760
    %2604 = vmatprep.subr.mxu0 %v2603
    %v2605 = vand.u32 %v91, 4294901760
    %v2606 = vsub.f32 %v91, %v2605
    %v2607 = vand.u32 %v2606, 4294901760
    %2608 = vmatpush1.msra.mxu0 %v2607
    %v2609 = vand.u32 %v98, 4294901760
    %v2610 = vsub.f32 %v98, %v2609
    %v2611 = vand.u32 %v2610, 4294901760
    %2612 = vmatprep.subr.mxu0 %v2611
    %v2613 = vand.u32 %v97, 4294901760
    %v2614 = vsub.f32 %v97, %v2613
    %v2615 = vand.u32 %v2614, 4294901760
    %2616 = vmatpush1.msra.mxu0 %v2615
    %v2617 = vand.u32 %v104, 4294901760
    %v2618 = vsub.f32 %v104, %v2617
    %v2619 = vand.u32 %v2618, 4294901760
    %2620 = vmatprep.subr.mxu0 %v2619
    %v2621 = vand.u32 %v103, 4294901760
    %v2622 = vsub.f32 %v103, %v2621
    %v2623 = vand.u32 %v2622, 4294901760
    %2624 = vmatpush1.msra.mxu0 %v2623
    %v2625 = vand.u32 %v110, 4294901760
    %v2626 = vsub.f32 %v110, %v2625
    %v2627 = vand.u32 %v2626, 4294901760
    %2628 = vmatprep.subr.mxu0 %v2627
    %v2629 = vand.u32 %v109, 4294901760
    %v2630 = vsub.f32 %v109, %v2629
    %v2631 = vand.u32 %v2630, 4294901760
    %2632 = vmatpush1.msra.mxu0 %v2631
    %v2633 = vand.u32 %v116, 4294901760
    %v2634 = vsub.f32 %v116, %v2633
    %v2635 = vand.u32 %v2634, 4294901760
    %2636 = vmatprep.subr.mxu0 %v2635
    %v2637 = vand.u32 %v115, 4294901760
    %v2638 = vsub.f32 %v115, %v2637
    %v2639 = vand.u32 %v2638, 4294901760
    %2640 = vmatpush1.msra.mxu0 %v2639
    %v2641 = vand.u32 %v122, 4294901760
    %v2642 = vsub.f32 %v122, %v2641
    %v2643 = vand.u32 %v2642, 4294901760
    %2644 = vmatprep.subr.mxu0 %v2643
    %v2645 = vand.u32 %v121, 4294901760
    %v2646 = vsub.f32 %v121, %v2645
    %v2647 = vand.u32 %v2646, 4294901760
    %2648 = vmatpush1.msra.mxu0 %v2647
    %v2649 = vand.u32 %v128, 4294901760
    %v2650 = vsub.f32 %v128, %v2649
    %v2651 = vand.u32 %v2650, 4294901760
    %2652 = vmatprep.subr.mxu0 %v2651
    %v2653 = vand.u32 %v127, 4294901760
    %v2654 = vsub.f32 %v127, %v2653
    %v2655 = vand.u32 %v2654, 4294901760
    %2656 = vmatpush1.msra.mxu0 %v2655
    %v2657 = vand.u32 %v134, 4294901760
    %v2658 = vsub.f32 %v134, %v2657
    %v2659 = vand.u32 %v2658, 4294901760
    %2660 = vmatprep.subr.mxu0 %v2659
    %v2661 = vand.u32 %v133, 4294901760
    %v2662 = vsub.f32 %v133, %v2661
    %v2663 = vand.u32 %v2662, 4294901760
    %2664 = vmatpush1.msra.mxu0 %v2663
    %v2665 = vand.u32 %v140, 4294901760
    %v2666 = vsub.f32 %v140, %v2665
    %v2667 = vand.u32 %v2666, 4294901760
    %2668 = vmatprep.subr.mxu0 %v2667
    %v2669 = vand.u32 %v139, 4294901760
    %v2670 = vsub.f32 %v139, %v2669
    %v2671 = vand.u32 %v2670, 4294901760
    %2672 = vmatpush1.msra.mxu0 %v2671
    %v2673 = vand.u32 %v146, 4294901760
    %v2674 = vsub.f32 %v146, %v2673
    %v2675 = vand.u32 %v2674, 4294901760
    %2676 = vmatprep.subr.mxu0 %v2675
    %v2677 = vand.u32 %v145, 4294901760
    %v2678 = vsub.f32 %v145, %v2677
    %v2679 = vand.u32 %v2678, 4294901760
    %2680 = vmatpush1.msra.mxu0 %v2679
    %v2681 = vand.u32 %v152, 4294901760
    %v2682 = vsub.f32 %v152, %v2681
    %v2683 = vand.u32 %v2682, 4294901760
    %2684 = vmatprep.subr.mxu0 %v2683
    %v2685 = vand.u32 %v151, 4294901760
    %v2686 = vsub.f32 %v151, %v2685
    %v2687 = vand.u32 %v2686, 4294901760
    %2688 = vmatpush1.msra.mxu0 %v2687
    %v2689 = vand.u32 %v158, 4294901760
    %v2690 = vsub.f32 %v158, %v2689
    %v2691 = vand.u32 %v2690, 4294901760
    %2692 = vmatprep.subr.mxu0 %v2691
    %v2693 = vand.u32 %v157, 4294901760
    %v2694 = vsub.f32 %v157, %v2693
    %v2695 = vand.u32 %v2694, 4294901760
    %2696 = vmatpush1.msra.mxu0 %v2695
    %v2697 = vand.u32 %v164, 4294901760
    %v2698 = vsub.f32 %v164, %v2697
    %v2699 = vand.u32 %v2698, 4294901760
    %2700 = vmatprep.subr.mxu0 %v2699
    %v2701 = vand.u32 %v163, 4294901760
    %v2702 = vsub.f32 %v163, %v2701
    %v2703 = vand.u32 %v2702, 4294901760
    %2704 = vmatpush1.msra.mxu0 %v2703
    %v2705 = vand.u32 %v170, 4294901760
    %v2706 = vsub.f32 %v170, %v2705
    %v2707 = vand.u32 %v2706, 4294901760
    %2708 = vmatprep.subr.mxu0 %v2707
    %v2709 = vand.u32 %v169, 4294901760
    %v2710 = vsub.f32 %v169, %v2709
    %v2711 = vand.u32 %v2710, 4294901760
    %2712 = vmatpush1.msra.mxu0 %v2711
    %v2713 = vand.u32 %v176, 4294901760
    %v2714 = vsub.f32 %v176, %v2713
    %v2715 = vand.u32 %v2714, 4294901760
    %2716 = vmatprep.subr.mxu0 %v2715
    %v2717 = vand.u32 %v175, 4294901760
    %v2718 = vsub.f32 %v175, %v2717
    %v2719 = vand.u32 %v2718, 4294901760
    %2720 = vmatpush1.msra.mxu0 %v2719
    %v2721 = vand.u32 %v182, 4294901760
    %v2722 = vsub.f32 %v182, %v2721
    %v2723 = vand.u32 %v2722, 4294901760
    %2724 = vmatprep.subr.mxu0 %v2723
    %v2725 = vand.u32 %v181, 4294901760
    %v2726 = vsub.f32 %v181, %v2725
    %v2727 = vand.u32 %v2726, 4294901760
    %2728 = vmatpush1.msra.mxu0 %v2727
    %v2729 = vand.u32 %v188, 4294901760
    %v2730 = vsub.f32 %v188, %v2729
    %v2731 = vand.u32 %v2730, 4294901760
    %2732 = vmatprep.subr.mxu0 %v2731
    %v2733 = vand.u32 %v187, 4294901760
    %v2734 = vsub.f32 %v187, %v2733
    %v2735 = vand.u32 %v2734, 4294901760
    %2736 = vmatpush1.msra.mxu0 %v2735
    %v2737 = vand.u32 %v194, 4294901760
    %v2738 = vsub.f32 %v194, %v2737
    %v2739 = vand.u32 %v2738, 4294901760
    %2740 = vmatprep.subr.mxu0 %v2739
    %v2741 = vand.u32 %v193, 4294901760
    %v2742 = vsub.f32 %v193, %v2741
    %v2743 = vand.u32 %v2742, 4294901760
    %2744 = vmatpush1.msra.mxu0 %v2743
    %v2745 = vand.u32 %v200, 4294901760
    %v2746 = vsub.f32 %v200, %v2745
    %v2747 = vand.u32 %v2746, 4294901760
    %2748 = vmatprep.subr.mxu0 %v2747
    %v2749 = vand.u32 %v199, 4294901760
    %v2750 = vsub.f32 %v199, %v2749
    %v2751 = vand.u32 %v2750, 4294901760
    %2752 = vmatpush1.msra.mxu0 %v2751
    %v2753 = vand.u32 %v206, 4294901760
    %v2754 = vsub.f32 %v206, %v2753
    %v2755 = vand.u32 %v2754, 4294901760
    %2756 = vmatprep.subr.mxu0 %v2755
    %v2757 = vand.u32 %v205, 4294901760
    %v2758 = vsub.f32 %v205, %v2757
    %v2759 = vand.u32 %v2758, 4294901760
    %2760 = vmatpush1.msra.mxu0 %v2759
    %v2761 = vand.u32 %v212, 4294901760
    %v2762 = vsub.f32 %v212, %v2761
    %v2763 = vand.u32 %v2762, 4294901760
    %2764 = vmatprep.subr.mxu0 %v2763
    %v2765 = vand.u32 %v211, 4294901760
    %v2766 = vsub.f32 %v211, %v2765
    %v2767 = vand.u32 %v2766, 4294901760
    %2768 = vmatpush1.msra.mxu0 %v2767
    %v2769 = vand.u32 %v218, 4294901760
    %v2770 = vsub.f32 %v218, %v2769
    %v2771 = vand.u32 %v2770, 4294901760
    %2772 = vmatprep.subr.mxu0 %v2771
    %v2773 = vand.u32 %v217, 4294901760
    %v2774 = vsub.f32 %v217, %v2773
    %v2775 = vand.u32 %v2774, 4294901760
    %2776 = vmatpush1.msra.mxu0 %v2775
    %v2777 = vand.u32 %v224, 4294901760
    %v2778 = vsub.f32 %v224, %v2777
    %v2779 = vand.u32 %v2778, 4294901760
    %2780 = vmatprep.subr.mxu0 %v2779
    %v2781 = vand.u32 %v223, 4294901760
    %v2782 = vsub.f32 %v223, %v2781
    %v2783 = vand.u32 %v2782, 4294901760
    %2784 = vmatpush1.msra.mxu0 %v2783
    %v2785 = vand.u32 %v230, 4294901760
    %v2786 = vsub.f32 %v230, %v2785
    %v2787 = vand.u32 %v2786, 4294901760
    %2788 = vmatprep.subr.mxu0 %v2787
    %v2789 = vand.u32 %v229, 4294901760
    %v2790 = vsub.f32 %v229, %v2789
    %v2791 = vand.u32 %v2790, 4294901760
    %2792 = vmatpush1.msra.mxu0 %v2791
    %v2793 = vand.u32 %v236, 4294901760
    %v2794 = vsub.f32 %v236, %v2793
    %v2795 = vand.u32 %v2794, 4294901760
    %2796 = vmatprep.subr.mxu0 %v2795
    %v2797 = vand.u32 %v235, 4294901760
    %v2798 = vsub.f32 %v235, %v2797
    %v2799 = vand.u32 %v2798, 4294901760
    %2800 = vmatpush1.msra.mxu0 %v2799
    %v2801 = vand.u32 %v44, 4294901760
    %2802 = vmatprep.mubr.f32.mxu0 %v2801
    %v2803 = vand.u32 %v43, 4294901760
    %2804 = vmatmul.mubr.f32.gmra.mrb[0].mxu0 %v2803
    %v2805 = vpop.f32.mrb[0].mxu0
    %v2806 = vadd.f32 %v2529, %v2805
    %v2807 = vpop.f32.mrb[0].mxu0
    %v2808 = vadd.f32 %v2531, %v2807
    %v2809 = vand.u32 %v46, 4294901760
    %2810 = vmatprep.mubr.f32.mxu0 %v2809
    %v2811 = vand.u32 %v45, 4294901760
    %2812 = vmatmul.mubr.f32.gmra.mrb[0].mxu0 %v2811
    %v2813 = vpop.f32.mrb[0].mxu0
    %v2814 = vadd.f32 %v2541, %v2813
    %v2815 = vpop.f32.mrb[0].mxu0
    %v2816 = vadd.f32 %v2543, %v2815
    %2817 = vdwg.mxu0
    %v2818 = vand.u32 %v50, 4294901760
    %2819 = vmatprep.subr.mxu0 %v2818
    %v2820 = vand.u32 %v49, 4294901760
    %2821 = vmatpush1.msra.mxu0 %v2820
    %v2822 = vand.u32 %v56, 4294901760
    %2823 = vmatprep.subr.mxu0 %v2822
    %v2824 = vand.u32 %v55, 4294901760
    %2825 = vmatpush1.msra.mxu0 %v2824
    %v2826 = vand.u32 %v62, 4294901760
    %2827 = vmatprep.subr.mxu0 %v2826
    %v2828 = vand.u32 %v61, 4294901760
    %2829 = vmatpush1.msra.mxu0 %v2828
    %v2830 = vand.u32 %v68, 4294901760
    %2831 = vmatprep.subr.mxu0 %v2830
    %v2832 = vand.u32 %v67, 4294901760
    %2833 = vmatpush1.msra.mxu0 %v2832
    %v2834 = vand.u32 %v74, 4294901760
    %2835 = vmatprep.subr.mxu0 %v2834
    %v2836 = vand.u32 %v73, 4294901760
    %2837 = vmatpush1.msra.mxu0 %v2836
    %v2838 = vand.u32 %v80, 4294901760
    %2839 = vmatprep.subr.mxu0 %v2838
    %v2840 = vand.u32 %v79, 4294901760
    %2841 = vmatpush1.msra.mxu0 %v2840
    %v2842 = vand.u32 %v86, 4294901760
    %2843 = vmatprep.subr.mxu0 %v2842
    %v2844 = vand.u32 %v85, 4294901760
    %2845 = vmatpush1.msra.mxu0 %v2844
    %v2846 = vand.u32 %v92, 4294901760
    %2847 = vmatprep.subr.mxu0 %v2846
    %v2848 = vand.u32 %v91, 4294901760
    %2849 = vmatpush1.msra.mxu0 %v2848
    %v2850 = vand.u32 %v98, 4294901760
    %2851 = vmatprep.subr.mxu0 %v2850
    %v2852 = vand.u32 %v97, 4294901760
    %2853 = vmatpush1.msra.mxu0 %v2852
    %v2854 = vand.u32 %v104, 4294901760
    %2855 = vmatprep.subr.mxu0 %v2854
    %v2856 = vand.u32 %v103, 4294901760
    %2857 = vmatpush1.msra.mxu0 %v2856
    %v2858 = vand.u32 %v110, 4294901760
    %2859 = vmatprep.subr.mxu0 %v2858
    %v2860 = vand.u32 %v109, 4294901760
    %2861 = vmatpush1.msra.mxu0 %v2860
    %v2862 = vand.u32 %v116, 4294901760
    %2863 = vmatprep.subr.mxu0 %v2862
    %v2864 = vand.u32 %v115, 4294901760
    %2865 = vmatpush1.msra.mxu0 %v2864
    %v2866 = vand.u32 %v122, 4294901760
    %2867 = vmatprep.subr.mxu0 %v2866
    %v2868 = vand.u32 %v121, 4294901760
    %2869 = vmatpush1.msra.mxu0 %v2868
    %v2870 = vand.u32 %v128, 4294901760
    %2871 = vmatprep.subr.mxu0 %v2870
    %v2872 = vand.u32 %v127, 4294901760
    %2873 = vmatpush1.msra.mxu0 %v2872
    %v2874 = vand.u32 %v134, 4294901760
    %2875 = vmatprep.subr.mxu0 %v2874
    %v2876 = vand.u32 %v133, 4294901760
    %2877 = vmatpush1.msra.mxu0 %v2876
    %v2878 = vand.u32 %v140, 4294901760
    %2879 = vmatprep.subr.mxu0 %v2878
    %v2880 = vand.u32 %v139, 4294901760
    %2881 = vmatpush1.msra.mxu0 %v2880
    %v2882 = vand.u32 %v146, 4294901760
    %2883 = vmatprep.subr.mxu0 %v2882
    %v2884 = vand.u32 %v145, 4294901760
    %2885 = vmatpush1.msra.mxu0 %v2884
    %v2886 = vand.u32 %v152, 4294901760
    %2887 = vmatprep.subr.mxu0 %v2886
    %v2888 = vand.u32 %v151, 4294901760
    %2889 = vmatpush1.msra.mxu0 %v2888
    %v2890 = vand.u32 %v158, 4294901760
    %2891 = vmatprep.subr.mxu0 %v2890
    %v2892 = vand.u32 %v157, 4294901760
    %2893 = vmatpush1.msra.mxu0 %v2892
    %v2894 = vand.u32 %v164, 4294901760
    %2895 = vmatprep.subr.mxu0 %v2894
    %v2896 = vand.u32 %v163, 4294901760
    %2897 = vmatpush1.msra.mxu0 %v2896
    %v2898 = vand.u32 %v170, 4294901760
    %2899 = vmatprep.subr.mxu0 %v2898
    %v2900 = vand.u32 %v169, 4294901760
    %2901 = vmatpush1.msra.mxu0 %v2900
    %v2902 = vand.u32 %v176, 4294901760
    %2903 = vmatprep.subr.mxu0 %v2902
    %v2904 = vand.u32 %v175, 4294901760
    %2905 = vmatpush1.msra.mxu0 %v2904
    %v2906 = vand.u32 %v182, 4294901760
    %2907 = vmatprep.subr.mxu0 %v2906
    %v2908 = vand.u32 %v181, 4294901760
    %2909 = vmatpush1.msra.mxu0 %v2908
    %v2910 = vand.u32 %v188, 4294901760
    %2911 = vmatprep.subr.mxu0 %v2910
    %v2912 = vand.u32 %v187, 4294901760
    %2913 = vmatpush1.msra.mxu0 %v2912
    %v2914 = vand.u32 %v194, 4294901760
    %2915 = vmatprep.subr.mxu0 %v2914
    %v2916 = vand.u32 %v193, 4294901760
    %2917 = vmatpush1.msra.mxu0 %v2916
    %v2918 = vand.u32 %v200, 4294901760
    %2919 = vmatprep.subr.mxu0 %v2918
    %v2920 = vand.u32 %v199, 4294901760
    %2921 = vmatpush1.msra.mxu0 %v2920
    %v2922 = vand.u32 %v206, 4294901760
    %2923 = vmatprep.subr.mxu0 %v2922
    %v2924 = vand.u32 %v205, 4294901760
    %2925 = vmatpush1.msra.mxu0 %v2924
    %v2926 = vand.u32 %v212, 4294901760
    %2927 = vmatprep.subr.mxu0 %v2926
    %v2928 = vand.u32 %v211, 4294901760
    %2929 = vmatpush1.msra.mxu0 %v2928
    %v2930 = vand.u32 %v218, 4294901760
    %2931 = vmatprep.subr.mxu0 %v2930
    %v2932 = vand.u32 %v217, 4294901760
    %2933 = vmatpush1.msra.mxu0 %v2932
    %v2934 = vand.u32 %v224, 4294901760
    %2935 = vmatprep.subr.mxu0 %v2934
    %v2936 = vand.u32 %v223, 4294901760
    %2937 = vmatpush1.msra.mxu0 %v2936
    %v2938 = vand.u32 %v230, 4294901760
    %2939 = vmatprep.subr.mxu0 %v2938
    %v2940 = vand.u32 %v229, 4294901760
    %2941 = vmatpush1.msra.mxu0 %v2940
    %v2942 = vand.u32 %v236, 4294901760
    %2943 = vmatprep.subr.mxu0 %v2942
    %v2944 = vand.u32 %v235, 4294901760
    %2945 = vmatpush1.msra.mxu0 %v2944
    %v2946 = vand.u32 %v44, 4294901760
    %2947 = vmatprep.mubr.f32.mxu0 %v2946
    %v2948 = vand.u32 %v43, 4294901760
    %2949 = vmatmul.mubr.f32.gmra.mrb[0].mxu0 %v2948
    %v2950 = vpop.f32.mrb[0].mxu0
    %v2951 = vadd.f32 %v2806, %v2950
    %v2952 = vpop.f32.mrb[0].mxu0
    %v2953 = vadd.f32 %v2808, %v2952
    %v2954 = vand.u32 %v46, 4294901760
    %2955 = vmatprep.mubr.f32.mxu0 %v2954
    %v2956 = vand.u32 %v45, 4294901760
    %2957 = vmatmul.mubr.f32.gmra.mrb[0].mxu0 %v2956
    %v2958 = vpop.f32.mrb[0].mxu0
    %v2959 = vadd.f32 %v2814, %v2958
    %v2960 = vpop.f32.mrb[0].mxu0
    %v2961 = vadd.f32 %v2816, %v2960
    %2962 = vdwg.mxu0
    %v2963 = vand.u32 %v52, 4294901760
    %2964 = vmatprep.subr.mxu0 %v2963
    %v2965 = vand.u32 %v51, 4294901760
    %2966 = vmatpush1.msra.mxu0 %v2965
    %v2967 = vand.u32 %v58, 4294901760
    %2968 = vmatprep.subr.mxu0 %v2967
    %v2969 = vand.u32 %v57, 4294901760
    %2970 = vmatpush1.msra.mxu0 %v2969
    %v2971 = vand.u32 %v64, 4294901760
    %2972 = vmatprep.subr.mxu0 %v2971
    %v2973 = vand.u32 %v63, 4294901760
    %2974 = vmatpush1.msra.mxu0 %v2973
    %v2975 = vand.u32 %v70, 4294901760
    %2976 = vmatprep.subr.mxu0 %v2975
    %v2977 = vand.u32 %v69, 4294901760
    %2978 = vmatpush1.msra.mxu0 %v2977
    %v2979 = vand.u32 %v76, 4294901760
    %2980 = vmatprep.subr.mxu0 %v2979
    %v2981 = vand.u32 %v75, 4294901760
    %2982 = vmatpush1.msra.mxu0 %v2981
    %v2983 = vand.u32 %v82, 4294901760
    %2984 = vmatprep.subr.mxu0 %v2983
    %v2985 = vand.u32 %v81, 4294901760
    %2986 = vmatpush1.msra.mxu0 %v2985
    %v2987 = vand.u32 %v88, 4294901760
    %2988 = vmatprep.subr.mxu0 %v2987
    %v2989 = vand.u32 %v87, 4294901760
    %2990 = vmatpush1.msra.mxu0 %v2989
    %v2991 = vand.u32 %v94, 4294901760
    %2992 = vmatprep.subr.mxu0 %v2991
    %v2993 = vand.u32 %v93, 4294901760
    %2994 = vmatpush1.msra.mxu0 %v2993
    %v2995 = vand.u32 %v100, 4294901760
    %2996 = vmatprep.subr.mxu0 %v2995
    %v2997 = vand.u32 %v99, 4294901760
    %2998 = vmatpush1.msra.mxu0 %v2997
    %v2999 = vand.u32 %v106, 4294901760
    %3000 = vmatprep.subr.mxu0 %v2999
    %v3001 = vand.u32 %v105, 4294901760
    %3002 = vmatpush1.msra.mxu0 %v3001
    %v3003 = vand.u32 %v112, 4294901760
    %3004 = vmatprep.subr.mxu0 %v3003
    %v3005 = vand.u32 %v111, 4294901760
    %3006 = vmatpush1.msra.mxu0 %v3005
    %v3007 = vand.u32 %v118, 4294901760
    %3008 = vmatprep.subr.mxu0 %v3007
    %v3009 = vand.u32 %v117, 4294901760
    %3010 = vmatpush1.msra.mxu0 %v3009
    %v3011 = vand.u32 %v124, 4294901760
    %3012 = vmatprep.subr.mxu0 %v3011
    %v3013 = vand.u32 %v123, 4294901760
    %3014 = vmatpush1.msra.mxu0 %v3013
    %v3015 = vand.u32 %v130, 4294901760
    %3016 = vmatprep.subr.mxu0 %v3015
    %v3017 = vand.u32 %v129, 4294901760
    %3018 = vmatpush1.msra.mxu0 %v3017
    %v3019 = vand.u32 %v136, 4294901760
    %3020 = vmatprep.subr.mxu0 %v3019
    %v3021 = vand.u32 %v135, 4294901760
    %3022 = vmatpush1.msra.mxu0 %v3021
    %v3023 = vand.u32 %v142, 4294901760
    %3024 = vmatprep.subr.mxu0 %v3023
    %v3025 = vand.u32 %v141, 4294901760
    %3026 = vmatpush1.msra.mxu0 %v3025
    %v3027 = vand.u32 %v148, 4294901760
    %3028 = vmatprep.subr.mxu0 %v3027
    %v3029 = vand.u32 %v147, 4294901760
    %3030 = vmatpush1.msra.mxu0 %v3029
    %v3031 = vand.u32 %v154, 4294901760
    %3032 = vmatprep.subr.mxu0 %v3031
    %v3033 = vand.u32 %v153, 4294901760
    %3034 = vmatpush1.msra.mxu0 %v3033
    %v3035 = vand.u32 %v160, 4294901760
    %3036 = vmatprep.subr.mxu0 %v3035
    %v3037 = vand.u32 %v159, 4294901760
    %3038 = vmatpush1.msra.mxu0 %v3037
    %v3039 = vand.u32 %v166, 4294901760
    %3040 = vmatprep.subr.mxu0 %v3039
    %v3041 = vand.u32 %v165, 4294901760
    %3042 = vmatpush1.msra.mxu0 %v3041
    %v3043 = vand.u32 %v172, 4294901760
    %3044 = vmatprep.subr.mxu0 %v3043
    %v3045 = vand.u32 %v171, 4294901760
    %3046 = vmatpush1.msra.mxu0 %v3045
    %v3047 = vand.u32 %v178, 4294901760
    %3048 = vmatprep.subr.mxu0 %v3047
    %v3049 = vand.u32 %v177, 4294901760
    %3050 = vmatpush1.msra.mxu0 %v3049
    %v3051 = vand.u32 %v184, 4294901760
    %3052 = vmatprep.subr.mxu0 %v3051
    %v3053 = vand.u32 %v183, 4294901760
    %3054 = vmatpush1.msra.mxu0 %v3053
    %v3055 = vand.u32 %v190, 4294901760
    %3056 = vmatprep.subr.mxu0 %v3055
    %v3057 = vand.u32 %v189, 4294901760
    %3058 = vmatpush1.msra.mxu0 %v3057
    %v3059 = vand.u32 %v196, 4294901760
    %3060 = vmatprep.subr.mxu0 %v3059
    %v3061 = vand.u32 %v195, 4294901760
    %3062 = vmatpush1.msra.mxu0 %v3061
    %v3063 = vand.u32 %v202, 4294901760
    %3064 = vmatprep.subr.mxu0 %v3063
    %v3065 = vand.u32 %v201, 4294901760
    %3066 = vmatpush1.msra.mxu0 %v3065
    %v3067 = vand.u32 %v208, 4294901760
    %3068 = vmatprep.subr.mxu0 %v3067
    %v3069 = vand.u32 %v207, 4294901760
    %3070 = vmatpush1.msra.mxu0 %v3069
    %v3071 = vand.u32 %v214, 4294901760
    %3072 = vmatprep.subr.mxu0 %v3071
    %v3073 = vand.u32 %v213, 4294901760
    %3074 = vmatpush1.msra.mxu0 %v3073
    %v3075 = vand.u32 %v220, 4294901760
    %3076 = vmatprep.subr.mxu0 %v3075
    %v3077 = vand.u32 %v219, 4294901760
    %3078 = vmatpush1.msra.mxu0 %v3077
    %v3079 = vand.u32 %v226, 4294901760
    %3080 = vmatprep.subr.mxu0 %v3079
    %v3081 = vand.u32 %v225, 4294901760
    %3082 = vmatpush1.msra.mxu0 %v3081
    %v3083 = vand.u32 %v232, 4294901760
    %3084 = vmatprep.subr.mxu0 %v3083
    %v3085 = vand.u32 %v231, 4294901760
    %3086 = vmatpush1.msra.mxu0 %v3085
    %v3087 = vand.u32 %v238, 4294901760
    %3088 = vmatprep.subr.mxu0 %v3087
    %v3089 = vand.u32 %v237, 4294901760
    %3090 = vmatpush1.msra.mxu0 %v3089
    %v3091 = vand.u32 %v44, 4294901760
    %v3092 = vsub.f32 %v44, %v3091
    %v3093 = vand.u32 %v3092, 4294901760
    %v3094 = vsub.f32 %v3092, %v3093
    %v3095 = vand.u32 %v3094, 4294901760
    %3096 = vmatprep.mubr.f32.mxu0 %v3095
    %v3097 = vand.u32 %v43, 4294901760
    %v3098 = vsub.f32 %v43, %v3097
    %v3099 = vand.u32 %v3098, 4294901760
    %v3100 = vsub.f32 %v3098, %v3099
    %v3101 = vand.u32 %v3100, 4294901760
    %3102 = vmatmul.mubr.f32.gmra.mrb[0].mxu0 %v3101
    %v3103 = vpop.f32.mrb[0].mxu0
    %v3104 = vadd.f32 %v260, %v3103
    %v3105 = vpop.f32.mrb[0].mxu0
    %v3106 = vadd.f32 %v264, %v3105
    %v3107 = vand.u32 %v46, 4294901760
    %v3108 = vsub.f32 %v46, %v3107
    %v3109 = vand.u32 %v3108, 4294901760
    %v3110 = vsub.f32 %v3108, %v3109
    %v3111 = vand.u32 %v3110, 4294901760
    %3112 = vmatprep.mubr.f32.mxu0 %v3111
    %v3113 = vand.u32 %v45, 4294901760
    %v3114 = vsub.f32 %v45, %v3113
    %v3115 = vand.u32 %v3114, 4294901760
    %v3116 = vsub.f32 %v3114, %v3115
    %v3117 = vand.u32 %v3116, 4294901760
    %3118 = vmatmul.mubr.f32.gmra.mrb[0].mxu0 %v3117
    %v3119 = vpop.f32.mrb[0].mxu0
    %v3120 = vadd.f32 %v260, %v3119
    %v3121 = vpop.f32.mrb[0].mxu0
    %v3122 = vadd.f32 %v264, %v3121
    %3123 = vdwg.mxu0
    %v3124 = vand.u32 %v52, 4294901760
    %v3125 = vsub.f32 %v52, %v3124
    %v3126 = vand.u32 %v3125, 4294901760
    %v3127 = vsub.f32 %v3125, %v3126
    %v3128 = vand.u32 %v3127, 4294901760
    %3129 = vmatprep.subr.mxu0 %v3128
    %v3130 = vand.u32 %v51, 4294901760
    %v3131 = vsub.f32 %v51, %v3130
    %v3132 = vand.u32 %v3131, 4294901760
    %v3133 = vsub.f32 %v3131, %v3132
    %v3134 = vand.u32 %v3133, 4294901760
    %3135 = vmatpush1.msra.mxu0 %v3134
    %v3136 = vand.u32 %v58, 4294901760
    %v3137 = vsub.f32 %v58, %v3136
    %v3138 = vand.u32 %v3137, 4294901760
    %v3139 = vsub.f32 %v3137, %v3138
    %v3140 = vand.u32 %v3139, 4294901760
    %3141 = vmatprep.subr.mxu0 %v3140
    %v3142 = vand.u32 %v57, 4294901760
    %v3143 = vsub.f32 %v57, %v3142
    %v3144 = vand.u32 %v3143, 4294901760
    %v3145 = vsub.f32 %v3143, %v3144
    %v3146 = vand.u32 %v3145, 4294901760
    %3147 = vmatpush1.msra.mxu0 %v3146
    %v3148 = vand.u32 %v64, 4294901760
    %v3149 = vsub.f32 %v64, %v3148
    %v3150 = vand.u32 %v3149, 4294901760
    %v3151 = vsub.f32 %v3149, %v3150
    %v3152 = vand.u32 %v3151, 4294901760
    %3153 = vmatprep.subr.mxu0 %v3152
    %v3154 = vand.u32 %v63, 4294901760
    %v3155 = vsub.f32 %v63, %v3154
    %v3156 = vand.u32 %v3155, 4294901760
    %v3157 = vsub.f32 %v3155, %v3156
    %v3158 = vand.u32 %v3157, 4294901760
    %3159 = vmatpush1.msra.mxu0 %v3158
    %v3160 = vand.u32 %v70, 4294901760
    %v3161 = vsub.f32 %v70, %v3160
    %v3162 = vand.u32 %v3161, 4294901760
    %v3163 = vsub.f32 %v3161, %v3162
    %v3164 = vand.u32 %v3163, 4294901760
    %3165 = vmatprep.subr.mxu0 %v3164
    %v3166 = vand.u32 %v69, 4294901760
    %v3167 = vsub.f32 %v69, %v3166
    %v3168 = vand.u32 %v3167, 4294901760
    %v3169 = vsub.f32 %v3167, %v3168
    %v3170 = vand.u32 %v3169, 4294901760
    %3171 = vmatpush1.msra.mxu0 %v3170
    %v3172 = vand.u32 %v76, 4294901760
    %v3173 = vsub.f32 %v76, %v3172
    %v3174 = vand.u32 %v3173, 4294901760
    %v3175 = vsub.f32 %v3173, %v3174
    %v3176 = vand.u32 %v3175, 4294901760
    %3177 = vmatprep.subr.mxu0 %v3176
    %v3178 = vand.u32 %v75, 4294901760
    %v3179 = vsub.f32 %v75, %v3178
    %v3180 = vand.u32 %v3179, 4294901760
    %v3181 = vsub.f32 %v3179, %v3180
    %v3182 = vand.u32 %v3181, 4294901760
    %3183 = vmatpush1.msra.mxu0 %v3182
    %v3184 = vand.u32 %v82, 4294901760
    %v3185 = vsub.f32 %v82, %v3184
    %v3186 = vand.u32 %v3185, 4294901760
    %v3187 = vsub.f32 %v3185, %v3186
    %v3188 = vand.u32 %v3187, 4294901760
    %3189 = vmatprep.subr.mxu0 %v3188
    %v3190 = vand.u32 %v81, 4294901760
    %v3191 = vsub.f32 %v81, %v3190
    %v3192 = vand.u32 %v3191, 4294901760
    %v3193 = vsub.f32 %v3191, %v3192
    %v3194 = vand.u32 %v3193, 4294901760
    %3195 = vmatpush1.msra.mxu0 %v3194
    %v3196 = vand.u32 %v88, 4294901760
    %v3197 = vsub.f32 %v88, %v3196
    %v3198 = vand.u32 %v3197, 4294901760
    %v3199 = vsub.f32 %v3197, %v3198
    %v3200 = vand.u32 %v3199, 4294901760
    %3201 = vmatprep.subr.mxu0 %v3200
    %v3202 = vand.u32 %v87, 4294901760
    %v3203 = vsub.f32 %v87, %v3202
    %v3204 = vand.u32 %v3203, 4294901760
    %v3205 = vsub.f32 %v3203, %v3204
    %v3206 = vand.u32 %v3205, 4294901760
    %3207 = vmatpush1.msra.mxu0 %v3206
    %v3208 = vand.u32 %v94, 4294901760
    %v3209 = vsub.f32 %v94, %v3208
    %v3210 = vand.u32 %v3209, 4294901760
    %v3211 = vsub.f32 %v3209, %v3210
    %v3212 = vand.u32 %v3211, 4294901760
    %3213 = vmatprep.subr.mxu0 %v3212
    %v3214 = vand.u32 %v93, 4294901760
    %v3215 = vsub.f32 %v93, %v3214
    %v3216 = vand.u32 %v3215, 4294901760
    %v3217 = vsub.f32 %v3215, %v3216
    %v3218 = vand.u32 %v3217, 4294901760
    %3219 = vmatpush1.msra.mxu0 %v3218
    %v3220 = vand.u32 %v100, 4294901760
    %v3221 = vsub.f32 %v100, %v3220
    %v3222 = vand.u32 %v3221, 4294901760
    %v3223 = vsub.f32 %v3221, %v3222
    %v3224 = vand.u32 %v3223, 4294901760
    %3225 = vmatprep.subr.mxu0 %v3224
    %v3226 = vand.u32 %v99, 4294901760
    %v3227 = vsub.f32 %v99, %v3226
    %v3228 = vand.u32 %v3227, 4294901760
    %v3229 = vsub.f32 %v3227, %v3228
    %v3230 = vand.u32 %v3229, 4294901760
    %3231 = vmatpush1.msra.mxu0 %v3230
    %v3232 = vand.u32 %v106, 4294901760
    %v3233 = vsub.f32 %v106, %v3232
    %v3234 = vand.u32 %v3233, 4294901760
    %v3235 = vsub.f32 %v3233, %v3234
    %v3236 = vand.u32 %v3235, 4294901760
    %3237 = vmatprep.subr.mxu0 %v3236
    %v3238 = vand.u32 %v105, 4294901760
    %v3239 = vsub.f32 %v105, %v3238
    %v3240 = vand.u32 %v3239, 4294901760
    %v3241 = vsub.f32 %v3239, %v3240
    %v3242 = vand.u32 %v3241, 4294901760
    %3243 = vmatpush1.msra.mxu0 %v3242
    %v3244 = vand.u32 %v112, 4294901760
    %v3245 = vsub.f32 %v112, %v3244
    %v3246 = vand.u32 %v3245, 4294901760
    %v3247 = vsub.f32 %v3245, %v3246
    %v3248 = vand.u32 %v3247, 4294901760
    %3249 = vmatprep.subr.mxu0 %v3248
    %v3250 = vand.u32 %v111, 4294901760
    %v3251 = vsub.f32 %v111, %v3250
    %v3252 = vand.u32 %v3251, 4294901760
    %v3253 = vsub.f32 %v3251, %v3252
    %v3254 = vand.u32 %v3253, 4294901760
    %3255 = vmatpush1.msra.mxu0 %v3254
    %v3256 = vand.u32 %v118, 4294901760
    %v3257 = vsub.f32 %v118, %v3256
    %v3258 = vand.u32 %v3257, 4294901760
    %v3259 = vsub.f32 %v3257, %v3258
    %v3260 = vand.u32 %v3259, 4294901760
    %3261 = vmatprep.subr.mxu0 %v3260
    %v3262 = vand.u32 %v117, 4294901760
    %v3263 = vsub.f32 %v117, %v3262
    %v3264 = vand.u32 %v3263, 4294901760
    %v3265 = vsub.f32 %v3263, %v3264
    %v3266 = vand.u32 %v3265, 4294901760
    %3267 = vmatpush1.msra.mxu0 %v3266
    %v3268 = vand.u32 %v124, 4294901760
    %v3269 = vsub.f32 %v124, %v3268
    %v3270 = vand.u32 %v3269, 4294901760
    %v3271 = vsub.f32 %v3269, %v3270
    %v3272 = vand.u32 %v3271, 4294901760
    %3273 = vmatprep.subr.mxu0 %v3272
    %v3274 = vand.u32 %v123, 4294901760
    %v3275 = vsub.f32 %v123, %v3274
    %v3276 = vand.u32 %v3275, 4294901760
    %v3277 = vsub.f32 %v3275, %v3276
    %v3278 = vand.u32 %v3277, 4294901760
    %3279 = vmatpush1.msra.mxu0 %v3278
    %v3280 = vand.u32 %v130, 4294901760
    %v3281 = vsub.f32 %v130, %v3280
    %v3282 = vand.u32 %v3281, 4294901760
    %v3283 = vsub.f32 %v3281, %v3282
    %v3284 = vand.u32 %v3283, 4294901760
    %3285 = vmatprep.subr.mxu0 %v3284
    %v3286 = vand.u32 %v129, 4294901760
    %v3287 = vsub.f32 %v129, %v3286
    %v3288 = vand.u32 %v3287, 4294901760
    %v3289 = vsub.f32 %v3287, %v3288
    %v3290 = vand.u32 %v3289, 4294901760
    %3291 = vmatpush1.msra.mxu0 %v3290
    %v3292 = vand.u32 %v136, 4294901760
    %v3293 = vsub.f32 %v136, %v3292
    %v3294 = vand.u32 %v3293, 4294901760
    %v3295 = vsub.f32 %v3293, %v3294
    %v3296 = vand.u32 %v3295, 4294901760
    %3297 = vmatprep.subr.mxu0 %v3296
    %v3298 = vand.u32 %v135, 4294901760
    %v3299 = vsub.f32 %v135, %v3298
    %v3300 = vand.u32 %v3299, 4294901760
    %v3301 = vsub.f32 %v3299, %v3300
    %v3302 = vand.u32 %v3301, 4294901760
    %3303 = vmatpush1.msra.mxu0 %v3302
    %v3304 = vand.u32 %v142, 4294901760
    %v3305 = vsub.f32 %v142, %v3304
    %v3306 = vand.u32 %v3305, 4294901760
    %v3307 = vsub.f32 %v3305, %v3306
    %v3308 = vand.u32 %v3307, 4294901760
    %3309 = vmatprep.subr.mxu0 %v3308
    %v3310 = vand.u32 %v141, 4294901760
    %v3311 = vsub.f32 %v141, %v3310
    %v3312 = vand.u32 %v3311, 4294901760
    %v3313 = vsub.f32 %v3311, %v3312
    %v3314 = vand.u32 %v3313, 4294901760
    %3315 = vmatpush1.msra.mxu0 %v3314
    %v3316 = vand.u32 %v148, 4294901760
    %v3317 = vsub.f32 %v148, %v3316
    %v3318 = vand.u32 %v3317, 4294901760
    %v3319 = vsub.f32 %v3317, %v3318
    %v3320 = vand.u32 %v3319, 4294901760
    %3321 = vmatprep.subr.mxu0 %v3320
    %v3322 = vand.u32 %v147, 4294901760
    %v3323 = vsub.f32 %v147, %v3322
    %v3324 = vand.u32 %v3323, 4294901760
    %v3325 = vsub.f32 %v3323, %v3324
    %v3326 = vand.u32 %v3325, 4294901760
    %3327 = vmatpush1.msra.mxu0 %v3326
    %v3328 = vand.u32 %v154, 4294901760
    %v3329 = vsub.f32 %v154, %v3328
    %v3330 = vand.u32 %v3329, 4294901760
    %v3331 = vsub.f32 %v3329, %v3330
    %v3332 = vand.u32 %v3331, 4294901760
    %3333 = vmatprep.subr.mxu0 %v3332
    %v3334 = vand.u32 %v153, 4294901760
    %v3335 = vsub.f32 %v153, %v3334
    %v3336 = vand.u32 %v3335, 4294901760
    %v3337 = vsub.f32 %v3335, %v3336
    %v3338 = vand.u32 %v3337, 4294901760
    %3339 = vmatpush1.msra.mxu0 %v3338
    %v3340 = vand.u32 %v160, 4294901760
    %v3341 = vsub.f32 %v160, %v3340
    %v3342 = vand.u32 %v3341, 4294901760
    %v3343 = vsub.f32 %v3341, %v3342
    %v3344 = vand.u32 %v3343, 4294901760
    %3345 = vmatprep.subr.mxu0 %v3344
    %v3346 = vand.u32 %v159, 4294901760
    %v3347 = vsub.f32 %v159, %v3346
    %v3348 = vand.u32 %v3347, 4294901760
    %v3349 = vsub.f32 %v3347, %v3348
    %v3350 = vand.u32 %v3349, 4294901760
    %3351 = vmatpush1.msra.mxu0 %v3350
    %v3352 = vand.u32 %v166, 4294901760
    %v3353 = vsub.f32 %v166, %v3352
    %v3354 = vand.u32 %v3353, 4294901760
    %v3355 = vsub.f32 %v3353, %v3354
    %v3356 = vand.u32 %v3355, 4294901760
    %3357 = vmatprep.subr.mxu0 %v3356
    %v3358 = vand.u32 %v165, 4294901760
    %v3359 = vsub.f32 %v165, %v3358
    %v3360 = vand.u32 %v3359, 4294901760
    %v3361 = vsub.f32 %v3359, %v3360
    %v3362 = vand.u32 %v3361, 4294901760
    %3363 = vmatpush1.msra.mxu0 %v3362
    %v3364 = vand.u32 %v172, 4294901760
    %v3365 = vsub.f32 %v172, %v3364
    %v3366 = vand.u32 %v3365, 4294901760
    %v3367 = vsub.f32 %v3365, %v3366
    %v3368 = vand.u32 %v3367, 4294901760
    %3369 = vmatprep.subr.mxu0 %v3368
    %v3370 = vand.u32 %v171, 4294901760
    %v3371 = vsub.f32 %v171, %v3370
    %v3372 = vand.u32 %v3371, 4294901760
    %v3373 = vsub.f32 %v3371, %v3372
    %v3374 = vand.u32 %v3373, 4294901760
    %3375 = vmatpush1.msra.mxu0 %v3374
    %v3376 = vand.u32 %v178, 4294901760
    %v3377 = vsub.f32 %v178, %v3376
    %v3378 = vand.u32 %v3377, 4294901760
    %v3379 = vsub.f32 %v3377, %v3378
    %v3380 = vand.u32 %v3379, 4294901760
    %3381 = vmatprep.subr.mxu0 %v3380
    %v3382 = vand.u32 %v177, 4294901760
    %v3383 = vsub.f32 %v177, %v3382
    %v3384 = vand.u32 %v3383, 4294901760
    %v3385 = vsub.f32 %v3383, %v3384
    %v3386 = vand.u32 %v3385, 4294901760
    %3387 = vmatpush1.msra.mxu0 %v3386
    %v3388 = vand.u32 %v184, 4294901760
    %v3389 = vsub.f32 %v184, %v3388
    %v3390 = vand.u32 %v3389, 4294901760
    %v3391 = vsub.f32 %v3389, %v3390
    %v3392 = vand.u32 %v3391, 4294901760
    %3393 = vmatprep.subr.mxu0 %v3392
    %v3394 = vand.u32 %v183, 4294901760
    %v3395 = vsub.f32 %v183, %v3394
    %v3396 = vand.u32 %v3395, 4294901760
    %v3397 = vsub.f32 %v3395, %v3396
    %v3398 = vand.u32 %v3397, 4294901760
    %3399 = vmatpush1.msra.mxu0 %v3398
    %v3400 = vand.u32 %v190, 4294901760
    %v3401 = vsub.f32 %v190, %v3400
    %v3402 = vand.u32 %v3401, 4294901760
    %v3403 = vsub.f32 %v3401, %v3402
    %v3404 = vand.u32 %v3403, 4294901760
    %3405 = vmatprep.subr.mxu0 %v3404
    %v3406 = vand.u32 %v189, 4294901760
    %v3407 = vsub.f32 %v189, %v3406
    %v3408 = vand.u32 %v3407, 4294901760
    %v3409 = vsub.f32 %v3407, %v3408
    %v3410 = vand.u32 %v3409, 4294901760
    %3411 = vmatpush1.msra.mxu0 %v3410
    %v3412 = vand.u32 %v196, 4294901760
    %v3413 = vsub.f32 %v196, %v3412
    %v3414 = vand.u32 %v3413, 4294901760
    %v3415 = vsub.f32 %v3413, %v3414
    %v3416 = vand.u32 %v3415, 4294901760
    %3417 = vmatprep.subr.mxu0 %v3416
    %v3418 = vand.u32 %v195, 4294901760
    %v3419 = vsub.f32 %v195, %v3418
    %v3420 = vand.u32 %v3419, 4294901760
    %v3421 = vsub.f32 %v3419, %v3420
    %v3422 = vand.u32 %v3421, 4294901760
    %3423 = vmatpush1.msra.mxu0 %v3422
    %v3424 = vand.u32 %v202, 4294901760
    %v3425 = vsub.f32 %v202, %v3424
    %v3426 = vand.u32 %v3425, 4294901760
    %v3427 = vsub.f32 %v3425, %v3426
    %v3428 = vand.u32 %v3427, 4294901760
    %3429 = vmatprep.subr.mxu0 %v3428
    %v3430 = vand.u32 %v201, 4294901760
    %v3431 = vsub.f32 %v201, %v3430
    %v3432 = vand.u32 %v3431, 4294901760
    %v3433 = vsub.f32 %v3431, %v3432
    %v3434 = vand.u32 %v3433, 4294901760
    %3435 = vmatpush1.msra.mxu0 %v3434
    %v3436 = vand.u32 %v208, 4294901760
    %v3437 = vsub.f32 %v208, %v3436
    %v3438 = vand.u32 %v3437, 4294901760
    %v3439 = vsub.f32 %v3437, %v3438
    %v3440 = vand.u32 %v3439, 4294901760
    %3441 = vmatprep.subr.mxu0 %v3440
    %v3442 = vand.u32 %v207, 4294901760
    %v3443 = vsub.f32 %v207, %v3442
    %v3444 = vand.u32 %v3443, 4294901760
    %v3445 = vsub.f32 %v3443, %v3444
    %v3446 = vand.u32 %v3445, 4294901760
    %3447 = vmatpush1.msra.mxu0 %v3446
    %v3448 = vand.u32 %v214, 4294901760
    %v3449 = vsub.f32 %v214, %v3448
    %v3450 = vand.u32 %v3449, 4294901760
    %v3451 = vsub.f32 %v3449, %v3450
    %v3452 = vand.u32 %v3451, 4294901760
    %3453 = vmatprep.subr.mxu0 %v3452
    %v3454 = vand.u32 %v213, 4294901760
    %v3455 = vsub.f32 %v213, %v3454
    %v3456 = vand.u32 %v3455, 4294901760
    %v3457 = vsub.f32 %v3455, %v3456
    %v3458 = vand.u32 %v3457, 4294901760
    %3459 = vmatpush1.msra.mxu0 %v3458
    %v3460 = vand.u32 %v220, 4294901760
    %v3461 = vsub.f32 %v220, %v3460
    %v3462 = vand.u32 %v3461, 4294901760
    %v3463 = vsub.f32 %v3461, %v3462
    %v3464 = vand.u32 %v3463, 4294901760
    %3465 = vmatprep.subr.mxu0 %v3464
    %v3466 = vand.u32 %v219, 4294901760
    %v3467 = vsub.f32 %v219, %v3466
    %v3468 = vand.u32 %v3467, 4294901760
    %v3469 = vsub.f32 %v3467, %v3468
    %v3470 = vand.u32 %v3469, 4294901760
    %3471 = vmatpush1.msra.mxu0 %v3470
    %v3472 = vand.u32 %v226, 4294901760
    %v3473 = vsub.f32 %v226, %v3472
    %v3474 = vand.u32 %v3473, 4294901760
    %v3475 = vsub.f32 %v3473, %v3474
    %v3476 = vand.u32 %v3475, 4294901760
    %3477 = vmatprep.subr.mxu0 %v3476
    %v3478 = vand.u32 %v225, 4294901760
    %v3479 = vsub.f32 %v225, %v3478
    %v3480 = vand.u32 %v3479, 4294901760
    %v3481 = vsub.f32 %v3479, %v3480
    %v3482 = vand.u32 %v3481, 4294901760
    %3483 = vmatpush1.msra.mxu0 %v3482
    %v3484 = vand.u32 %v232, 4294901760
    %v3485 = vsub.f32 %v232, %v3484
    %v3486 = vand.u32 %v3485, 4294901760
    %v3487 = vsub.f32 %v3485, %v3486
    %v3488 = vand.u32 %v3487, 4294901760
    %3489 = vmatprep.subr.mxu0 %v3488
    %v3490 = vand.u32 %v231, 4294901760
    %v3491 = vsub.f32 %v231, %v3490
    %v3492 = vand.u32 %v3491, 4294901760
    %v3493 = vsub.f32 %v3491, %v3492
    %v3494 = vand.u32 %v3493, 4294901760
    %3495 = vmatpush1.msra.mxu0 %v3494
    %v3496 = vand.u32 %v238, 4294901760
    %v3497 = vsub.f32 %v238, %v3496
    %v3498 = vand.u32 %v3497, 4294901760
    %v3499 = vsub.f32 %v3497, %v3498
    %v3500 = vand.u32 %v3499, 4294901760
    %3501 = vmatprep.subr.mxu0 %v3500
    %v3502 = vand.u32 %v237, 4294901760
    %v3503 = vsub.f32 %v237, %v3502
    %v3504 = vand.u32 %v3503, 4294901760
    %v3505 = vsub.f32 %v3503, %v3504
    %v3506 = vand.u32 %v3505, 4294901760
    %3507 = vmatpush1.msra.mxu0 %v3506
    %v3508 = vand.u32 %v44, 4294901760
    %3509 = vmatprep.mubr.f32.mxu0 %v3508
    %v3510 = vand.u32 %v43, 4294901760
    %3511 = vmatmul.mubr.f32.gmra.mrb[0].mxu0 %v3510
    %v3512 = vpop.f32.mrb[0].mxu0
    %v3513 = vadd.f32 %v3104, %v3512
    %v3514 = vpop.f32.mrb[0].mxu0
    %v3515 = vadd.f32 %v3106, %v3514
    %v3516 = vand.u32 %v46, 4294901760
    %3517 = vmatprep.mubr.f32.mxu0 %v3516
    %v3518 = vand.u32 %v45, 4294901760
    %3519 = vmatmul.mubr.f32.gmra.mrb[0].mxu0 %v3518
    %v3520 = vpop.f32.mrb[0].mxu0
    %v3521 = vadd.f32 %v3120, %v3520
    %v3522 = vpop.f32.mrb[0].mxu0
    %v3523 = vadd.f32 %v3122, %v3522
    %3524 = vdwg.mxu0
    %v3525 = vand.u32 %v52, 4294901760
    %v3526 = vsub.f32 %v52, %v3525
    %3527 = vmatprep.subr.mxu0 %v3526
    %v3528 = vand.u32 %v51, 4294901760
    %v3529 = vsub.f32 %v51, %v3528
    %3530 = vmatpush1.msra.mxu0 %v3529
    %v3531 = vand.u32 %v58, 4294901760
    %v3532 = vsub.f32 %v58, %v3531
    %3533 = vmatprep.subr.mxu0 %v3532
    %v3534 = vand.u32 %v57, 4294901760
    %v3535 = vsub.f32 %v57, %v3534
    %3536 = vmatpush1.msra.mxu0 %v3535
    %v3537 = vand.u32 %v64, 4294901760
    %v3538 = vsub.f32 %v64, %v3537
    %3539 = vmatprep.subr.mxu0 %v3538
    %v3540 = vand.u32 %v63, 4294901760
    %v3541 = vsub.f32 %v63, %v3540
    %3542 = vmatpush1.msra.mxu0 %v3541
    %v3543 = vand.u32 %v70, 4294901760
    %v3544 = vsub.f32 %v70, %v3543
    %3545 = vmatprep.subr.mxu0 %v3544
    %v3546 = vand.u32 %v69, 4294901760
    %v3547 = vsub.f32 %v69, %v3546
    %3548 = vmatpush1.msra.mxu0 %v3547
    %v3549 = vand.u32 %v76, 4294901760
    %v3550 = vsub.f32 %v76, %v3549
    %3551 = vmatprep.subr.mxu0 %v3550
    %v3552 = vand.u32 %v75, 4294901760
    %v3553 = vsub.f32 %v75, %v3552
    %3554 = vmatpush1.msra.mxu0 %v3553
    %v3555 = vand.u32 %v82, 4294901760
    %v3556 = vsub.f32 %v82, %v3555
    %3557 = vmatprep.subr.mxu0 %v3556
    %v3558 = vand.u32 %v81, 4294901760
    %v3559 = vsub.f32 %v81, %v3558
    %3560 = vmatpush1.msra.mxu0 %v3559
    %v3561 = vand.u32 %v88, 4294901760
    %v3562 = vsub.f32 %v88, %v3561
    %3563 = vmatprep.subr.mxu0 %v3562
    %v3564 = vand.u32 %v87, 4294901760
    %v3565 = vsub.f32 %v87, %v3564
    %3566 = vmatpush1.msra.mxu0 %v3565
    %v3567 = vand.u32 %v94, 4294901760
    %v3568 = vsub.f32 %v94, %v3567
    %3569 = vmatprep.subr.mxu0 %v3568
    %v3570 = vand.u32 %v93, 4294901760
    %v3571 = vsub.f32 %v93, %v3570
    %3572 = vmatpush1.msra.mxu0 %v3571
    %v3573 = vand.u32 %v100, 4294901760
    %v3574 = vsub.f32 %v100, %v3573
    %3575 = vmatprep.subr.mxu0 %v3574
    %v3576 = vand.u32 %v99, 4294901760
    %v3577 = vsub.f32 %v99, %v3576
    %3578 = vmatpush1.msra.mxu0 %v3577
    %v3579 = vand.u32 %v106, 4294901760
    %v3580 = vsub.f32 %v106, %v3579
    %3581 = vmatprep.subr.mxu0 %v3580
    %v3582 = vand.u32 %v105, 4294901760
    %v3583 = vsub.f32 %v105, %v3582
    %3584 = vmatpush1.msra.mxu0 %v3583
    %v3585 = vand.u32 %v112, 4294901760
    %v3586 = vsub.f32 %v112, %v3585
    %3587 = vmatprep.subr.mxu0 %v3586
    %v3588 = vand.u32 %v111, 4294901760
    %v3589 = vsub.f32 %v111, %v3588
    %3590 = vmatpush1.msra.mxu0 %v3589
    %v3591 = vand.u32 %v118, 4294901760
    %v3592 = vsub.f32 %v118, %v3591
    %3593 = vmatprep.subr.mxu0 %v3592
    %v3594 = vand.u32 %v117, 4294901760
    %v3595 = vsub.f32 %v117, %v3594
    %3596 = vmatpush1.msra.mxu0 %v3595
    %v3597 = vand.u32 %v124, 4294901760
    %v3598 = vsub.f32 %v124, %v3597
    %3599 = vmatprep.subr.mxu0 %v3598
    %v3600 = vand.u32 %v123, 4294901760
    %v3601 = vsub.f32 %v123, %v3600
    %3602 = vmatpush1.msra.mxu0 %v3601
    %v3603 = vand.u32 %v130, 4294901760
    %v3604 = vsub.f32 %v130, %v3603
    %3605 = vmatprep.subr.mxu0 %v3604
    %v3606 = vand.u32 %v129, 4294901760
    %v3607 = vsub.f32 %v129, %v3606
    %3608 = vmatpush1.msra.mxu0 %v3607
    %v3609 = vand.u32 %v136, 4294901760
    %v3610 = vsub.f32 %v136, %v3609
    %3611 = vmatprep.subr.mxu0 %v3610
    %v3612 = vand.u32 %v135, 4294901760
    %v3613 = vsub.f32 %v135, %v3612
    %3614 = vmatpush1.msra.mxu0 %v3613
    %v3615 = vand.u32 %v142, 4294901760
    %v3616 = vsub.f32 %v142, %v3615
    %3617 = vmatprep.subr.mxu0 %v3616
    %v3618 = vand.u32 %v141, 4294901760
    %v3619 = vsub.f32 %v141, %v3618
    %3620 = vmatpush1.msra.mxu0 %v3619
    %v3621 = vand.u32 %v148, 4294901760
    %v3622 = vsub.f32 %v148, %v3621
    %3623 = vmatprep.subr.mxu0 %v3622
    %v3624 = vand.u32 %v147, 4294901760
    %v3625 = vsub.f32 %v147, %v3624
    %3626 = vmatpush1.msra.mxu0 %v3625
    %v3627 = vand.u32 %v154, 4294901760
    %v3628 = vsub.f32 %v154, %v3627
    %3629 = vmatprep.subr.mxu0 %v3628
    %v3630 = vand.u32 %v153, 4294901760
    %v3631 = vsub.f32 %v153, %v3630
    %3632 = vmatpush1.msra.mxu0 %v3631
    %v3633 = vand.u32 %v160, 4294901760
    %v3634 = vsub.f32 %v160, %v3633
    %3635 = vmatprep.subr.mxu0 %v3634
    %v3636 = vand.u32 %v159, 4294901760
    %v3637 = vsub.f32 %v159, %v3636
    %3638 = vmatpush1.msra.mxu0 %v3637
    %v3639 = vand.u32 %v166, 4294901760
    %v3640 = vsub.f32 %v166, %v3639
    %3641 = vmatprep.subr.mxu0 %v3640
    %v3642 = vand.u32 %v165, 4294901760
    %v3643 = vsub.f32 %v165, %v3642
    %3644 = vmatpush1.msra.mxu0 %v3643
    %v3645 = vand.u32 %v172, 4294901760
    %v3646 = vsub.f32 %v172, %v3645
    %3647 = vmatprep.subr.mxu0 %v3646
    %v3648 = vand.u32 %v171, 4294901760
    %v3649 = vsub.f32 %v171, %v3648
    %3650 = vmatpush1.msra.mxu0 %v3649
    %v3651 = vand.u32 %v178, 4294901760
    %v3652 = vsub.f32 %v178, %v3651
    %3653 = vmatprep.subr.mxu0 %v3652
    %v3654 = vand.u32 %v177, 4294901760
    %v3655 = vsub.f32 %v177, %v3654
    %3656 = vmatpush1.msra.mxu0 %v3655
    %v3657 = vand.u32 %v184, 4294901760
    %v3658 = vsub.f32 %v184, %v3657
    %3659 = vmatprep.subr.mxu0 %v3658
    %v3660 = vand.u32 %v183, 4294901760
    %v3661 = vsub.f32 %v183, %v3660
    %3662 = vmatpush1.msra.mxu0 %v3661
    %v3663 = vand.u32 %v190, 4294901760
    %v3664 = vsub.f32 %v190, %v3663
    %3665 = vmatprep.subr.mxu0 %v3664
    %v3666 = vand.u32 %v189, 4294901760
    %v3667 = vsub.f32 %v189, %v3666
    %3668 = vmatpush1.msra.mxu0 %v3667
    %v3669 = vand.u32 %v196, 4294901760
    %v3670 = vsub.f32 %v196, %v3669
    %3671 = vmatprep.subr.mxu0 %v3670
    %v3672 = vand.u32 %v195, 4294901760
    %v3673 = vsub.f32 %v195, %v3672
    %3674 = vmatpush1.msra.mxu0 %v3673
    %v3675 = vand.u32 %v202, 4294901760
    %v3676 = vsub.f32 %v202, %v3675
    %3677 = vmatprep.subr.mxu0 %v3676
    %v3678 = vand.u32 %v201, 4294901760
    %v3679 = vsub.f32 %v201, %v3678
    %3680 = vmatpush1.msra.mxu0 %v3679
    %v3681 = vand.u32 %v208, 4294901760
    %v3682 = vsub.f32 %v208, %v3681
    %3683 = vmatprep.subr.mxu0 %v3682
    %v3684 = vand.u32 %v207, 4294901760
    %v3685 = vsub.f32 %v207, %v3684
    %3686 = vmatpush1.msra.mxu0 %v3685
    %v3687 = vand.u32 %v214, 4294901760
    %v3688 = vsub.f32 %v214, %v3687
    %3689 = vmatprep.subr.mxu0 %v3688
    %v3690 = vand.u32 %v213, 4294901760
    %v3691 = vsub.f32 %v213, %v3690
    %3692 = vmatpush1.msra.mxu0 %v3691
    %v3693 = vand.u32 %v220, 4294901760
    %v3694 = vsub.f32 %v220, %v3693
    %3695 = vmatprep.subr.mxu0 %v3694
    %v3696 = vand.u32 %v219, 4294901760
    %v3697 = vsub.f32 %v219, %v3696
    %3698 = vmatpush1.msra.mxu0 %v3697
    %v3699 = vand.u32 %v226, 4294901760
    %v3700 = vsub.f32 %v226, %v3699
    %3701 = vmatprep.subr.mxu0 %v3700
    %v3702 = vand.u32 %v225, 4294901760
    %v3703 = vsub.f32 %v225, %v3702
    %3704 = vmatpush1.msra.mxu0 %v3703
    %v3705 = vand.u32 %v232, 4294901760
    %v3706 = vsub.f32 %v232, %v3705
    %3707 = vmatprep.subr.mxu0 %v3706
    %v3708 = vand.u32 %v231, 4294901760
    %v3709 = vsub.f32 %v231, %v3708
    %3710 = vmatpush1.msra.mxu0 %v3709
    %v3711 = vand.u32 %v238, 4294901760
    %v3712 = vsub.f32 %v238, %v3711
    %3713 = vmatprep.subr.mxu0 %v3712
    %v3714 = vand.u32 %v237, 4294901760
    %v3715 = vsub.f32 %v237, %v3714
    %3716 = vmatpush1.msra.mxu0 %v3715
    %v3717 = vand.u32 %v44, 4294901760
    %v3718 = vsub.f32 %v44, %v3717
    %3719 = vmatprep.mubr.f32.mxu0 %v3718
    %v3720 = vand.u32 %v43, 4294901760
    %v3721 = vsub.f32 %v43, %v3720
    %3722 = vmatmul.mubr.f32.gmra.mrb[0].mxu0 %v3721
    %v3723 = vpop.f32.mrb[0].mxu0
    %v3724 = vadd.f32 %v3513, %v3723
    %v3725 = vpop.f32.mrb[0].mxu0
    %v3726 = vadd.f32 %v3515, %v3725
    %v3727 = vand.u32 %v46, 4294901760
    %v3728 = vsub.f32 %v46, %v3727
    %3729 = vmatprep.mubr.f32.mxu0 %v3728
    %v3730 = vand.u32 %v45, 4294901760
    %v3731 = vsub.f32 %v45, %v3730
    %3732 = vmatmul.mubr.f32.gmra.mrb[0].mxu0 %v3731
    %v3733 = vpop.f32.mrb[0].mxu0
    %v3734 = vadd.f32 %v3521, %v3733
    %v3735 = vpop.f32.mrb[0].mxu0
    %v3736 = vadd.f32 %v3523, %v3735
    %3737 = vdwg.mxu0
    %v3738 = vand.u32 %v52, 4294901760
    %3739 = vmatprep.subr.mxu0 %v3738
    %v3740 = vand.u32 %v51, 4294901760
    %3741 = vmatpush1.msra.mxu0 %v3740
    %v3742 = vand.u32 %v58, 4294901760
    %3743 = vmatprep.subr.mxu0 %v3742
    %v3744 = vand.u32 %v57, 4294901760
    %3745 = vmatpush1.msra.mxu0 %v3744
    %v3746 = vand.u32 %v64, 4294901760
    %3747 = vmatprep.subr.mxu0 %v3746
    %v3748 = vand.u32 %v63, 4294901760
    %3749 = vmatpush1.msra.mxu0 %v3748
    %v3750 = vand.u32 %v70, 4294901760
    %3751 = vmatprep.subr.mxu0 %v3750
    %v3752 = vand.u32 %v69, 4294901760
    %3753 = vmatpush1.msra.mxu0 %v3752
    %v3754 = vand.u32 %v76, 4294901760
    %3755 = vmatprep.subr.mxu0 %v3754
    %v3756 = vand.u32 %v75, 4294901760
    %3757 = vmatpush1.msra.mxu0 %v3756
    %v3758 = vand.u32 %v82, 4294901760
    %3759 = vmatprep.subr.mxu0 %v3758
    %v3760 = vand.u32 %v81, 4294901760
    %3761 = vmatpush1.msra.mxu0 %v3760
    %v3762 = vand.u32 %v88, 4294901760
    %3763 = vmatprep.subr.mxu0 %v3762
    %v3764 = vand.u32 %v87, 4294901760
    %3765 = vmatpush1.msra.mxu0 %v3764
    %v3766 = vand.u32 %v94, 4294901760
    %3767 = vmatprep.subr.mxu0 %v3766
    %v3768 = vand.u32 %v93, 4294901760
    %3769 = vmatpush1.msra.mxu0 %v3768
    %v3770 = vand.u32 %v100, 4294901760
    %3771 = vmatprep.subr.mxu0 %v3770
    %v3772 = vand.u32 %v99, 4294901760
    %3773 = vmatpush1.msra.mxu0 %v3772
    %v3774 = vand.u32 %v106, 4294901760
    %3775 = vmatprep.subr.mxu0 %v3774
    %v3776 = vand.u32 %v105, 4294901760
    %3777 = vmatpush1.msra.mxu0 %v3776
    %v3778 = vand.u32 %v112, 4294901760
    %3779 = vmatprep.subr.mxu0 %v3778
    %v3780 = vand.u32 %v111, 4294901760
    %3781 = vmatpush1.msra.mxu0 %v3780
    %v3782 = vand.u32 %v118, 4294901760
    %3783 = vmatprep.subr.mxu0 %v3782
    %v3784 = vand.u32 %v117, 4294901760
    %3785 = vmatpush1.msra.mxu0 %v3784
    %v3786 = vand.u32 %v124, 4294901760
    %3787 = vmatprep.subr.mxu0 %v3786
    %v3788 = vand.u32 %v123, 4294901760
    %3789 = vmatpush1.msra.mxu0 %v3788
    %v3790 = vand.u32 %v130, 4294901760
    %3791 = vmatprep.subr.mxu0 %v3790
    %v3792 = vand.u32 %v129, 4294901760
    %3793 = vmatpush1.msra.mxu0 %v3792
    %v3794 = vand.u32 %v136, 4294901760
    %3795 = vmatprep.subr.mxu0 %v3794
    %v3796 = vand.u32 %v135, 4294901760
    %3797 = vmatpush1.msra.mxu0 %v3796
    %v3798 = vand.u32 %v142, 4294901760
    %3799 = vmatprep.subr.mxu0 %v3798
    %v3800 = vand.u32 %v141, 4294901760
    %3801 = vmatpush1.msra.mxu0 %v3800
    %v3802 = vand.u32 %v148, 4294901760
    %3803 = vmatprep.subr.mxu0 %v3802
    %v3804 = vand.u32 %v147, 4294901760
    %3805 = vmatpush1.msra.mxu0 %v3804
    %v3806 = vand.u32 %v154, 4294901760
    %3807 = vmatprep.subr.mxu0 %v3806
    %v3808 = vand.u32 %v153, 4294901760
    %3809 = vmatpush1.msra.mxu0 %v3808
    %v3810 = vand.u32 %v160, 4294901760
    %3811 = vmatprep.subr.mxu0 %v3810
    %v3812 = vand.u32 %v159, 4294901760
    %3813 = vmatpush1.msra.mxu0 %v3812
    %v3814 = vand.u32 %v166, 4294901760
    %3815 = vmatprep.subr.mxu0 %v3814
    %v3816 = vand.u32 %v165, 4294901760
    %3817 = vmatpush1.msra.mxu0 %v3816
    %v3818 = vand.u32 %v172, 4294901760
    %3819 = vmatprep.subr.mxu0 %v3818
    %v3820 = vand.u32 %v171, 4294901760
    %3821 = vmatpush1.msra.mxu0 %v3820
    %v3822 = vand.u32 %v178, 4294901760
    %3823 = vmatprep.subr.mxu0 %v3822
    %v3824 = vand.u32 %v177, 4294901760
    %3825 = vmatpush1.msra.mxu0 %v3824
    %v3826 = vand.u32 %v184, 4294901760
    %3827 = vmatprep.subr.mxu0 %v3826
    %v3828 = vand.u32 %v183, 4294901760
    %3829 = vmatpush1.msra.mxu0 %v3828
    %v3830 = vand.u32 %v190, 4294901760
    %3831 = vmatprep.subr.mxu0 %v3830
    %v3832 = vand.u32 %v189, 4294901760
    %3833 = vmatpush1.msra.mxu0 %v3832
    %v3834 = vand.u32 %v196, 4294901760
    %3835 = vmatprep.subr.mxu0 %v3834
    %v3836 = vand.u32 %v195, 4294901760
    %3837 = vmatpush1.msra.mxu0 %v3836
    %v3838 = vand.u32 %v202, 4294901760
    %3839 = vmatprep.subr.mxu0 %v3838
    %v3840 = vand.u32 %v201, 4294901760
    %3841 = vmatpush1.msra.mxu0 %v3840
    %v3842 = vand.u32 %v208, 4294901760
    %3843 = vmatprep.subr.mxu0 %v3842
    %v3844 = vand.u32 %v207, 4294901760
    %3845 = vmatpush1.msra.mxu0 %v3844
    %v3846 = vand.u32 %v214, 4294901760
    %3847 = vmatprep.subr.mxu0 %v3846
    %v3848 = vand.u32 %v213, 4294901760
    %3849 = vmatpush1.msra.mxu0 %v3848
    %v3850 = vand.u32 %v220, 4294901760
    %3851 = vmatprep.subr.mxu0 %v3850
    %v3852 = vand.u32 %v219, 4294901760
    %3853 = vmatpush1.msra.mxu0 %v3852
    %v3854 = vand.u32 %v226, 4294901760
    %3855 = vmatprep.subr.mxu0 %v3854
    %v3856 = vand.u32 %v225, 4294901760
    %3857 = vmatpush1.msra.mxu0 %v3856
    %v3858 = vand.u32 %v232, 4294901760
    %3859 = vmatprep.subr.mxu0 %v3858
    %v3860 = vand.u32 %v231, 4294901760
    %3861 = vmatpush1.msra.mxu0 %v3860
    %v3862 = vand.u32 %v238, 4294901760
    %3863 = vmatprep.subr.mxu0 %v3862
    %v3864 = vand.u32 %v237, 4294901760
    %3865 = vmatpush1.msra.mxu0 %v3864
    %v3866 = vand.u32 %v44, 4294901760
    %v3867 = vsub.f32 %v44, %v3866
    %v3868 = vand.u32 %v3867, 4294901760
    %3869 = vmatprep.mubr.f32.mxu0 %v3868
    %v3870 = vand.u32 %v43, 4294901760
    %v3871 = vsub.f32 %v43, %v3870
    %v3872 = vand.u32 %v3871, 4294901760
    %3873 = vmatmul.mubr.f32.gmra.mrb[0].mxu0 %v3872
    %v3874 = vpop.f32.mrb[0].mxu0
    %v3875 = vadd.f32 %v3724, %v3874
    %v3876 = vpop.f32.mrb[0].mxu0
    %v3877 = vadd.f32 %v3726, %v3876
    %v3878 = vand.u32 %v46, 4294901760
    %v3879 = vsub.f32 %v46, %v3878
    %v3880 = vand.u32 %v3879, 4294901760
    %3881 = vmatprep.mubr.f32.mxu0 %v3880
    %v3882 = vand.u32 %v45, 4294901760
    %v3883 = vsub.f32 %v45, %v3882
    %v3884 = vand.u32 %v3883, 4294901760
    %3885 = vmatmul.mubr.f32.gmra.mrb[0].mxu0 %v3884
    %v3886 = vpop.f32.mrb[0].mxu0
    %v3887 = vadd.f32 %v3734, %v3886
    %v3888 = vpop.f32.mrb[0].mxu0
    %v3889 = vadd.f32 %v3736, %v3888
    %3890 = vdwg.mxu0
    %v3891 = vand.u32 %v52, 4294901760
    %v3892 = vsub.f32 %v52, %v3891
    %v3893 = vand.u32 %v3892, 4294901760
    %3894 = vmatprep.subr.mxu0 %v3893
    %v3895 = vand.u32 %v51, 4294901760
    %v3896 = vsub.f32 %v51, %v3895
    %v3897 = vand.u32 %v3896, 4294901760
    %3898 = vmatpush1.msra.mxu0 %v3897
    %v3899 = vand.u32 %v58, 4294901760
    %v3900 = vsub.f32 %v58, %v3899
    %v3901 = vand.u32 %v3900, 4294901760
    %3902 = vmatprep.subr.mxu0 %v3901
    %v3903 = vand.u32 %v57, 4294901760
    %v3904 = vsub.f32 %v57, %v3903
    %v3905 = vand.u32 %v3904, 4294901760
    %3906 = vmatpush1.msra.mxu0 %v3905
    %v3907 = vand.u32 %v64, 4294901760
    %v3908 = vsub.f32 %v64, %v3907
    %v3909 = vand.u32 %v3908, 4294901760
    %3910 = vmatprep.subr.mxu0 %v3909
    %v3911 = vand.u32 %v63, 4294901760
    %v3912 = vsub.f32 %v63, %v3911
    %v3913 = vand.u32 %v3912, 4294901760
    %3914 = vmatpush1.msra.mxu0 %v3913
    %v3915 = vand.u32 %v70, 4294901760
    %v3916 = vsub.f32 %v70, %v3915
    %v3917 = vand.u32 %v3916, 4294901760
    %3918 = vmatprep.subr.mxu0 %v3917
    %v3919 = vand.u32 %v69, 4294901760
    %v3920 = vsub.f32 %v69, %v3919
    %v3921 = vand.u32 %v3920, 4294901760
    %3922 = vmatpush1.msra.mxu0 %v3921
    %v3923 = vand.u32 %v76, 4294901760
    %v3924 = vsub.f32 %v76, %v3923
    %v3925 = vand.u32 %v3924, 4294901760
    %3926 = vmatprep.subr.mxu0 %v3925
    %v3927 = vand.u32 %v75, 4294901760
    %v3928 = vsub.f32 %v75, %v3927
    %v3929 = vand.u32 %v3928, 4294901760
    %3930 = vmatpush1.msra.mxu0 %v3929
    %v3931 = vand.u32 %v82, 4294901760
    %v3932 = vsub.f32 %v82, %v3931
    %v3933 = vand.u32 %v3932, 4294901760
    %3934 = vmatprep.subr.mxu0 %v3933
    %v3935 = vand.u32 %v81, 4294901760
    %v3936 = vsub.f32 %v81, %v3935
    %v3937 = vand.u32 %v3936, 4294901760
    %3938 = vmatpush1.msra.mxu0 %v3937
    %v3939 = vand.u32 %v88, 4294901760
    %v3940 = vsub.f32 %v88, %v3939
    %v3941 = vand.u32 %v3940, 4294901760
    %3942 = vmatprep.subr.mxu0 %v3941
    %v3943 = vand.u32 %v87, 4294901760
    %v3944 = vsub.f32 %v87, %v3943
    %v3945 = vand.u32 %v3944, 4294901760
    %3946 = vmatpush1.msra.mxu0 %v3945
    %v3947 = vand.u32 %v94, 4294901760
    %v3948 = vsub.f32 %v94, %v3947
    %v3949 = vand.u32 %v3948, 4294901760
    %3950 = vmatprep.subr.mxu0 %v3949
    %v3951 = vand.u32 %v93, 4294901760
    %v3952 = vsub.f32 %v93, %v3951
    %v3953 = vand.u32 %v3952, 4294901760
    %3954 = vmatpush1.msra.mxu0 %v3953
    %v3955 = vand.u32 %v100, 4294901760
    %v3956 = vsub.f32 %v100, %v3955
    %v3957 = vand.u32 %v3956, 4294901760
    %3958 = vmatprep.subr.mxu0 %v3957
    %v3959 = vand.u32 %v99, 4294901760
    %v3960 = vsub.f32 %v99, %v3959
    %v3961 = vand.u32 %v3960, 4294901760
    %3962 = vmatpush1.msra.mxu0 %v3961
    %v3963 = vand.u32 %v106, 4294901760
    %v3964 = vsub.f32 %v106, %v3963
    %v3965 = vand.u32 %v3964, 4294901760
    %3966 = vmatprep.subr.mxu0 %v3965
    %v3967 = vand.u32 %v105, 4294901760
    %v3968 = vsub.f32 %v105, %v3967
    %v3969 = vand.u32 %v3968, 4294901760
    %3970 = vmatpush1.msra.mxu0 %v3969
    %v3971 = vand.u32 %v112, 4294901760
    %v3972 = vsub.f32 %v112, %v3971
    %v3973 = vand.u32 %v3972, 4294901760
    %3974 = vmatprep.subr.mxu0 %v3973
    %v3975 = vand.u32 %v111, 4294901760
    %v3976 = vsub.f32 %v111, %v3975
    %v3977 = vand.u32 %v3976, 4294901760
    %3978 = vmatpush1.msra.mxu0 %v3977
    %v3979 = vand.u32 %v118, 4294901760
    %v3980 = vsub.f32 %v118, %v3979
    %v3981 = vand.u32 %v3980, 4294901760
    %3982 = vmatprep.subr.mxu0 %v3981
    %v3983 = vand.u32 %v117, 4294901760
    %v3984 = vsub.f32 %v117, %v3983
    %v3985 = vand.u32 %v3984, 4294901760
    %3986 = vmatpush1.msra.mxu0 %v3985
    %v3987 = vand.u32 %v124, 4294901760
    %v3988 = vsub.f32 %v124, %v3987
    %v3989 = vand.u32 %v3988, 4294901760
    %3990 = vmatprep.subr.mxu0 %v3989
    %v3991 = vand.u32 %v123, 4294901760
    %v3992 = vsub.f32 %v123, %v3991
    %v3993 = vand.u32 %v3992, 4294901760
    %3994 = vmatpush1.msra.mxu0 %v3993
    %v3995 = vand.u32 %v130, 4294901760
    %v3996 = vsub.f32 %v130, %v3995
    %v3997 = vand.u32 %v3996, 4294901760
    %3998 = vmatprep.subr.mxu0 %v3997
    %v3999 = vand.u32 %v129, 4294901760
    %v4000 = vsub.f32 %v129, %v3999
    %v4001 = vand.u32 %v4000, 4294901760
    %4002 = vmatpush1.msra.mxu0 %v4001
    %v4003 = vand.u32 %v136, 4294901760
    %v4004 = vsub.f32 %v136, %v4003
    %v4005 = vand.u32 %v4004, 4294901760
    %4006 = vmatprep.subr.mxu0 %v4005
    %v4007 = vand.u32 %v135, 4294901760
    %v4008 = vsub.f32 %v135, %v4007
    %v4009 = vand.u32 %v4008, 4294901760
    %4010 = vmatpush1.msra.mxu0 %v4009
    %v4011 = vand.u32 %v142, 4294901760
    %v4012 = vsub.f32 %v142, %v4011
    %v4013 = vand.u32 %v4012, 4294901760
    %4014 = vmatprep.subr.mxu0 %v4013
    %v4015 = vand.u32 %v141, 4294901760
    %v4016 = vsub.f32 %v141, %v4015
    %v4017 = vand.u32 %v4016, 4294901760
    %4018 = vmatpush1.msra.mxu0 %v4017
    %v4019 = vand.u32 %v148, 4294901760
    %v4020 = vsub.f32 %v148, %v4019
    %v4021 = vand.u32 %v4020, 4294901760
    %4022 = vmatprep.subr.mxu0 %v4021
    %v4023 = vand.u32 %v147, 4294901760
    %v4024 = vsub.f32 %v147, %v4023
    %v4025 = vand.u32 %v4024, 4294901760
    %4026 = vmatpush1.msra.mxu0 %v4025
    %v4027 = vand.u32 %v154, 4294901760
    %v4028 = vsub.f32 %v154, %v4027
    %v4029 = vand.u32 %v4028, 4294901760
    %4030 = vmatprep.subr.mxu0 %v4029
    %v4031 = vand.u32 %v153, 4294901760
    %v4032 = vsub.f32 %v153, %v4031
    %v4033 = vand.u32 %v4032, 4294901760
    %4034 = vmatpush1.msra.mxu0 %v4033
    %v4035 = vand.u32 %v160, 4294901760
    %v4036 = vsub.f32 %v160, %v4035
    %v4037 = vand.u32 %v4036, 4294901760
    %4038 = vmatprep.subr.mxu0 %v4037
    %v4039 = vand.u32 %v159, 4294901760
    %v4040 = vsub.f32 %v159, %v4039
    %v4041 = vand.u32 %v4040, 4294901760
    %4042 = vmatpush1.msra.mxu0 %v4041
    %v4043 = vand.u32 %v166, 4294901760
    %v4044 = vsub.f32 %v166, %v4043
    %v4045 = vand.u32 %v4044, 4294901760
    %4046 = vmatprep.subr.mxu0 %v4045
    %v4047 = vand.u32 %v165, 4294901760
    %v4048 = vsub.f32 %v165, %v4047
    %v4049 = vand.u32 %v4048, 4294901760
    %4050 = vmatpush1.msra.mxu0 %v4049
    %v4051 = vand.u32 %v172, 4294901760
    %v4052 = vsub.f32 %v172, %v4051
    %v4053 = vand.u32 %v4052, 4294901760
    %4054 = vmatprep.subr.mxu0 %v4053
    %v4055 = vand.u32 %v171, 4294901760
    %v4056 = vsub.f32 %v171, %v4055
    %v4057 = vand.u32 %v4056, 4294901760
    %4058 = vmatpush1.msra.mxu0 %v4057
    %v4059 = vand.u32 %v178, 4294901760
    %v4060 = vsub.f32 %v178, %v4059
    %v4061 = vand.u32 %v4060, 4294901760
    %4062 = vmatprep.subr.mxu0 %v4061
    %v4063 = vand.u32 %v177, 4294901760
    %v4064 = vsub.f32 %v177, %v4063
    %v4065 = vand.u32 %v4064, 4294901760
    %4066 = vmatpush1.msra.mxu0 %v4065
    %v4067 = vand.u32 %v184, 4294901760
    %v4068 = vsub.f32 %v184, %v4067
    %v4069 = vand.u32 %v4068, 4294901760
    %4070 = vmatprep.subr.mxu0 %v4069
    %v4071 = vand.u32 %v183, 4294901760
    %v4072 = vsub.f32 %v183, %v4071
    %v4073 = vand.u32 %v4072, 4294901760
    %4074 = vmatpush1.msra.mxu0 %v4073
    %v4075 = vand.u32 %v190, 4294901760
    %v4076 = vsub.f32 %v190, %v4075
    %v4077 = vand.u32 %v4076, 4294901760
    %4078 = vmatprep.subr.mxu0 %v4077
    %v4079 = vand.u32 %v189, 4294901760
    %v4080 = vsub.f32 %v189, %v4079
    %v4081 = vand.u32 %v4080, 4294901760
    %4082 = vmatpush1.msra.mxu0 %v4081
    %v4083 = vand.u32 %v196, 4294901760
    %v4084 = vsub.f32 %v196, %v4083
    %v4085 = vand.u32 %v4084, 4294901760
    %4086 = vmatprep.subr.mxu0 %v4085
    %v4087 = vand.u32 %v195, 4294901760
    %v4088 = vsub.f32 %v195, %v4087
    %v4089 = vand.u32 %v4088, 4294901760
    %4090 = vmatpush1.msra.mxu0 %v4089
    %v4091 = vand.u32 %v202, 4294901760
    %v4092 = vsub.f32 %v202, %v4091
    %v4093 = vand.u32 %v4092, 4294901760
    %4094 = vmatprep.subr.mxu0 %v4093
    %v4095 = vand.u32 %v201, 4294901760
    %v4096 = vsub.f32 %v201, %v4095
    %v4097 = vand.u32 %v4096, 4294901760
    %4098 = vmatpush1.msra.mxu0 %v4097
    %v4099 = vand.u32 %v208, 4294901760
    %v4100 = vsub.f32 %v208, %v4099
    %v4101 = vand.u32 %v4100, 4294901760
    %4102 = vmatprep.subr.mxu0 %v4101
    %v4103 = vand.u32 %v207, 4294901760
    %v4104 = vsub.f32 %v207, %v4103
    %v4105 = vand.u32 %v4104, 4294901760
    %4106 = vmatpush1.msra.mxu0 %v4105
    %v4107 = vand.u32 %v214, 4294901760
    %v4108 = vsub.f32 %v214, %v4107
    %v4109 = vand.u32 %v4108, 4294901760
    %4110 = vmatprep.subr.mxu0 %v4109
    %v4111 = vand.u32 %v213, 4294901760
    %v4112 = vsub.f32 %v213, %v4111
    %v4113 = vand.u32 %v4112, 4294901760
    %4114 = vmatpush1.msra.mxu0 %v4113
    %v4115 = vand.u32 %v220, 4294901760
    %v4116 = vsub.f32 %v220, %v4115
    %v4117 = vand.u32 %v4116, 4294901760
    %4118 = vmatprep.subr.mxu0 %v4117
    %v4119 = vand.u32 %v219, 4294901760
    %v4120 = vsub.f32 %v219, %v4119
    %v4121 = vand.u32 %v4120, 4294901760
    %4122 = vmatpush1.msra.mxu0 %v4121
    %v4123 = vand.u32 %v226, 4294901760
    %v4124 = vsub.f32 %v226, %v4123
    %v4125 = vand.u32 %v4124, 4294901760
    %4126 = vmatprep.subr.mxu0 %v4125
    %v4127 = vand.u32 %v225, 4294901760
    %v4128 = vsub.f32 %v225, %v4127
    %v4129 = vand.u32 %v4128, 4294901760
    %4130 = vmatpush1.msra.mxu0 %v4129
    %v4131 = vand.u32 %v232, 4294901760
    %v4132 = vsub.f32 %v232, %v4131
    %v4133 = vand.u32 %v4132, 4294901760
    %4134 = vmatprep.subr.mxu0 %v4133
    %v4135 = vand.u32 %v231, 4294901760
    %v4136 = vsub.f32 %v231, %v4135
    %v4137 = vand.u32 %v4136, 4294901760
    %4138 = vmatpush1.msra.mxu0 %v4137
    %v4139 = vand.u32 %v238, 4294901760
    %v4140 = vsub.f32 %v238, %v4139
    %v4141 = vand.u32 %v4140, 4294901760
    %4142 = vmatprep.subr.mxu0 %v4141
    %v4143 = vand.u32 %v237, 4294901760
    %v4144 = vsub.f32 %v237, %v4143
    %v4145 = vand.u32 %v4144, 4294901760
    %4146 = vmatpush1.msra.mxu0 %v4145
    %v4147 = vand.u32 %v44, 4294901760
    %4148 = vmatprep.mubr.f32.mxu0 %v4147
    %v4149 = vand.u32 %v43, 4294901760
    %4150 = vmatmul.mubr.f32.gmra.mrb[0].mxu0 %v4149
    %v4151 = vpop.f32.mrb[0].mxu0
    %v4152 = vadd.f32 %v3875, %v4151
    %v4153 = vpop.f32.mrb[0].mxu0
    %v4154 = vadd.f32 %v3877, %v4153
    %v4155 = vand.u32 %v46, 4294901760
    %4156 = vmatprep.mubr.f32.mxu0 %v4155
    %v4157 = vand.u32 %v45, 4294901760
    %4158 = vmatmul.mubr.f32.gmra.mrb[0].mxu0 %v4157
    %v4159 = vpop.f32.mrb[0].mxu0
    %v4160 = vadd.f32 %v3887, %v4159
    %v4161 = vpop.f32.mrb[0].mxu0
    %v4162 = vadd.f32 %v3889, %v4161
    %4163 = vdwg.mxu0
    %v4164 = vand.u32 %v52, 4294901760
    %4165 = vmatprep.subr.mxu0 %v4164
    %v4166 = vand.u32 %v51, 4294901760
    %4167 = vmatpush1.msra.mxu0 %v4166
    %v4168 = vand.u32 %v58, 4294901760
    %4169 = vmatprep.subr.mxu0 %v4168
    %v4170 = vand.u32 %v57, 4294901760
    %4171 = vmatpush1.msra.mxu0 %v4170
    %v4172 = vand.u32 %v64, 4294901760
    %4173 = vmatprep.subr.mxu0 %v4172
    %v4174 = vand.u32 %v63, 4294901760
    %4175 = vmatpush1.msra.mxu0 %v4174
    %v4176 = vand.u32 %v70, 4294901760
    %4177 = vmatprep.subr.mxu0 %v4176
    %v4178 = vand.u32 %v69, 4294901760
    %4179 = vmatpush1.msra.mxu0 %v4178
    %v4180 = vand.u32 %v76, 4294901760
    %4181 = vmatprep.subr.mxu0 %v4180
    %v4182 = vand.u32 %v75, 4294901760
    %4183 = vmatpush1.msra.mxu0 %v4182
    %v4184 = vand.u32 %v82, 4294901760
    %4185 = vmatprep.subr.mxu0 %v4184
    %v4186 = vand.u32 %v81, 4294901760
    %4187 = vmatpush1.msra.mxu0 %v4186
    %v4188 = vand.u32 %v88, 4294901760
    %4189 = vmatprep.subr.mxu0 %v4188
    %v4190 = vand.u32 %v87, 4294901760
    %4191 = vmatpush1.msra.mxu0 %v4190
    %v4192 = vand.u32 %v94, 4294901760
    %4193 = vmatprep.subr.mxu0 %v4192
    %v4194 = vand.u32 %v93, 4294901760
    %4195 = vmatpush1.msra.mxu0 %v4194
    %v4196 = vand.u32 %v100, 4294901760
    %4197 = vmatprep.subr.mxu0 %v4196
    %v4198 = vand.u32 %v99, 4294901760
    %4199 = vmatpush1.msra.mxu0 %v4198
    %v4200 = vand.u32 %v106, 4294901760
    %4201 = vmatprep.subr.mxu0 %v4200
    %v4202 = vand.u32 %v105, 4294901760
    %4203 = vmatpush1.msra.mxu0 %v4202
    %v4204 = vand.u32 %v112, 4294901760
    %4205 = vmatprep.subr.mxu0 %v4204
    %v4206 = vand.u32 %v111, 4294901760
    %4207 = vmatpush1.msra.mxu0 %v4206
    %v4208 = vand.u32 %v118, 4294901760
    %4209 = vmatprep.subr.mxu0 %v4208
    %v4210 = vand.u32 %v117, 4294901760
    %4211 = vmatpush1.msra.mxu0 %v4210
    %v4212 = vand.u32 %v124, 4294901760
    %4213 = vmatprep.subr.mxu0 %v4212
    %v4214 = vand.u32 %v123, 4294901760
    %4215 = vmatpush1.msra.mxu0 %v4214
    %v4216 = vand.u32 %v130, 4294901760
    %4217 = vmatprep.subr.mxu0 %v4216
    %v4218 = vand.u32 %v129, 4294901760
    %4219 = vmatpush1.msra.mxu0 %v4218
    %v4220 = vand.u32 %v136, 4294901760
    %4221 = vmatprep.subr.mxu0 %v4220
    %v4222 = vand.u32 %v135, 4294901760
    %4223 = vmatpush1.msra.mxu0 %v4222
    %v4224 = vand.u32 %v142, 4294901760
    %4225 = vmatprep.subr.mxu0 %v4224
    %v4226 = vand.u32 %v141, 4294901760
    %4227 = vmatpush1.msra.mxu0 %v4226
    %v4228 = vand.u32 %v148, 4294901760
    %4229 = vmatprep.subr.mxu0 %v4228
    %v4230 = vand.u32 %v147, 4294901760
    %4231 = vmatpush1.msra.mxu0 %v4230
    %v4232 = vand.u32 %v154, 4294901760
    %4233 = vmatprep.subr.mxu0 %v4232
    %v4234 = vand.u32 %v153, 4294901760
    %4235 = vmatpush1.msra.mxu0 %v4234
    %v4236 = vand.u32 %v160, 4294901760
    %4237 = vmatprep.subr.mxu0 %v4236
    %v4238 = vand.u32 %v159, 4294901760
    %4239 = vmatpush1.msra.mxu0 %v4238
    %v4240 = vand.u32 %v166, 4294901760
    %4241 = vmatprep.subr.mxu0 %v4240
    %v4242 = vand.u32 %v165, 4294901760
    %4243 = vmatpush1.msra.mxu0 %v4242
    %v4244 = vand.u32 %v172, 4294901760
    %4245 = vmatprep.subr.mxu0 %v4244
    %v4246 = vand.u32 %v171, 4294901760
    %4247 = vmatpush1.msra.mxu0 %v4246
    %v4248 = vand.u32 %v178, 4294901760
    %4249 = vmatprep.subr.mxu0 %v4248
    %v4250 = vand.u32 %v177, 4294901760
    %4251 = vmatpush1.msra.mxu0 %v4250
    %v4252 = vand.u32 %v184, 4294901760
    %4253 = vmatprep.subr.mxu0 %v4252
    %v4254 = vand.u32 %v183, 4294901760
    %4255 = vmatpush1.msra.mxu0 %v4254
    %v4256 = vand.u32 %v190, 4294901760
    %4257 = vmatprep.subr.mxu0 %v4256
    %v4258 = vand.u32 %v189, 4294901760
    %4259 = vmatpush1.msra.mxu0 %v4258
    %v4260 = vand.u32 %v196, 4294901760
    %4261 = vmatprep.subr.mxu0 %v4260
    %v4262 = vand.u32 %v195, 4294901760
    %4263 = vmatpush1.msra.mxu0 %v4262
    %v4264 = vand.u32 %v202, 4294901760
    %4265 = vmatprep.subr.mxu0 %v4264
    %v4266 = vand.u32 %v201, 4294901760
    %4267 = vmatpush1.msra.mxu0 %v4266
    %v4268 = vand.u32 %v208, 4294901760
    %4269 = vmatprep.subr.mxu0 %v4268
    %v4270 = vand.u32 %v207, 4294901760
    %4271 = vmatpush1.msra.mxu0 %v4270
    %v4272 = vand.u32 %v214, 4294901760
    %4273 = vmatprep.subr.mxu0 %v4272
    %v4274 = vand.u32 %v213, 4294901760
    %4275 = vmatpush1.msra.mxu0 %v4274
    %v4276 = vand.u32 %v220, 4294901760
    %4277 = vmatprep.subr.mxu0 %v4276
    %v4278 = vand.u32 %v219, 4294901760
    %4279 = vmatpush1.msra.mxu0 %v4278
    %v4280 = vand.u32 %v226, 4294901760
    %4281 = vmatprep.subr.mxu0 %v4280
    %v4282 = vand.u32 %v225, 4294901760
    %4283 = vmatpush1.msra.mxu0 %v4282
    %v4284 = vand.u32 %v232, 4294901760
    %4285 = vmatprep.subr.mxu0 %v4284
    %v4286 = vand.u32 %v231, 4294901760
    %4287 = vmatpush1.msra.mxu0 %v4286
    %v4288 = vand.u32 %v238, 4294901760
    %4289 = vmatprep.subr.mxu0 %v4288
    %v4290 = vand.u32 %v237, 4294901760
    %4291 = vmatpush1.msra.mxu0 %v4290
    %v4292 = vand.u32 %v44, 4294901760
    %4293 = vmatprep.mubr.f32.mxu0 %v4292
    %v4294 = vand.u32 %v43, 4294901760
    %4295 = vmatmul.mubr.f32.gmra.mrb[0].mxu0 %v4294
    %v4296 = vpop.f32.mrb[0].mxu0
    %v4297 = vadd.f32 %v4152, %v4296
    %v4298 = vpop.f32.mrb[0].mxu0
    %v4299 = vadd.f32 %v4154, %v4298
    %v4300 = vand.u32 %v46, 4294901760
    %4301 = vmatprep.mubr.f32.mxu0 %v4300
    %v4302 = vand.u32 %v45, 4294901760
    %4303 = vmatmul.mubr.f32.gmra.mrb[0].mxu0 %v4302
    %v4304 = vpop.f32.mrb[0].mxu0
    %v4305 = vadd.f32 %v4160, %v4304
    %v4306 = vpop.f32.mrb[0].mxu0
    %v4307 = vadd.f32 %v4162, %v4306
    %4308 = vdwg.mxu0
    %4309 = vst [vmem:[#allocation7] sm:$0xff] %v1605
    %4310 = vst [vmem:[#allocation7 + $0x8] sm:$0xff] %v1607
    %4311 = vst [vmem:[#allocation7 + $0x10] sm:$0xff] %v2951
    %4312 = vst [vmem:[#allocation7 + $0x18] sm:$0xff] %v2953
    %4313 = vst [vmem:[#allocation7 + $0x20] sm:$0xff] %v4297
    %4314 = vst [vmem:[#allocation7 + $0x28] sm:$0xff] %v4299
    %4315 = vst [vmem:[#allocation7 + $0x30] sm:$0xff] %v1613
    %4316 = vst [vmem:[#allocation7 + $0x38] sm:$0xff] %v1615
    %4317 = vst [vmem:[#allocation7 + $0x40] sm:$0xff] %v2959
    %4318 = vst [vmem:[#allocation7 + $0x48] sm:$0xff] %v2961
    %4319 = vst [vmem:[#allocation7 + $0x50] sm:$0xff] %v4305
    %4320 = vst [vmem:[#allocation7 + $0x58] sm:$0xff] %v4307
    // Predicated region
    $region22: #{tpu_custom_call.1} parent=1 // pred_check
      _
    $region23: #{tpu_custom_call.1} parent=1 // pred_check_branch
      %4322 = sbr.rel (0) target = $region25
    $region24: #{tpu_custom_call.1} parent=1 // pred_region
      %s4324 = ssub.s32 1536, 1536
      %4325 = vsyncadd [#allocation4], %s4324
      %s4326 = sshll.u32 [#allocation7], 4
      %s4327 = int_to_ptr.vmem [resolvable:$true] %s4326
      %4332 = dma.vmem_to_hbm [thread:$0]  %s4327, 1536, %s3, [#allocation4], 768, 768, 48
    $region25: #{tpu_custom_call.1} parent=1 // pred_fallthru
      _
    // Predicated region
    $region26: #{tpu_custom_call.1} parent=1 // pred_check
      _
    $region27: #{tpu_custom_call.1} parent=1 // pred_check_branch
      %4334 = sbr.rel (0) target = $region29
    $region28: #{tpu_custom_call.1} parent=1 // pred_region
      %4335 = dma.done [#allocation4], 1536
    $region29: #{tpu_custom_call.1} parent=1 // pred_fallthru
      _
    %4336 = vsyncpa [#allocation3], 1
    %4337 = vsyncpa [#allocation6], 1
    %4338 = vsyncpa [#allocation4], 1

</llo_original>
